<compile_context>
chip_gen: v6e
topology: v6e:2x2x1
jax: 0.10.0
libtpu: 0.0.40
codegen_flags: <defaults>
</compile_context>

<pallas_src>
import math
from functools import lru_cache

import jax
import jax.numpy as jnp
from jax.experimental import pallas as pl
from jax.experimental.pallas import tpu as pltpu

FEAT = 32 * 32 * 3          # 3072
HID = 128                   # padded lane width for all small hidden dims

# (in_features, out_features) of the 8 nn.Linear layers, in forward order.
LAYER_DIMS = [
    (FEAT, 128), (128, 64), (64, 12), (12, 3),     # encoder
    (3, 12), (12, 64), (64, 128), (128, FEAT),     # decoder
]


def _pad_dim(d):
    return d if d == FEAT else HID


_PADDED_DIMS = [(_pad_dim(di), _pad_dim(do)) for di, do in LAYER_DIMS]
_W_ELEMS = sum(di * do for di, do in _PADDED_DIMS)          # padded weight elems


# ----------------------------------------------------------------------------- 
# Kernel: whole 8-layer chain on one batch tile; all weights resident in VMEM.
# -----------------------------------------------------------------------------
def _ae_kernel(x_ref,
               w1, b1, w2, b2, w3, b3, w4, b4,
               w5, b5, w6, b6, w7, b7, w8, b8,
               o_ref):
    h = x_ref[...].astype(jnp.bfloat16)

    def lin(h, w_ref, b_ref):
        # bf16 x bf16 -> fp32 accumulation on the MXU, fp32 bias add.
        return jnp.dot(h, w_ref[...], preferred_element_type=jnp.float32) + b_ref[...]

    def relu16(a):
        return jnp.maximum(a, 0.0).astype(jnp.bfloat16)

    # encoder: (Linear + ReLU) x3, Linear
    h = relu16(lin(h, w1, b1))
    h = relu16(lin(h, w2, b2))
    h = relu16(lin(h, w3, b3))
    h = lin(h, w4, b4).astype(jnp.bfloat16)          # bottleneck, no activation
    # decoder: (Linear + ReLU) x3, Linear + Tanh
    h = relu16(lin(h, w5, b5))
    h = relu16(lin(h, w6, b6))
    h = relu16(lin(h, w7, b7))
    h = jnp.tanh(lin(h, w8, b8))

    o_ref[...] = h.astype(o_ref.dtype)


# ----------------------------------------------------------------------------- 
# Parameter handling
# -----------------------------------------------------------------------------
def init_params(key):
    """Deterministic init mimicking nn.Linear default (U(-1/sqrt(fan_in), +))."""
    params = []
    for (din, dout) in LAYER_DIMS:
        key, kw, kb = jax.random.split(key, 3)
        bound = 1.0 / math.sqrt(din)
        W = jax.random.uniform(kw, (din, dout), jnp.float32, -bound, bound)
        b = jax.random.uniform(kb, (dout,), jnp.float32, -bound, bound)
        params.append((W, b))
    return params


def prepare_params(params, *, weight_dtype=jnp.bfloat16):
    """Pad + cast the weights once; the result is reused across forward calls.

    Zero padding of BOTH weights and biases is what keeps padded lanes exactly
    zero through the non-ReLU bottleneck layer; do not change it.
    """
    prepped = []
    for (W, b) in params:
        din, dout = W.shape
        dinp, doutp = _pad_dim(din), _pad_dim(dout)
        Wp = jnp.zeros((dinp, doutp), weight_dtype).at[:din, :dout].set(
            W.astype(weight_dtype))
        bp = jnp.zeros((1, doutp), jnp.float32).at[0, :dout].set(
            b.astype(jnp.float32))
        prepped.append((Wp, bp))
    return prepped


# ----------------------------------------------------------------------------- 
# Tile / VMEM sizing
# -----------------------------------------------------------------------------
def _round_up(n, m):
    return ((n + m - 1) // m) * m


@lru_cache(maxsize=1)
def _vmem_capacity_bytes():
    try:
        return int(pltpu.get_tpu_info().vmem_capacity_bytes)
    except Exception:
        return 64 << 20          # conservative fallback (v7x per-TensorCore VMEM)


def _bm_ceiling():
    # 512-row tiles are comfortable on 128 MiB parts (v5e/v6e); 256 on 64 MiB v7x.
    return 512 if _vmem_capacity_bytes() >= (100 << 20) else 256


def _pick_bm(batch, bm_req=None):
    if batch < 8:
        return batch                              # single block == full batch dim
    cap = min(bm_req, _bm_ceiling()) if bm_req else _bm_ceiling()
    cap = max(8, _round_up(cap, 8))
    batch8 = _round_up(batch, 8)
    # Aim for ~8 grid steps so the pipeline has depth and both v7x TensorCores
    # get work, but keep steps >= 128 rows so per-step overhead stays amortized.
    bm = _round_up(pl.cdiv(batch, 8), 8)
    bm = max(bm, 128)
    return max(8, min(bm, cap, batch8))


def _raw_vmem_bytes(bm, x_itemsize, out_itemsize):
    io = 2 * bm * FEAT * (x_itemsize + out_itemsize)   # double-buffered x / out tiles
    w = 2 * 2 * _W_ELEMS + (1 << 20)                   # bf16 weights x2 bufs + biases/slack
    interm = 4 * bm * FEAT * 4                         # fp32 intermediates in the body
    return io + w + interm


def _fit_bm(bm, x_itemsize, out_itemsize):
    """Shrink the batch tile until the VMEM estimate fits 75% of real capacity."""
    limit = int(0.75 * _vmem_capacity_bytes())
    while bm > 128 and _raw_vmem_bytes(bm, x_itemsize, out_itemsize) > limit:
        bm = max(128, _round_up(bm // 2, 8))
    return bm


# ----------------------------------------------------------------------------- 
# pallas_call builder (cached) + public forward
# -----------------------------------------------------------------------------
@lru_cache(maxsize=None)
def _build_forward(B, F, bm, x_dtype_name, out_dtype_name):
    x_dtype = jnp.dtype(x_dtype_name)
    out_dtype = jnp.dtype(out_dtype_name)
    grid = (pl.cdiv(B, bm),)

    in_specs = [pl.BlockSpec((bm, F), lambda i: (i, 0))]
    for din_p, dout_p in _PADDED_DIMS:
        in_specs += [
            pl.BlockSpec((din_p, dout_p), lambda i: (0, 0)),   # whole weight, resident
            pl.BlockSpec((1, dout_p), lambda i: (0, 0)),       # whole bias, resident
        ]

    limit = int(0.75 * _vmem_capacity_bytes())
    vmem_limit = min(
        _raw_vmem_bytes(bm, x_dtype.itemsize, out_dtype.itemsize) + (8 << 20),
        limit)

    cost = pl.CostEstimate(
        flops=2 * B * _W_ELEMS,
        transcendentals=B * F,                                  # tanh on the output
        bytes_accessed=B * F * (x_dtype.itemsize + out_dtype.itemsize) + 2 * _W_ELEMS,
    )

    call = pl.pallas_call(
        _ae_kernel,
        out_shape=jax.ShapeDtypeStruct((B, F), out_dtype),
        grid=grid,
        in_specs=in_specs,
        out_specs=pl.BlockSpec((bm, F), lambda i: (i, 0)),
        compiler_params=pltpu.CompilerParams(
            dimension_semantics=("parallel",),
            vmem_limit_bytes=vmem_limit,
        ),
        cost_estimate=cost,
    )

    @jax.jit
    def fwd(x, flat_params):
        return call(x, *flat_params)

    return fwd


def fcn_autoencoder_forward(x, prepped_params, *, bm=None, out_dtype=jnp.float32):
    """Forward pass.  x: (batch, 3072); returns (batch, 3072) in out_dtype."""
    B, F = x.shape
    assert F == FEAT, F
    out_dtype = jnp.dtype(out_dtype)
    x_dtype = jnp.dtype(x.dtype)

    bm_sel = _pick_bm(B, bm)
    bm_sel = _fit_bm(bm_sel, x_dtype.itemsize, out_dtype.itemsize)

    fwd = _build_forward(B, F, bm_sel, x_dtype.name, out_dtype.name)

    flat = []
    for (Wp, bp) in prepped_params:
        flat += [Wp, bp]
    return fwd(x, tuple(flat))


# ----------------------------------------------------------------------------- 
# Pure-JAX reference (mirrors the PyTorch forward)
# -----------------------------------------------------------------------------
def _reference_forward(x, params, *, matmul_dtype=jnp.float32):
    h = x.astype(jnp.float32)
    acts = [jax.nn.relu, jax.nn.relu, jax.nn.relu, lambda v: v,
            jax.nn.relu, jax.nn.relu, jax.nn.relu, jnp.tanh]
    for (W, b), act in zip(params, acts):
        z = jnp.dot(h.astype(matmul_dtype), W.astype(matmul_dtype),
                    preferred_element_type=jnp.float32) + b
        h = act(z)
    return h


if __name__ == "__main__":
    key = jax.random.PRNGKey(0)
    key_p, key_x, key_x2 = jax.random.split(key, 3)

    params = init_params(key_p)
    prepped = prepare_params(params)        # pad + cast to bf16 once, reuse per call

    # batch=2, 3*32*32 flattened features (the module's expected input layout)
    x = jax.random.normal(key_x, (2, FEAT), jnp.float32)

    out = jax.block_until_ready(fcn_autoencoder_forward(x, prepped))
    assert out.shape == (2, FEAT), out.shape
    assert out.dtype == jnp.float32, out.dtype

    # Tight check vs a bf16-matched reference (same rounding, different accum order).
    ref_bf16 = _reference_forward(x, params, matmul_dtype=jnp.bfloat16)
    err_tight = float(jnp.max(jnp.abs(out - ref_bf16)))
    assert err_tight < 1e-2, err_tight

    # Looser fidelity check vs the full-fp32 reference (bf16 MXU operands).
    ref_f32 = _reference_forward(x, params, matmul_dtype=jnp.float32)
    err_loose = float(jnp.max(jnp.abs(out - ref_f32)))
    assert err_loose < 1e-1, err_loose

    # Ragged batch exercising the partial last block (no host-side pad/slice).
    x10 = jax.random.normal(key_x2, (10, FEAT), jnp.float32)
    out10 = jax.block_until_ready(fcn_autoencoder_forward(x10, prepped, bm=8))
    ref10 = _reference_forward(x10, params, matmul_dtype=jnp.bfloat16)
    assert out10.shape == (10, FEAT), out10.shape
    assert float(jnp.max(jnp.abs(out10 - ref10))) < 1e-2

    # bf16 output path (halves writeback HBM traffic when the caller allows it).
    out_bf16 = jax.block_until_ready(
        fcn_autoencoder_forward(x, prepped, out_dtype=jnp.bfloat16))
    assert out_bf16.dtype == jnp.bfloat16
    assert float(jnp.max(jnp.abs(out_bf16.astype(jnp.float32) - out))) < 1e-2

    print("KERNEL_OK")
</pallas_src>

<mosaic_0001>
module attributes {stable_mosaic.version = 11 : i64} {
  func.func @_ae_kernel(%arg0: i32, %arg1: memref<2x3072xf32, #tpu.memory_space<vmem>>, %arg2: memref<3072x128xbf16, #tpu.memory_space<vmem>>, %arg3: memref<1x128xf32, #tpu.memory_space<vmem>>, %arg4: memref<128x128xbf16, #tpu.memory_space<vmem>>, %arg5: memref<1x128xf32, #tpu.memory_space<vmem>>, %arg6: memref<128x128xbf16, #tpu.memory_space<vmem>>, %arg7: memref<1x128xf32, #tpu.memory_space<vmem>>, %arg8: memref<128x128xbf16, #tpu.memory_space<vmem>>, %arg9: memref<1x128xf32, #tpu.memory_space<vmem>>, %arg10: memref<128x128xbf16, #tpu.memory_space<vmem>>, %arg11: memref<1x128xf32, #tpu.memory_space<vmem>>, %arg12: memref<128x128xbf16, #tpu.memory_space<vmem>>, %arg13: memref<1x128xf32, #tpu.memory_space<vmem>>, %arg14: memref<128x128xbf16, #tpu.memory_space<vmem>>, %arg15: memref<1x128xf32, #tpu.memory_space<vmem>>, %arg16: memref<128x3072xbf16, #tpu.memory_space<vmem>>, %arg17: memref<1x3072xf32, #tpu.memory_space<vmem>>, %arg18: memref<2x3072xf32, #tpu.memory_space<vmem>>) attributes {dimension_semantics = [#tpu.dimension_semantics<parallel>], iteration_bounds = array<i64: 1>, scalar_prefetch = 0 : i64, scratch_operands = 0 : i64, tpu.core_type = #tpu.core_type<tc>, window_params = [{transform_indices = @transform_0, window_bounds = array<i64: 2, 3072>}, {pipeline_mode = #tpu.pipeline_mode<synchronous>, transform_indices = @transform_1, window_bounds = array<i64: 3072, 128>}, {pipeline_mode = #tpu.pipeline_mode<synchronous>, transform_indices = @transform_2, window_bounds = array<i64: 1, 128>}, {pipeline_mode = #tpu.pipeline_mode<synchronous>, transform_indices = @transform_3, window_bounds = array<i64: 128, 128>}, {pipeline_mode = #tpu.pipeline_mode<synchronous>, transform_indices = @transform_4, window_bounds = array<i64: 1, 128>}, {pipeline_mode = #tpu.pipeline_mode<synchronous>, transform_indices = @transform_5, window_bounds = array<i64: 128, 128>}, {pipeline_mode = #tpu.pipeline_mode<synchronous>, transform_indices = @transform_6, window_bounds = array<i64: 1, 128>}, {pipeline_mode = #tpu.pipeline_mode<synchronous>, transform_indices = @transform_7, window_bounds = array<i64: 128, 128>}, {pipeline_mode = #tpu.pipeline_mode<synchronous>, transform_indices = @transform_8, window_bounds = array<i64: 1, 128>}, {pipeline_mode = #tpu.pipeline_mode<synchronous>, transform_indices = @transform_9, window_bounds = array<i64: 128, 128>}, {pipeline_mode = #tpu.pipeline_mode<synchronous>, transform_indices = @transform_10, window_bounds = array<i64: 1, 128>}, {pipeline_mode = #tpu.pipeline_mode<synchronous>, transform_indices = @transform_11, window_bounds = array<i64: 128, 128>}, {pipeline_mode = #tpu.pipeline_mode<synchronous>, transform_indices = @transform_12, window_bounds = array<i64: 1, 128>}, {pipeline_mode = #tpu.pipeline_mode<synchronous>, transform_indices = @transform_13, window_bounds = array<i64: 128, 128>}, {pipeline_mode = #tpu.pipeline_mode<synchronous>, transform_indices = @transform_14, window_bounds = array<i64: 1, 128>}, {pipeline_mode = #tpu.pipeline_mode<synchronous>, transform_indices = @transform_15, window_bounds = array<i64: 128, 3072>}, {pipeline_mode = #tpu.pipeline_mode<synchronous>, transform_indices = @transform_16, window_bounds = array<i64: 1, 3072>}, {transform_indices = @transform_17, window_bounds = array<i64: 2, 3072>}]} {
    %c0 = arith.constant 0 : index
    %c0_0 = arith.constant 0 : index
    %0 = vector.load %arg1[%c0, %c0_0] : memref<2x3072xf32, #tpu.memory_space<vmem>>, vector<2x3072xf32>
    %1 = arith.truncf %0 : vector<2x3072xf32> to vector<2x3072xbf16>
    %c0_1 = arith.constant 0 : index
    %c0_2 = arith.constant 0 : index
    %2 = vector.load %arg2[%c0_1, %c0_2] : memref<3072x128xbf16, #tpu.memory_space<vmem>>, vector<3072x128xbf16>
    %cst = arith.constant dense<0.000000e+00> : vector<2x128xf32>
    %3 = tpu.matmul %1, %2, %cst {dimension_numbers = #tpu.dot_dimension_numbers<[1], [0], [0], [1], [0, 0, 1, 1], [], []>} : vector<2x3072xbf16>, vector<3072x128xbf16>, vector<2x128xf32> -> vector<2x128xf32>
    %c0_3 = arith.constant 0 : index
    %c0_4 = arith.constant 0 : index
    %4 = vector.load %arg3[%c0_3, %c0_4] : memref<1x128xf32, #tpu.memory_space<vmem>>, vector<1x128xf32>
    %5 = vector.broadcast %4 : vector<1x128xf32> to vector<2x128xf32>
    %6 = arith.addf %3, %5 : vector<2x128xf32>
    %cst_5 = arith.constant 0.000000e+00 : f32
    %7 = vector.broadcast %cst_5 : f32 to vector<2x128xf32>
    %8 = arith.maximumf %6, %7 : vector<2x128xf32>
    %9 = arith.truncf %8 : vector<2x128xf32> to vector<2x128xbf16>
    %c0_6 = arith.constant 0 : index
    %c0_7 = arith.constant 0 : index
    %10 = vector.load %arg4[%c0_6, %c0_7] : memref<128x128xbf16, #tpu.memory_space<vmem>>, vector<128x128xbf16>
    %cst_8 = arith.constant dense<0.000000e+00> : vector<2x128xf32>
    %11 = tpu.matmul %9, %10, %cst_8 {dimension_numbers = #tpu.dot_dimension_numbers<[1], [0], [0], [1], [0, 0, 1, 1], [], []>} : vector<2x128xbf16>, vector<128x128xbf16>, vector<2x128xf32> -> vector<2x128xf32>
    %c0_9 = arith.constant 0 : index
    %c0_10 = arith.constant 0 : index
    %12 = vector.load %arg5[%c0_9, %c0_10] : memref<1x128xf32, #tpu.memory_space<vmem>>, vector<1x128xf32>
    %13 = vector.broadcast %12 : vector<1x128xf32> to vector<2x128xf32>
    %14 = arith.addf %11, %13 : vector<2x128xf32>
    %cst_11 = arith.constant 0.000000e+00 : f32
    %15 = vector.broadcast %cst_11 : f32 to vector<2x128xf32>
    %16 = arith.maximumf %14, %15 : vector<2x128xf32>
    %17 = arith.truncf %16 : vector<2x128xf32> to vector<2x128xbf16>
    %c0_12 = arith.constant 0 : index
    %c0_13 = arith.constant 0 : index
    %18 = vector.load %arg6[%c0_12, %c0_13] : memref<128x128xbf16, #tpu.memory_space<vmem>>, vector<128x128xbf16>
    %cst_14 = arith.constant dense<0.000000e+00> : vector<2x128xf32>
    %19 = tpu.matmul %17, %18, %cst_14 {dimension_numbers = #tpu.dot_dimension_numbers<[1], [0], [0], [1], [0, 0, 1, 1], [], []>} : vector<2x128xbf16>, vector<128x128xbf16>, vector<2x128xf32> -> vector<2x128xf32>
    %c0_15 = arith.constant 0 : index
    %c0_16 = arith.constant 0 : index
    %20 = vector.load %arg7[%c0_15, %c0_16] : memref<1x128xf32, #tpu.memory_space<vmem>>, vector<1x128xf32>
    %21 = vector.broadcast %20 : vector<1x128xf32> to vector<2x128xf32>
    %22 = arith.addf %19, %21 : vector<2x128xf32>
    %cst_17 = arith.constant 0.000000e+00 : f32
    %23 = vector.broadcast %cst_17 : f32 to vector<2x128xf32>
    %24 = arith.maximumf %22, %23 : vector<2x128xf32>
    %25 = arith.truncf %24 : vector<2x128xf32> to vector<2x128xbf16>
    %c0_18 = arith.constant 0 : index
    %c0_19 = arith.constant 0 : index
    %26 = vector.load %arg8[%c0_18, %c0_19] : memref<128x128xbf16, #tpu.memory_space<vmem>>, vector<128x128xbf16>
    %cst_20 = arith.constant dense<0.000000e+00> : vector<2x128xf32>
    %27 = tpu.matmul %25, %26, %cst_20 {dimension_numbers = #tpu.dot_dimension_numbers<[1], [0], [0], [1], [0, 0, 1, 1], [], []>} : vector<2x128xbf16>, vector<128x128xbf16>, vector<2x128xf32> -> vector<2x128xf32>
    %c0_21 = arith.constant 0 : index
    %c0_22 = arith.constant 0 : index
    %28 = vector.load %arg9[%c0_21, %c0_22] : memref<1x128xf32, #tpu.memory_space<vmem>>, vector<1x128xf32>
    %29 = vector.broadcast %28 : vector<1x128xf32> to vector<2x128xf32>
    %30 = arith.addf %27, %29 : vector<2x128xf32>
    %31 = arith.truncf %30 : vector<2x128xf32> to vector<2x128xbf16>
    %c0_23 = arith.constant 0 : index
    %c0_24 = arith.constant 0 : index
    %32 = vector.load %arg10[%c0_23, %c0_24] : memref<128x128xbf16, #tpu.memory_space<vmem>>, vector<128x128xbf16>
    %cst_25 = arith.constant dense<0.000000e+00> : vector<2x128xf32>
    %33 = tpu.matmul %31, %32, %cst_25 {dimension_numbers = #tpu.dot_dimension_numbers<[1], [0], [0], [1], [0, 0, 1, 1], [], []>} : vector<2x128xbf16>, vector<128x128xbf16>, vector<2x128xf32> -> vector<2x128xf32>
    %c0_26 = arith.constant 0 : index
    %c0_27 = arith.constant 0 : index
    %34 = vector.load %arg11[%c0_26, %c0_27] : memref<1x128xf32, #tpu.memory_space<vmem>>, vector<1x128xf32>
    %35 = vector.broadcast %34 : vector<1x128xf32> to vector<2x128xf32>
    %36 = arith.addf %33, %35 : vector<2x128xf32>
    %cst_28 = arith.constant 0.000000e+00 : f32
    %37 = vector.broadcast %cst_28 : f32 to vector<2x128xf32>
    %38 = arith.maximumf %36, %37 : vector<2x128xf32>
    %39 = arith.truncf %38 : vector<2x128xf32> to vector<2x128xbf16>
    %c0_29 = arith.constant 0 : index
    %c0_30 = arith.constant 0 : index
    %40 = vector.load %arg12[%c0_29, %c0_30] : memref<128x128xbf16, #tpu.memory_space<vmem>>, vector<128x128xbf16>
    %cst_31 = arith.constant dense<0.000000e+00> : vector<2x128xf32>
    %41 = tpu.matmul %39, %40, %cst_31 {dimension_numbers = #tpu.dot_dimension_numbers<[1], [0], [0], [1], [0, 0, 1, 1], [], []>} : vector<2x128xbf16>, vector<128x128xbf16>, vector<2x128xf32> -> vector<2x128xf32>
    %c0_32 = arith.constant 0 : index
    %c0_33 = arith.constant 0 : index
    %42 = vector.load %arg13[%c0_32, %c0_33] : memref<1x128xf32, #tpu.memory_space<vmem>>, vector<1x128xf32>
    %43 = vector.broadcast %42 : vector<1x128xf32> to vector<2x128xf32>
    %44 = arith.addf %41, %43 : vector<2x128xf32>
    %cst_34 = arith.constant 0.000000e+00 : f32
    %45 = vector.broadcast %cst_34 : f32 to vector<2x128xf32>
    %46 = arith.maximumf %44, %45 : vector<2x128xf32>
    %47 = arith.truncf %46 : vector<2x128xf32> to vector<2x128xbf16>
    %c0_35 = arith.constant 0 : index
    %c0_36 = arith.constant 0 : index
    %48 = vector.load %arg14[%c0_35, %c0_36] : memref<128x128xbf16, #tpu.memory_space<vmem>>, vector<128x128xbf16>
    %cst_37 = arith.constant dense<0.000000e+00> : vector<2x128xf32>
    %49 = tpu.matmul %47, %48, %cst_37 {dimension_numbers = #tpu.dot_dimension_numbers<[1], [0], [0], [1], [0, 0, 1, 1], [], []>} : vector<2x128xbf16>, vector<128x128xbf16>, vector<2x128xf32> -> vector<2x128xf32>
    %c0_38 = arith.constant 0 : index
    %c0_39 = arith.constant 0 : index
    %50 = vector.load %arg15[%c0_38, %c0_39] : memref<1x128xf32, #tpu.memory_space<vmem>>, vector<1x128xf32>
    %51 = vector.broadcast %50 : vector<1x128xf32> to vector<2x128xf32>
    %52 = arith.addf %49, %51 : vector<2x128xf32>
    %cst_40 = arith.constant 0.000000e+00 : f32
    %53 = vector.broadcast %cst_40 : f32 to vector<2x128xf32>
    %54 = arith.maximumf %52, %53 : vector<2x128xf32>
    %55 = arith.truncf %54 : vector<2x128xf32> to vector<2x128xbf16>
    %c0_41 = arith.constant 0 : index
    %c0_42 = arith.constant 0 : index
    %56 = vector.load %arg16[%c0_41, %c0_42] : memref<128x3072xbf16, #tpu.memory_space<vmem>>, vector<128x3072xbf16>
    %cst_43 = arith.constant dense<0.000000e+00> : vector<2x3072xf32>
    %57 = tpu.matmul %55, %56, %cst_43 {dimension_numbers = #tpu.dot_dimension_numbers<[1], [0], [0], [1], [0, 0, 1, 1], [], []>} : vector<2x128xbf16>, vector<128x3072xbf16>, vector<2x3072xf32> -> vector<2x3072xf32>
    %c0_44 = arith.constant 0 : index
    %c0_45 = arith.constant 0 : index
    %58 = vector.load %arg17[%c0_44, %c0_45] : memref<1x3072xf32, #tpu.memory_space<vmem>>, vector<1x3072xf32>
    %59 = vector.broadcast %58 : vector<1x3072xf32> to vector<2x3072xf32>
    %60 = arith.addf %57, %59 : vector<2x3072xf32>
    %61 = math.tanh %60 : vector<2x3072xf32>
    %c0_46 = arith.constant 0 : index
    %c0_47 = arith.constant 0 : index
    %62 = vector.load %arg18[%c0_46, %c0_47] : memref<2x3072xf32, #tpu.memory_space<vmem>>, vector<2x3072xf32>
    tpu.vector_store %arg18[%c0_46, %c0_47], %61 {strides = array<i32>} : memref<2x3072xf32, #tpu.memory_space<vmem>>, vector<2x3072xf32>,
    return
  }
  func.func @transform_0(%arg0: i32) -> (i32, i32) {
    %c0_i32 = arith.constant 0 : i32
    %c0_i32_0 = arith.constant 0 : i32
    return %arg0, %c0_i32 : i32, i32
  }
  func.func @transform_1(%arg0: i32) -> (i32, i32) {
    %c0_i32 = arith.constant 0 : i32
    %c0_i32_0 = arith.constant 0 : i32
    %c0_i32_1 = arith.constant 0 : i32
    return %c0_i32, %c0_i32_0 : i32, i32
  }
  func.func @transform_2(%arg0: i32) -> (i32, i32) {
    %c0_i32 = arith.constant 0 : i32
    %c0_i32_0 = arith.constant 0 : i32
    %c0_i32_1 = arith.constant 0 : i32
    return %c0_i32, %c0_i32_0 : i32, i32
  }
  func.func @transform_3(%arg0: i32) -> (i32, i32) {
    %c0_i32 = arith.constant 0 : i32
    %c0_i32_0 = arith.constant 0 : i32
    %c0_i32_1 = arith.constant 0 : i32
    return %c0_i32, %c0_i32_0 : i32, i32
  }
  func.func @transform_4(%arg0: i32) -> (i32, i32) {
    %c0_i32 = arith.constant 0 : i32
    %c0_i32_0 = arith.constant 0 : i32
    %c0_i32_1 = arith.constant 0 : i32
    return %c0_i32, %c0_i32_0 : i32, i32
  }
  func.func @transform_5(%arg0: i32) -> (i32, i32) {
    %c0_i32 = arith.constant 0 : i32
    %c0_i32_0 = arith.constant 0 : i32
    %c0_i32_1 = arith.constant 0 : i32
    return %c0_i32, %c0_i32_0 : i32, i32
  }
  func.func @transform_6(%arg0: i32) -> (i32, i32) {
    %c0_i32 = arith.constant 0 : i32
    %c0_i32_0 = arith.constant 0 : i32
    %c0_i32_1 = arith.constant 0 : i32
    return %c0_i32, %c0_i32_0 : i32, i32
  }
  func.func @transform_7(%arg0: i32) -> (i32, i32) {
    %c0_i32 = arith.constant 0 : i32
    %c0_i32_0 = arith.constant 0 : i32
    %c0_i32_1 = arith.constant 0 : i32
    return %c0_i32, %c0_i32_0 : i32, i32
  }
  func.func @transform_8(%arg0: i32) -> (i32, i32) {
    %c0_i32 = arith.constant 0 : i32
    %c0_i32_0 = arith.constant 0 : i32
    %c0_i32_1 = arith.constant 0 : i32
    return %c0_i32, %c0_i32_0 : i32, i32
  }
  func.func @transform_9(%arg0: i32) -> (i32, i32) {
    %c0_i32 = arith.constant 0 : i32
    %c0_i32_0 = arith.constant 0 : i32
    %c0_i32_1 = arith.constant 0 : i32
    return %c0_i32, %c0_i32_0 : i32, i32
  }
  func.func @transform_10(%arg0: i32) -> (i32, i32) {
    %c0_i32 = arith.constant 0 : i32
    %c0_i32_0 = arith.constant 0 : i32
    %c0_i32_1 = arith.constant 0 : i32
    return %c0_i32, %c0_i32_0 : i32, i32
  }
  func.func @transform_11(%arg0: i32) -> (i32, i32) {
    %c0_i32 = arith.constant 0 : i32
    %c0_i32_0 = arith.constant 0 : i32
    %c0_i32_1 = arith.constant 0 : i32
    return %c0_i32, %c0_i32_0 : i32, i32
  }
  func.func @transform_12(%arg0: i32) -> (i32, i32) {
    %c0_i32 = arith.constant 0 : i32
    %c0_i32_0 = arith.constant 0 : i32
    %c0_i32_1 = arith.constant 0 : i32
    return %c0_i32, %c0_i32_0 : i32, i32
  }
  func.func @transform_13(%arg0: i32) -> (i32, i32) {
    %c0_i32 = arith.constant 0 : i32
    %c0_i32_0 = arith.constant 0 : i32
    %c0_i32_1 = arith.constant 0 : i32
    return %c0_i32, %c0_i32_0 : i32, i32
  }
  func.func @transform_14(%arg0: i32) -> (i32, i32) {
    %c0_i32 = arith.constant 0 : i32
    %c0_i32_0 = arith.constant 0 : i32
    %c0_i32_1 = arith.constant 0 : i32
    return %c0_i32, %c0_i32_0 : i32, i32
  }
  func.func @transform_15(%arg0: i32) -> (i32, i32) {
    %c0_i32 = arith.constant 0 : i32
    %c0_i32_0 = arith.constant 0 : i32
    %c0_i32_1 = arith.constant 0 : i32
    return %c0_i32, %c0_i32_0 : i32, i32
  }
  func.func @transform_16(%arg0: i32) -> (i32, i32) {
    %c0_i32 = arith.constant 0 : i32
    %c0_i32_0 = arith.constant 0 : i32
    %c0_i32_1 = arith.constant 0 : i32
    return %c0_i32, %c0_i32_0 : i32, i32
  }
  func.func @transform_17(%arg0: i32) -> (i32, i32) {
    %c0_i32 = arith.constant 0 : i32
    %c0_i32_0 = arith.constant 0 : i32
    return %arg0, %c0_i32 : i32, i32
  }
}

</mosaic_0001>

<llo_original>
// kernel: fwd.1
$region0: #{fwd.1}
  #allocation0 [shape = 'u32[]', space=smem, size = 0x4, offset = 0x4, fixed_abs, tag = 'smem constant byte address 0x4 - core index']
  #allocation1 [shape = 'u32[144,128]{1,0:T(1,128)}', space=vmem, size = 0x12000, scoped, tag = 'internal scratch']
  %s0 = inlined_call_operand.hbm [shape: f32[2,3072], index: 0, kind: input, shape index: {}]
  %s1 = inlined_call_operand.hbm [shape: bf16[3072,128], index: 1, kind: input, shape index: {}]
  %s2 = inlined_call_operand.vmem [shape: f32[1,128], index: 2, kind: input, shape index: {}]
  %s3 = inlined_call_operand.hbm [shape: bf16[128,128], index: 3, kind: input, shape index: {}]
  %s4 = inlined_call_operand.vmem [shape: f32[1,128], index: 4, kind: input, shape index: {}]
  %s5 = inlined_call_operand.hbm [shape: bf16[128,128], index: 5, kind: input, shape index: {}]
  %s6 = inlined_call_operand.vmem [shape: f32[1,128], index: 6, kind: input, shape index: {}]
  %s7 = inlined_call_operand.hbm [shape: bf16[128,128], index: 7, kind: input, shape index: {}]
  %s8 = inlined_call_operand.vmem [shape: f32[1,128], index: 8, kind: input, shape index: {}]
  %s9 = inlined_call_operand.hbm [shape: bf16[128,128], index: 9, kind: input, shape index: {}]
  %s10 = inlined_call_operand.vmem [shape: f32[1,128], index: 10, kind: input, shape index: {}]
  %s11 = inlined_call_operand.hbm [shape: bf16[128,128], index: 11, kind: input, shape index: {}]
  %s12 = inlined_call_operand.hbm [shape: f32[1,128], index: 12, kind: input, shape index: {}]
  %s13 = inlined_call_operand.hbm [shape: bf16[128,128], index: 13, kind: input, shape index: {}]
  %s14 = inlined_call_operand.hbm [shape: f32[1,128], index: 14, kind: input, shape index: {}]
  %s15 = inlined_call_operand.hbm [shape: bf16[128,3072], index: 15, kind: input, shape index: {}]
  %s16 = inlined_call_operand.vmem [shape: f32[1,3072], index: 16, kind: input, shape index: {}]
  %s17 = inlined_call_operand.hbm [shape: f32[2,3072], index: 17, kind: output, shape index: {}]
  %s18 = sld [smem:[#allocation0]]
  $region122: #{fwd.1} parent=0
    _
  %s20 = ssub.s32 1, %s18
  %s21 = scalar_select 0, %s20, %s18
  $region1: #{fwd.1} parent=0
    #allocation2 [shape = 'u8[24576]{0}', space=vmem, size = 0x6000, scoped, tag = 'input window, operand 0, single buffered']
    #allocation3 [shape = 's32[1]{0}', space=sflag, size = 0x4, scoped, tag = 'scoped memory for fwd.1']
    #allocation4 [shape = 's32[1]{0}', space=sflag, size = 0x4, scoped, tag = 'scoped memory for fwd.1']
    #allocation5 [shape = 'u8[786432]{0}', space=vmem, size = 0xc0000, scoped, tag = 'input window, operand 1, single buffered']
    #allocation6 [shape = 's32[1]{0}', space=sflag, size = 0x4, scoped, tag = 'scoped memory for fwd.1']
    #allocation7 [shape = 'u8[32768]{0}', space=vmem, size = 0x8000, scoped, tag = 'input window, operand 3, single buffered']
    #allocation8 [shape = 'u8[32768]{0}', space=vmem, size = 0x8000, scoped, tag = 'input window, operand 5, single buffered']
    #allocation9 [shape = 's32[1]{0}', space=sflag, size = 0x4, scoped, tag = 'scoped memory for fwd.1']
    #allocation10 [shape = 'u8[32768]{0}', space=vmem, size = 0x8000, scoped, tag = 'input window, operand 7, single buffered']
    #allocation11 [shape = 'u8[32768]{0}', space=vmem, size = 0x8000, scoped, tag = 'input window, operand 9, single buffered']
    #allocation12 [shape = 's32[1]{0}', space=sflag, size = 0x4, scoped, tag = 'scoped memory for fwd.1']
    #allocation13 [shape = 'u8[32768]{0}', space=vmem, size = 0x8000, scoped, tag = 'input window, operand 11, single buffered']
    #allocation14 [shape = 'u8[512]{0}', space=vmem, size = 0x400, scoped, tag = 'input window, operand 12, single buffered']
    #allocation15 [shape = 's32[1]{0}', space=sflag, size = 0x4, scoped, tag = 'scoped memory for fwd.1']
    #allocation16 [shape = 'u8[32768]{0}', space=vmem, size = 0x8000, scoped, tag = 'input window, operand 13, single buffered']
    #allocation17 [shape = 'u8[512]{0}', space=vmem, size = 0x400, scoped, tag = 'input window, operand 14, single buffered']
    #allocation18 [shape = 's32[1]{0}', space=sflag, size = 0x4, scoped, tag = 'scoped memory for fwd.1']
    #allocation19 [shape = 'u8[786432]{0}', space=vmem, size = 0xc0000, scoped, tag = 'input window, operand 15, single buffered']
    #allocation20 [shape = 'u8[24576]{0}', space=vmem, size = 0x6000, scoped, tag = 'output window, operand 0, single buffered']
    %22 = vsyncpa [#allocation3], 0
    %23 = vsyncpa [#allocation6], 0
    %24 = vsyncpa [#allocation9], 0
    %25 = vsyncpa [#allocation12], 0
    %26 = vsyncpa [#allocation15], 0
    %27 = vsyncpa [#allocation18], 0
    %28 = vsyncpa [#allocation4], 0
    // Predicated region
    $region2: #{fwd.1} parent=1 // pred_check
      _
    $region3: #{fwd.1} parent=1 // pred_check_branch
      %30 = sbr.rel (0) target = $region5
    $region4: #{fwd.1} parent=1 // pred_region
      %s32 = ssub.s32 768, 768
      %33 = vsyncadd [#allocation3], %s32
      %s35 = sshll.u32 [#allocation2], 4
      %s36 = int_to_ptr.vmem [resolvable:$true] %s35
      %38 = dma.hbm_to_vmem [thread:$0]  %s0, 768, %s36, [#allocation3]
    $region5: #{fwd.1} parent=1 // pred_fallthru
      _
    // Predicated region
    $region6: #{fwd.1} parent=1 // pred_check
      _
    $region7: #{fwd.1} parent=1 // pred_check_branch
      %40 = sbr.rel (0) target = $region9
    $region8: #{fwd.1} parent=1 // pred_region
      %s42 = ssub.s32 24576, 24576
      %43 = vsyncadd [#allocation6], %s42
      %s44 = sshll.u32 [#allocation5], 4
      %s45 = int_to_ptr.vmem [resolvable:$true] %s44
      %50 = dma.hbm_to_vmem [thread:$0]  %s1, 24576, %s45, [#allocation6], 64, 64, 4
    $region9: #{fwd.1} parent=1 // pred_fallthru
      _
    // Predicated region
    $region10: #{fwd.1} parent=1 // pred_check
      _
    $region11: #{fwd.1} parent=1 // pred_check_branch
      %52 = sbr.rel (0) target = $region13
    $region12: #{fwd.1} parent=1 // pred_region
      _
    $region13: #{fwd.1} parent=1 // pred_fallthru
      _
    // Predicated region
    $region14: #{fwd.1} parent=1 // pred_check
      _
    $region15: #{fwd.1} parent=1 // pred_check_branch
      %54 = sbr.rel (0) target = $region17
    $region16: #{fwd.1} parent=1 // pred_region
      %s56 = ssub.s32 1024, 1024
      %57 = vsyncadd [#allocation6], %s56
      %s58 = sshll.u32 [#allocation7], 4
      %s59 = int_to_ptr.vmem [resolvable:$true] %s58
      %64 = dma.hbm_to_vmem [thread:$0]  %s3, 1024, %s59, [#allocation6], 64, 64, 4
    $region17: #{fwd.1} parent=1 // pred_fallthru
      _
    // Predicated region
    $region18: #{fwd.1} parent=1 // pred_check
      _
    $region19: #{fwd.1} parent=1 // pred_check_branch
      %66 = sbr.rel (0) target = $region21
    $region20: #{fwd.1} parent=1 // pred_region
      _
    $region21: #{fwd.1} parent=1 // pred_fallthru
      _
    // Predicated region
    $region22: #{fwd.1} parent=1 // pred_check
      _
    $region23: #{fwd.1} parent=1 // pred_check_branch
      %68 = sbr.rel (0) target = $region25
    $region24: #{fwd.1} parent=1 // pred_region
      %s70 = ssub.s32 1024, 1024
      %71 = vsyncadd [#allocation9], %s70
      %s72 = sshll.u32 [#allocation8], 4
      %s73 = int_to_ptr.vmem [resolvable:$true] %s72
      %78 = dma.hbm_to_vmem [thread:$0]  %s5, 1024, %s73, [#allocation9], 64, 64, 4
    $region25: #{fwd.1} parent=1 // pred_fallthru
      _
    // Predicated region
    $region26: #{fwd.1} parent=1 // pred_check
      _
    $region27: #{fwd.1} parent=1 // pred_check_branch
      %80 = sbr.rel (0) target = $region29
    $region28: #{fwd.1} parent=1 // pred_region
      _
    $region29: #{fwd.1} parent=1 // pred_fallthru
      _
    // Predicated region
    $region30: #{fwd.1} parent=1 // pred_check
      _
    $region31: #{fwd.1} parent=1 // pred_check_branch
      %82 = sbr.rel (0) target = $region33
    $region32: #{fwd.1} parent=1 // pred_region
      %s84 = ssub.s32 1024, 1024
      %85 = vsyncadd [#allocation9], %s84
      %s86 = sshll.u32 [#allocation10], 4
      %s87 = int_to_ptr.vmem [resolvable:$true] %s86
      %92 = dma.hbm_to_vmem [thread:$0]  %s7, 1024, %s87, [#allocation9], 64, 64, 4
    $region33: #{fwd.1} parent=1 // pred_fallthru
      _
    // Predicated region
    $region34: #{fwd.1} parent=1 // pred_check
      _
    $region35: #{fwd.1} parent=1 // pred_check_branch
      %94 = sbr.rel (0) target = $region37
    $region36: #{fwd.1} parent=1 // pred_region
      _
    $region37: #{fwd.1} parent=1 // pred_fallthru
      _
    // Predicated region
    $region38: #{fwd.1} parent=1 // pred_check
      _
    $region39: #{fwd.1} parent=1 // pred_check_branch
      %96 = sbr.rel (0) target = $region41
    $region40: #{fwd.1} parent=1 // pred_region
      %s98 = ssub.s32 1024, 1024
      %99 = vsyncadd [#allocation12], %s98
      %s100 = sshll.u32 [#allocation11], 4
      %s101 = int_to_ptr.vmem [resolvable:$true] %s100
      %106 = dma.hbm_to_vmem [thread:$0]  %s9, 1024, %s101, [#allocation12], 64, 64, 4
    $region41: #{fwd.1} parent=1 // pred_fallthru
      _
    // Predicated region
    $region42: #{fwd.1} parent=1 // pred_check
      _
    $region43: #{fwd.1} parent=1 // pred_check_branch
      %108 = sbr.rel (0) target = $region45
    $region44: #{fwd.1} parent=1 // pred_region
      _
    $region45: #{fwd.1} parent=1 // pred_fallthru
      _
    // Predicated region
    $region46: #{fwd.1} parent=1 // pred_check
      _
    $region47: #{fwd.1} parent=1 // pred_check_branch
      %110 = sbr.rel (0) target = $region49
    $region48: #{fwd.1} parent=1 // pred_region
      %s112 = ssub.s32 1024, 1024
      %113 = vsyncadd [#allocation12], %s112
      %s114 = sshll.u32 [#allocation13], 4
      %s115 = int_to_ptr.vmem [resolvable:$true] %s114
      %120 = dma.hbm_to_vmem [thread:$0]  %s11, 1024, %s115, [#allocation12], 64, 64, 4
    $region49: #{fwd.1} parent=1 // pred_fallthru
      _
    // Predicated region
    $region50: #{fwd.1} parent=1 // pred_check
      _
    $region51: #{fwd.1} parent=1 // pred_check_branch
      %122 = sbr.rel (0) target = $region53
    $region52: #{fwd.1} parent=1 // pred_region
      %s124 = ssub.s32 16, 16
      %125 = vsyncadd [#allocation15], %s124
      %s127 = sshll.u32 [#allocation14], 4
      %s128 = int_to_ptr.vmem [resolvable:$true] %s127
      %130 = dma.hbm_to_vmem [thread:$0]  %s12, 16, %s128, [#allocation15]
    $region53: #{fwd.1} parent=1 // pred_fallthru
      _
    // Predicated region
    $region54: #{fwd.1} parent=1 // pred_check
      _
    $region55: #{fwd.1} parent=1 // pred_check_branch
      %132 = sbr.rel (0) target = $region57
    $region56: #{fwd.1} parent=1 // pred_region
      %s134 = ssub.s32 1024, 1024
      %135 = vsyncadd [#allocation15], %s134
      %s136 = sshll.u32 [#allocation16], 4
      %s137 = int_to_ptr.vmem [resolvable:$true] %s136
      %142 = dma.hbm_to_vmem [thread:$0]  %s13, 1024, %s137, [#allocation15], 64, 64, 4
    $region57: #{fwd.1} parent=1 // pred_fallthru
      _
    // Predicated region
    $region58: #{fwd.1} parent=1 // pred_check
      _
    $region59: #{fwd.1} parent=1 // pred_check_branch
      %144 = sbr.rel (0) target = $region61
    $region60: #{fwd.1} parent=1 // pred_region
      %s146 = ssub.s32 16, 16
      %147 = vsyncadd [#allocation18], %s146
      %s149 = sshll.u32 [#allocation17], 4
      %s150 = int_to_ptr.vmem [resolvable:$true] %s149
      %152 = dma.hbm_to_vmem [thread:$0]  %s14, 16, %s150, [#allocation18]
    $region61: #{fwd.1} parent=1 // pred_fallthru
      _
    // Predicated region
    $region62: #{fwd.1} parent=1 // pred_check
      _
    $region63: #{fwd.1} parent=1 // pred_check_branch
      %154 = sbr.rel (0) target = $region65
    $region64: #{fwd.1} parent=1 // pred_region
      %s156 = ssub.s32 24576, 24576
      %157 = vsyncadd [#allocation18], %s156
      %s158 = sshll.u32 [#allocation19], 4
      %s159 = int_to_ptr.vmem [resolvable:$true] %s158
      %164 = dma.hbm_to_vmem [thread:$0]  %s15, 24576, %s159, [#allocation18], 1536, 1536, 96
    $region65: #{fwd.1} parent=1 // pred_fallthru
      _
    // Predicated region
    $region66: #{fwd.1} parent=1 // pred_check
      _
    $region67: #{fwd.1} parent=1 // pred_check_branch
      %166 = sbr.rel (0) target = $region69
    $region68: #{fwd.1} parent=1 // pred_region
      _
    $region69: #{fwd.1} parent=1 // pred_fallthru
      _
    // Predicated region
    $region70: #{fwd.1} parent=1 // pred_check
      _
    $region71: #{fwd.1} parent=1 // pred_check_branch
      %168 = sbr.rel (0) target = $region73
    $region72: #{fwd.1} parent=1 // pred_region
      %169 = dma.done [#allocation3], 768
    $region73: #{fwd.1} parent=1 // pred_fallthru
      _
    // Predicated region
    $region74: #{fwd.1} parent=1 // pred_check
      _
    $region75: #{fwd.1} parent=1 // pred_check_branch
      %171 = sbr.rel (0) target = $region77
    $region76: #{fwd.1} parent=1 // pred_region
      %172 = dma.done [#allocation6], 24576
    $region77: #{fwd.1} parent=1 // pred_fallthru
      _
    // Predicated region
    $region78: #{fwd.1} parent=1 // pred_check
      _
    $region79: #{fwd.1} parent=1 // pred_check_branch
      %174 = sbr.rel (0) target = $region81
    $region80: #{fwd.1} parent=1 // pred_region
      %175 = dma.done [#allocation6], 1024
    $region81: #{fwd.1} parent=1 // pred_fallthru
      _
    // Predicated region
    $region82: #{fwd.1} parent=1 // pred_check
      _
    $region83: #{fwd.1} parent=1 // pred_check_branch
      %177 = sbr.rel (0) target = $region85
    $region84: #{fwd.1} parent=1 // pred_region
      %178 = dma.done [#allocation9], 1024
    $region85: #{fwd.1} parent=1 // pred_fallthru
      _
    // Predicated region
    $region86: #{fwd.1} parent=1 // pred_check
      _
    $region87: #{fwd.1} parent=1 // pred_check_branch
      %180 = sbr.rel (0) target = $region89
    $region88: #{fwd.1} parent=1 // pred_region
      %181 = dma.done [#allocation9], 1024
    $region89: #{fwd.1} parent=1 // pred_fallthru
      _
    // Predicated region
    $region90: #{fwd.1} parent=1 // pred_check
      _
    $region91: #{fwd.1} parent=1 // pred_check_branch
      %183 = sbr.rel (0) target = $region93
    $region92: #{fwd.1} parent=1 // pred_region
      %184 = dma.done [#allocation12], 1024
    $region93: #{fwd.1} parent=1 // pred_fallthru
      _
    // Predicated region
    $region94: #{fwd.1} parent=1 // pred_check
      _
    $region95: #{fwd.1} parent=1 // pred_check_branch
      %186 = sbr.rel (0) target = $region97
    $region96: #{fwd.1} parent=1 // pred_region
      %187 = dma.done [#allocation12], 1024
    $region97: #{fwd.1} parent=1 // pred_fallthru
      _
    // Predicated region
    $region98: #{fwd.1} parent=1 // pred_check
      _
    $region99: #{fwd.1} parent=1 // pred_check_branch
      %189 = sbr.rel (0) target = $region101
    $region100: #{fwd.1} parent=1 // pred_region
      %190 = dma.done [#allocation15], 16
    $region101: #{fwd.1} parent=1 // pred_fallthru
      _
    // Predicated region
    $region102: #{fwd.1} parent=1 // pred_check
      _
    $region103: #{fwd.1} parent=1 // pred_check_branch
      %192 = sbr.rel (0) target = $region105
    $region104: #{fwd.1} parent=1 // pred_region
      %193 = dma.done [#allocation15], 1024
    $region105: #{fwd.1} parent=1 // pred_fallthru
      _
    // Predicated region
    $region106: #{fwd.1} parent=1 // pred_check
      _
    $region107: #{fwd.1} parent=1 // pred_check_branch
      %195 = sbr.rel (0) target = $region109
    $region108: #{fwd.1} parent=1 // pred_region
      %196 = dma.done [#allocation18], 16
    $region109: #{fwd.1} parent=1 // pred_fallthru
      _
    // Predicated region
    $region110: #{fwd.1} parent=1 // pred_check
      _
    $region111: #{fwd.1} parent=1 // pred_check_branch
      %198 = sbr.rel (0) target = $region113
    $region112: #{fwd.1} parent=1 // pred_region
      %199 = dma.done [#allocation18], 24576
    $region113: #{fwd.1} parent=1 // pred_fallthru
      _
    %v201 = vld [vmem:[#allocation2] sm:$0xff]
    %v202 = vld [vmem:[#allocation2 + $0x8] sm:$0xff]
    %v203 = vld [vmem:[#allocation2 + $0x10] sm:$0xff]
    %v204 = vld [vmem:[#allocation2 + $0x18] sm:$0xff]
    %v205 = vld [vmem:[#allocation2 + $0x20] sm:$0xff]
    %v206 = vld [vmem:[#allocation2 + $0x28] sm:$0xff]
    %v213 = vcombine.high %v201, %v201
    %v215 = vunpack.c.l.s4 1983009808
    %v216 = vunpack.c.0.s8 %v215
    %v217 = vlaneseq
    %v218 = vshrl.u32 %v217, 7
    %v219 = vsub.s32 %v216, %v218
    %v220 = vrot.slane %v201, %v219
    %v222 = vunpack.c.l.s4 1983009808
    %v223 = vunpack.c.0.s8 %v222
    %v224 = vlaneseq
    %v225 = vshrl.u32 %v224, 7
    %v226 = vsub.s32 %v223, %v225
    %v227 = vrot.slane %v213, %v226
    %v228 = vcombine.high %v220, %v220
    %v229 = vcombine.high %v227, %v227
    %v230 = vcombine.high %v202, %v202
    %v232 = vunpack.c.l.s4 1983009808
    %v233 = vunpack.c.0.s8 %v232
    %v234 = vlaneseq
    %v235 = vshrl.u32 %v234, 7
    %v236 = vsub.s32 %v233, %v235
    %v237 = vrot.slane %v202, %v236
    %v239 = vunpack.c.l.s4 1983009808
    %v240 = vunpack.c.0.s8 %v239
    %v241 = vlaneseq
    %v242 = vshrl.u32 %v241, 7
    %v243 = vsub.s32 %v240, %v242
    %v244 = vrot.slane %v230, %v243
    %v245 = vcombine.high %v237, %v237
    %v246 = vcombine.high %v244, %v244
    %v247 = vcombine.high %v203, %v203
    %v249 = vunpack.c.l.s4 1983009808
    %v250 = vunpack.c.0.s8 %v249
    %v251 = vlaneseq
    %v252 = vshrl.u32 %v251, 7
    %v253 = vsub.s32 %v250, %v252
    %v254 = vrot.slane %v203, %v253
    %v256 = vunpack.c.l.s4 1983009808
    %v257 = vunpack.c.0.s8 %v256
    %v258 = vlaneseq
    %v259 = vshrl.u32 %v258, 7
    %v260 = vsub.s32 %v257, %v259
    %v261 = vrot.slane %v247, %v260
    %v262 = vcombine.high %v254, %v254
    %v263 = vcombine.high %v261, %v261
    %v264 = vcombine.high %v204, %v204
    %v266 = vunpack.c.l.s4 1983009808
    %v267 = vunpack.c.0.s8 %v266
    %v268 = vlaneseq
    %v269 = vshrl.u32 %v268, 7
    %v270 = vsub.s32 %v267, %v269
    %v271 = vrot.slane %v204, %v270
    %v273 = vunpack.c.l.s4 1983009808
    %v274 = vunpack.c.0.s8 %v273
    %v275 = vlaneseq
    %v276 = vshrl.u32 %v275, 7
    %v277 = vsub.s32 %v274, %v276
    %v278 = vrot.slane %v264, %v277
    %v279 = vcombine.high %v271, %v271
    %v280 = vcombine.high %v278, %v278
    %v281 = vcombine.high %v205, %v205
    %v283 = vunpack.c.l.s4 1983009808
    %v284 = vunpack.c.0.s8 %v283
    %v285 = vlaneseq
    %v286 = vshrl.u32 %v285, 7
    %v287 = vsub.s32 %v284, %v286
    %v288 = vrot.slane %v205, %v287
    %v290 = vunpack.c.l.s4 1983009808
    %v291 = vunpack.c.0.s8 %v290
    %v292 = vlaneseq
    %v293 = vshrl.u32 %v292, 7
    %v294 = vsub.s32 %v291, %v293
    %v295 = vrot.slane %v281, %v294
    %v296 = vcombine.high %v288, %v288
    %v297 = vcombine.high %v295, %v295
    %v298 = vcombine.high %v206, %v206
    %v300 = vunpack.c.l.s4 1983009808
    %v301 = vunpack.c.0.s8 %v300
    %v302 = vlaneseq
    %v303 = vshrl.u32 %v302, 7
    %v304 = vsub.s32 %v301, %v303
    %v305 = vrot.slane %v206, %v304
    %v307 = vunpack.c.l.s4 1983009808
    %v308 = vunpack.c.0.s8 %v307
    %v309 = vlaneseq
    %v310 = vshrl.u32 %v309, 7
    %v311 = vsub.s32 %v308, %v310
    %v312 = vrot.slane %v298, %v311
    %v313 = vcombine.high %v305, %v305
    %v314 = vcombine.high %v312, %v312
    %v339 = vpack.c.bf16 %v220, %v220
    %v340 = vpack.c.bf16 %v228, %v228
    %v341 = vpack.c.bf16 %v227, %v227
    %v342 = vpack.c.bf16 %v229, %v229
    %v343 = vpack.c.bf16 %v237, %v237
    %v344 = vpack.c.bf16 %v245, %v245
    %v345 = vpack.c.bf16 %v244, %v244
    %v346 = vpack.c.bf16 %v246, %v246
    %v347 = vpack.c.bf16 %v254, %v254
    %v348 = vpack.c.bf16 %v262, %v262
    %v349 = vpack.c.bf16 %v261, %v261
    %v350 = vpack.c.bf16 %v263, %v263
    %v351 = vpack.c.bf16 %v271, %v271
    %v352 = vpack.c.bf16 %v279, %v279
    %v353 = vpack.c.bf16 %v278, %v278
    %v354 = vpack.c.bf16 %v280, %v280
    %v355 = vpack.c.bf16 %v288, %v288
    %v356 = vpack.c.bf16 %v296, %v296
    %v357 = vpack.c.bf16 %v295, %v295
    %v358 = vpack.c.bf16 %v297, %v297
    %v359 = vpack.c.bf16 %v305, %v305
    %v360 = vpack.c.bf16 %v313, %v313
    %v361 = vpack.c.bf16 %v312, %v312
    %v362 = vpack.c.bf16 %v314, %v314
    %v363 = vld [vmem:[#allocation5] sm:$0xf]
    %v364 = vld [vmem:[#allocation5 + $0x4] sm:$0xf]
    %v365 = vld [vmem:[#allocation5 + $0x8] sm:$0xf]
    %v366 = vld [vmem:[#allocation5 + $0xc] sm:$0xf]
    %v367 = vld [vmem:[#allocation5 + $0x10] sm:$0xf]
    %v368 = vld [vmem:[#allocation5 + $0x14] sm:$0xf]
    %v369 = vld [vmem:[#allocation5 + $0x18] sm:$0xf]
    %v370 = vld [vmem:[#allocation5 + $0x1c] sm:$0xf]
    %v371 = vld [vmem:[#allocation5 + $0x20] sm:$0xf]
    %v372 = vld [vmem:[#allocation5 + $0x24] sm:$0xf]
    %v373 = vld [vmem:[#allocation5 + $0x28] sm:$0xf]
    %v374 = vld [vmem:[#allocation5 + $0x2c] sm:$0xf]
    %v375 = vld [vmem:[#allocation5 + $0x30] sm:$0xf]
    %v376 = vld [vmem:[#allocation5 + $0x34] sm:$0xf]
    %v377 = vld [vmem:[#allocation5 + $0x38] sm:$0xf]
    %v378 = vld [vmem:[#allocation5 + $0x3c] sm:$0xf]
    %v379 = vld [vmem:[#allocation5 + $0x40] sm:$0xf]
    %v380 = vld [vmem:[#allocation5 + $0x44] sm:$0xf]
    %v381 = vld [vmem:[#allocation5 + $0x48] sm:$0xf]
    %v382 = vld [vmem:[#allocation5 + $0x4c] sm:$0xf]
    %v383 = vld [vmem:[#allocation5 + $0x50] sm:$0xf]
    %v384 = vld [vmem:[#allocation5 + $0x54] sm:$0xf]
    %v385 = vld [vmem:[#allocation5 + $0x58] sm:$0xf]
    %v386 = vld [vmem:[#allocation5 + $0x5c] sm:$0xf]
    %v387 = vld [vmem:[#allocation5 + $0x60] sm:$0xf]
    %v388 = vld [vmem:[#allocation5 + $0x64] sm:$0xf]
    %v389 = vld [vmem:[#allocation5 + $0x68] sm:$0xf]
    %v390 = vld [vmem:[#allocation5 + $0x6c] sm:$0xf]
    %v391 = vld [vmem:[#allocation5 + $0x70] sm:$0xf]
    %v392 = vld [vmem:[#allocation5 + $0x74] sm:$0xf]
    %v393 = vld [vmem:[#allocation5 + $0x78] sm:$0xf]
    %v394 = vld [vmem:[#allocation5 + $0x7c] sm:$0xf]
    %v395 = vld [vmem:[#allocation5 + $0x80] sm:$0xf]
    %v396 = vld [vmem:[#allocation5 + $0x84] sm:$0xf]
    %v397 = vld [vmem:[#allocation5 + $0x88] sm:$0xf]
    %v398 = vld [vmem:[#allocation5 + $0x8c] sm:$0xf]
    %v399 = vld [vmem:[#allocation5 + $0x90] sm:$0xf]
    %v400 = vld [vmem:[#allocation5 + $0x94] sm:$0xf]
    %v401 = vld [vmem:[#allocation5 + $0x98] sm:$0xf]
    %v402 = vld [vmem:[#allocation5 + $0x9c] sm:$0xf]
    %v403 = vld [vmem:[#allocation5 + $0xa0] sm:$0xf]
    %v404 = vld [vmem:[#allocation5 + $0xa4] sm:$0xf]
    %v405 = vld [vmem:[#allocation5 + $0xa8] sm:$0xf]
    %v406 = vld [vmem:[#allocation5 + $0xac] sm:$0xf]
    %v407 = vld [vmem:[#allocation5 + $0xb0] sm:$0xf]
    %v408 = vld [vmem:[#allocation5 + $0xb4] sm:$0xf]
    %v409 = vld [vmem:[#allocation5 + $0xb8] sm:$0xf]
    %v410 = vld [vmem:[#allocation5 + $0xbc] sm:$0xf]
    %v411 = vld [vmem:[#allocation5 + $0xc0] sm:$0xf]
    %v412 = vld [vmem:[#allocation5 + $0xc4] sm:$0xf]
    %v413 = vld [vmem:[#allocation5 + $0xc8] sm:$0xf]
    %v414 = vld [vmem:[#allocation5 + $0xcc] sm:$0xf]
    %v415 = vld [vmem:[#allocation5 + $0xd0] sm:$0xf]
    %v416 = vld [vmem:[#allocation5 + $0xd4] sm:$0xf]
    %v417 = vld [vmem:[#allocation5 + $0xd8] sm:$0xf]
    %v418 = vld [vmem:[#allocation5 + $0xdc] sm:$0xf]
    %v419 = vld [vmem:[#allocation5 + $0xe0] sm:$0xf]
    %v420 = vld [vmem:[#allocation5 + $0xe4] sm:$0xf]
    %v421 = vld [vmem:[#allocation5 + $0xe8] sm:$0xf]
    %v422 = vld [vmem:[#allocation5 + $0xec] sm:$0xf]
    %v423 = vld [vmem:[#allocation5 + $0xf0] sm:$0xf]
    %v424 = vld [vmem:[#allocation5 + $0xf4] sm:$0xf]
    %v425 = vld [vmem:[#allocation5 + $0xf8] sm:$0xf]
    %v426 = vld [vmem:[#allocation5 + $0xfc] sm:$0xf]
    %v427 = vld [vmem:[#allocation5 + $0x100] sm:$0xf]
    %v428 = vld [vmem:[#allocation5 + $0x104] sm:$0xf]
    %v429 = vld [vmem:[#allocation5 + $0x108] sm:$0xf]
    %v430 = vld [vmem:[#allocation5 + $0x10c] sm:$0xf]
    %v431 = vld [vmem:[#allocation5 + $0x110] sm:$0xf]
    %v432 = vld [vmem:[#allocation5 + $0x114] sm:$0xf]
    %v433 = vld [vmem:[#allocation5 + $0x118] sm:$0xf]
    %v434 = vld [vmem:[#allocation5 + $0x11c] sm:$0xf]
    %v435 = vld [vmem:[#allocation5 + $0x120] sm:$0xf]
    %v436 = vld [vmem:[#allocation5 + $0x124] sm:$0xf]
    %v437 = vld [vmem:[#allocation5 + $0x128] sm:$0xf]
    %v438 = vld [vmem:[#allocation5 + $0x12c] sm:$0xf]
    %v439 = vld [vmem:[#allocation5 + $0x130] sm:$0xf]
    %v440 = vld [vmem:[#allocation5 + $0x134] sm:$0xf]
    %v441 = vld [vmem:[#allocation5 + $0x138] sm:$0xf]
    %v442 = vld [vmem:[#allocation5 + $0x13c] sm:$0xf]
    %v443 = vld [vmem:[#allocation5 + $0x140] sm:$0xf]
    %v444 = vld [vmem:[#allocation5 + $0x144] sm:$0xf]
    %v445 = vld [vmem:[#allocation5 + $0x148] sm:$0xf]
    %v446 = vld [vmem:[#allocation5 + $0x14c] sm:$0xf]
    %v447 = vld [vmem:[#allocation5 + $0x150] sm:$0xf]
    %v448 = vld [vmem:[#allocation5 + $0x154] sm:$0xf]
    %v449 = vld [vmem:[#allocation5 + $0x158] sm:$0xf]
    %v450 = vld [vmem:[#allocation5 + $0x15c] sm:$0xf]
    %v451 = vld [vmem:[#allocation5 + $0x160] sm:$0xf]
    %v452 = vld [vmem:[#allocation5 + $0x164] sm:$0xf]
    %v453 = vld [vmem:[#allocation5 + $0x168] sm:$0xf]
    %v454 = vld [vmem:[#allocation5 + $0x16c] sm:$0xf]
    %v455 = vld [vmem:[#allocation5 + $0x170] sm:$0xf]
    %v456 = vld [vmem:[#allocation5 + $0x174] sm:$0xf]
    %v457 = vld [vmem:[#allocation5 + $0x178] sm:$0xf]
    %v458 = vld [vmem:[#allocation5 + $0x17c] sm:$0xf]
    %v459 = vld [vmem:[#allocation5 + $0x180] sm:$0xf]
    %v460 = vld [vmem:[#allocation5 + $0x184] sm:$0xf]
    %v461 = vld [vmem:[#allocation5 + $0x188] sm:$0xf]
    %v462 = vld [vmem:[#allocation5 + $0x18c] sm:$0xf]
    %v463 = vld [vmem:[#allocation5 + $0x190] sm:$0xf]
    %v464 = vld [vmem:[#allocation5 + $0x194] sm:$0xf]
    %v465 = vld [vmem:[#allocation5 + $0x198] sm:$0xf]
    %v466 = vld [vmem:[#allocation5 + $0x19c] sm:$0xf]
    %v467 = vld [vmem:[#allocation5 + $0x1a0] sm:$0xf]
    %v468 = vld [vmem:[#allocation5 + $0x1a4] sm:$0xf]
    %v469 = vld [vmem:[#allocation5 + $0x1a8] sm:$0xf]
    %v470 = vld [vmem:[#allocation5 + $0x1ac] sm:$0xf]
    %v471 = vld [vmem:[#allocation5 + $0x1b0] sm:$0xf]
    %v472 = vld [vmem:[#allocation5 + $0x1b4] sm:$0xf]
    %v473 = vld [vmem:[#allocation5 + $0x1b8] sm:$0xf]
    %v474 = vld [vmem:[#allocation5 + $0x1bc] sm:$0xf]
    %v475 = vld [vmem:[#allocation5 + $0x1c0] sm:$0xf]
    %v476 = vld [vmem:[#allocation5 + $0x1c4] sm:$0xf]
    %v477 = vld [vmem:[#allocation5 + $0x1c8] sm:$0xf]
    %v478 = vld [vmem:[#allocation5 + $0x1cc] sm:$0xf]
    %v479 = vld [vmem:[#allocation5 + $0x1d0] sm:$0xf]
    %v480 = vld [vmem:[#allocation5 + $0x1d4] sm:$0xf]
    %v481 = vld [vmem:[#allocation5 + $0x1d8] sm:$0xf]
    %v482 = vld [vmem:[#allocation5 + $0x1dc] sm:$0xf]
    %v483 = vld [vmem:[#allocation5 + $0x1e0] sm:$0xf]
    %v484 = vld [vmem:[#allocation5 + $0x1e4] sm:$0xf]
    %v485 = vld [vmem:[#allocation5 + $0x1e8] sm:$0xf]
    %v486 = vld [vmem:[#allocation5 + $0x1ec] sm:$0xf]
    %v487 = vld [vmem:[#allocation5 + $0x1f0] sm:$0xf]
    %v488 = vld [vmem:[#allocation5 + $0x1f4] sm:$0xf]
    %v489 = vld [vmem:[#allocation5 + $0x1f8] sm:$0xf]
    %v490 = vld [vmem:[#allocation5 + $0x1fc] sm:$0xf]
    %v491 = vld [vmem:[#allocation5 + $0x200] sm:$0xf]
    %v492 = vld [vmem:[#allocation5 + $0x204] sm:$0xf]
    %v493 = vld [vmem:[#allocation5 + $0x208] sm:$0xf]
    %v494 = vld [vmem:[#allocation5 + $0x20c] sm:$0xf]
    %v495 = vld [vmem:[#allocation5 + $0x210] sm:$0xf]
    %v496 = vld [vmem:[#allocation5 + $0x214] sm:$0xf]
    %v497 = vld [vmem:[#allocation5 + $0x218] sm:$0xf]
    %v498 = vld [vmem:[#allocation5 + $0x21c] sm:$0xf]
    %v499 = vld [vmem:[#allocation5 + $0x220] sm:$0xf]
    %v500 = vld [vmem:[#allocation5 + $0x224] sm:$0xf]
    %v501 = vld [vmem:[#allocation5 + $0x228] sm:$0xf]
    %v502 = vld [vmem:[#allocation5 + $0x22c] sm:$0xf]
    %v503 = vld [vmem:[#allocation5 + $0x230] sm:$0xf]
    %v504 = vld [vmem:[#allocation5 + $0x234] sm:$0xf]
    %v505 = vld [vmem:[#allocation5 + $0x238] sm:$0xf]
    %v506 = vld [vmem:[#allocation5 + $0x23c] sm:$0xf]
    %v507 = vld [vmem:[#allocation5 + $0x240] sm:$0xf]
    %v508 = vld [vmem:[#allocation5 + $0x244] sm:$0xf]
    %v509 = vld [vmem:[#allocation5 + $0x248] sm:$0xf]
    %v510 = vld [vmem:[#allocation5 + $0x24c] sm:$0xf]
    %v511 = vld [vmem:[#allocation5 + $0x250] sm:$0xf]
    %v512 = vld [vmem:[#allocation5 + $0x254] sm:$0xf]
    %v513 = vld [vmem:[#allocation5 + $0x258] sm:$0xf]
    %v514 = vld [vmem:[#allocation5 + $0x25c] sm:$0xf]
    %v515 = vld [vmem:[#allocation5 + $0x260] sm:$0xf]
    %v516 = vld [vmem:[#allocation5 + $0x264] sm:$0xf]
    %v517 = vld [vmem:[#allocation5 + $0x268] sm:$0xf]
    %v518 = vld [vmem:[#allocation5 + $0x26c] sm:$0xf]
    %v519 = vld [vmem:[#allocation5 + $0x270] sm:$0xf]
    %v520 = vld [vmem:[#allocation5 + $0x274] sm:$0xf]
    %v521 = vld [vmem:[#allocation5 + $0x278] sm:$0xf]
    %v522 = vld [vmem:[#allocation5 + $0x27c] sm:$0xf]
    %v523 = vld [vmem:[#allocation5 + $0x280] sm:$0xf]
    %v524 = vld [vmem:[#allocation5 + $0x284] sm:$0xf]
    %v525 = vld [vmem:[#allocation5 + $0x288] sm:$0xf]
    %v526 = vld [vmem:[#allocation5 + $0x28c] sm:$0xf]
    %v527 = vld [vmem:[#allocation5 + $0x290] sm:$0xf]
    %v528 = vld [vmem:[#allocation5 + $0x294] sm:$0xf]
    %v529 = vld [vmem:[#allocation5 + $0x298] sm:$0xf]
    %v530 = vld [vmem:[#allocation5 + $0x29c] sm:$0xf]
    %v531 = vld [vmem:[#allocation5 + $0x2a0] sm:$0xf]
    %v532 = vld [vmem:[#allocation5 + $0x2a4] sm:$0xf]
    %v533 = vld [vmem:[#allocation5 + $0x2a8] sm:$0xf]
    %v534 = vld [vmem:[#allocation5 + $0x2ac] sm:$0xf]
    %v535 = vld [vmem:[#allocation5 + $0x2b0] sm:$0xf]
    %v536 = vld [vmem:[#allocation5 + $0x2b4] sm:$0xf]
    %v537 = vld [vmem:[#allocation5 + $0x2b8] sm:$0xf]
    %v538 = vld [vmem:[#allocation5 + $0x2bc] sm:$0xf]
    %v539 = vld [vmem:[#allocation5 + $0x2c0] sm:$0xf]
    %v540 = vld [vmem:[#allocation5 + $0x2c4] sm:$0xf]
    %v541 = vld [vmem:[#allocation5 + $0x2c8] sm:$0xf]
    %v542 = vld [vmem:[#allocation5 + $0x2cc] sm:$0xf]
    %v543 = vld [vmem:[#allocation5 + $0x2d0] sm:$0xf]
    %v544 = vld [vmem:[#allocation5 + $0x2d4] sm:$0xf]
    %v545 = vld [vmem:[#allocation5 + $0x2d8] sm:$0xf]
    %v546 = vld [vmem:[#allocation5 + $0x2dc] sm:$0xf]
    %v547 = vld [vmem:[#allocation5 + $0x2e0] sm:$0xf]
    %v548 = vld [vmem:[#allocation5 + $0x2e4] sm:$0xf]
    %v549 = vld [vmem:[#allocation5 + $0x2e8] sm:$0xf]
    %v550 = vld [vmem:[#allocation5 + $0x2ec] sm:$0xf]
    %v551 = vld [vmem:[#allocation5 + $0x2f0] sm:$0xf]
    %v552 = vld [vmem:[#allocation5 + $0x2f4] sm:$0xf]
    %v553 = vld [vmem:[#allocation5 + $0x2f8] sm:$0xf]
    %v554 = vld [vmem:[#allocation5 + $0x2fc] sm:$0xf]
    %v555 = vld [vmem:[#allocation5 + $0x300] sm:$0xf]
    %v556 = vld [vmem:[#allocation5 + $0x304] sm:$0xf]
    %v557 = vld [vmem:[#allocation5 + $0x308] sm:$0xf]
    %v558 = vld [vmem:[#allocation5 + $0x30c] sm:$0xf]
    %v559 = vld [vmem:[#allocation5 + $0x310] sm:$0xf]
    %v560 = vld [vmem:[#allocation5 + $0x314] sm:$0xf]
    %v561 = vld [vmem:[#allocation5 + $0x318] sm:$0xf]
    %v562 = vld [vmem:[#allocation5 + $0x31c] sm:$0xf]
    %v563 = vld [vmem:[#allocation5 + $0x320] sm:$0xf]
    %v564 = vld [vmem:[#allocation5 + $0x324] sm:$0xf]
    %v565 = vld [vmem:[#allocation5 + $0x328] sm:$0xf]
    %v566 = vld [vmem:[#allocation5 + $0x32c] sm:$0xf]
    %v567 = vld [vmem:[#allocation5 + $0x330] sm:$0xf]
    %v568 = vld [vmem:[#allocation5 + $0x334] sm:$0xf]
    %v569 = vld [vmem:[#allocation5 + $0x338] sm:$0xf]
    %v570 = vld [vmem:[#allocation5 + $0x33c] sm:$0xf]
    %v571 = vld [vmem:[#allocation5 + $0x340] sm:$0xf]
    %v572 = vld [vmem:[#allocation5 + $0x344] sm:$0xf]
    %v573 = vld [vmem:[#allocation5 + $0x348] sm:$0xf]
    %v574 = vld [vmem:[#allocation5 + $0x34c] sm:$0xf]
    %v575 = vld [vmem:[#allocation5 + $0x350] sm:$0xf]
    %v576 = vld [vmem:[#allocation5 + $0x354] sm:$0xf]
    %v577 = vld [vmem:[#allocation5 + $0x358] sm:$0xf]
    %v578 = vld [vmem:[#allocation5 + $0x35c] sm:$0xf]
    %v579 = vld [vmem:[#allocation5 + $0x360] sm:$0xf]
    %v580 = vld [vmem:[#allocation5 + $0x364] sm:$0xf]
    %v581 = vld [vmem:[#allocation5 + $0x368] sm:$0xf]
    %v582 = vld [vmem:[#allocation5 + $0x36c] sm:$0xf]
    %v583 = vld [vmem:[#allocation5 + $0x370] sm:$0xf]
    %v584 = vld [vmem:[#allocation5 + $0x374] sm:$0xf]
    %v585 = vld [vmem:[#allocation5 + $0x378] sm:$0xf]
    %v586 = vld [vmem:[#allocation5 + $0x37c] sm:$0xf]
    %v587 = vld [vmem:[#allocation5 + $0x380] sm:$0xf]
    %v588 = vld [vmem:[#allocation5 + $0x384] sm:$0xf]
    %v589 = vld [vmem:[#allocation5 + $0x388] sm:$0xf]
    %v590 = vld [vmem:[#allocation5 + $0x38c] sm:$0xf]
    %v591 = vld [vmem:[#allocation5 + $0x390] sm:$0xf]
    %v592 = vld [vmem:[#allocation5 + $0x394] sm:$0xf]
    %v593 = vld [vmem:[#allocation5 + $0x398] sm:$0xf]
    %v594 = vld [vmem:[#allocation5 + $0x39c] sm:$0xf]
    %v595 = vld [vmem:[#allocation5 + $0x3a0] sm:$0xf]
    %v596 = vld [vmem:[#allocation5 + $0x3a4] sm:$0xf]
    %v597 = vld [vmem:[#allocation5 + $0x3a8] sm:$0xf]
    %v598 = vld [vmem:[#allocation5 + $0x3ac] sm:$0xf]
    %v599 = vld [vmem:[#allocation5 + $0x3b0] sm:$0xf]
    %v600 = vld [vmem:[#allocation5 + $0x3b4] sm:$0xf]
    %v601 = vld [vmem:[#allocation5 + $0x3b8] sm:$0xf]
    %v602 = vld [vmem:[#allocation5 + $0x3bc] sm:$0xf]
    %v603 = vld [vmem:[#allocation5 + $0x3c0] sm:$0xf]
    %v604 = vld [vmem:[#allocation5 + $0x3c4] sm:$0xf]
    %v605 = vld [vmem:[#allocation5 + $0x3c8] sm:$0xf]
    %v606 = vld [vmem:[#allocation5 + $0x3cc] sm:$0xf]
    %v607 = vld [vmem:[#allocation5 + $0x3d0] sm:$0xf]
    %v608 = vld [vmem:[#allocation5 + $0x3d4] sm:$0xf]
    %v609 = vld [vmem:[#allocation5 + $0x3d8] sm:$0xf]
    %v610 = vld [vmem:[#allocation5 + $0x3dc] sm:$0xf]
    %v611 = vld [vmem:[#allocation5 + $0x3e0] sm:$0xf]
    %v612 = vld [vmem:[#allocation5 + $0x3e4] sm:$0xf]
    %v613 = vld [vmem:[#allocation5 + $0x3e8] sm:$0xf]
    %v614 = vld [vmem:[#allocation5 + $0x3ec] sm:$0xf]
    %v615 = vld [vmem:[#allocation5 + $0x3f0] sm:$0xf]
    %v616 = vld [vmem:[#allocation5 + $0x3f4] sm:$0xf]
    %v617 = vld [vmem:[#allocation5 + $0x3f8] sm:$0xf]
    %v618 = vld [vmem:[#allocation5 + $0x3fc] sm:$0xf]
    %v619 = vld [vmem:[#allocation5 + $0x400] sm:$0xf]
    %v620 = vld [vmem:[#allocation5 + $0x404] sm:$0xf]
    %v621 = vld [vmem:[#allocation5 + $0x408] sm:$0xf]
    %v622 = vld [vmem:[#allocation5 + $0x40c] sm:$0xf]
    %v623 = vld [vmem:[#allocation5 + $0x410] sm:$0xf]
    %v624 = vld [vmem:[#allocation5 + $0x414] sm:$0xf]
    %v625 = vld [vmem:[#allocation5 + $0x418] sm:$0xf]
    %v626 = vld [vmem:[#allocation5 + $0x41c] sm:$0xf]
    %v627 = vld [vmem:[#allocation5 + $0x420] sm:$0xf]
    %v628 = vld [vmem:[#allocation5 + $0x424] sm:$0xf]
    %v629 = vld [vmem:[#allocation5 + $0x428] sm:$0xf]
    %v630 = vld [vmem:[#allocation5 + $0x42c] sm:$0xf]
    %v631 = vld [vmem:[#allocation5 + $0x430] sm:$0xf]
    %v632 = vld [vmem:[#allocation5 + $0x434] sm:$0xf]
    %v633 = vld [vmem:[#allocation5 + $0x438] sm:$0xf]
    %v634 = vld [vmem:[#allocation5 + $0x43c] sm:$0xf]
    %v635 = vld [vmem:[#allocation5 + $0x440] sm:$0xf]
    %v636 = vld [vmem:[#allocation5 + $0x444] sm:$0xf]
    %v637 = vld [vmem:[#allocation5 + $0x448] sm:$0xf]
    %v638 = vld [vmem:[#allocation5 + $0x44c] sm:$0xf]
    %v639 = vld [vmem:[#allocation5 + $0x450] sm:$0xf]
    %v640 = vld [vmem:[#allocation5 + $0x454] sm:$0xf]
    %v641 = vld [vmem:[#allocation5 + $0x458] sm:$0xf]
    %v642 = vld [vmem:[#allocation5 + $0x45c] sm:$0xf]
    %v643 = vld [vmem:[#allocation5 + $0x460] sm:$0xf]
    %v644 = vld [vmem:[#allocation5 + $0x464] sm:$0xf]
    %v645 = vld [vmem:[#allocation5 + $0x468] sm:$0xf]
    %v646 = vld [vmem:[#allocation5 + $0x46c] sm:$0xf]
    %v647 = vld [vmem:[#allocation5 + $0x470] sm:$0xf]
    %v648 = vld [vmem:[#allocation5 + $0x474] sm:$0xf]
    %v649 = vld [vmem:[#allocation5 + $0x478] sm:$0xf]
    %v650 = vld [vmem:[#allocation5 + $0x47c] sm:$0xf]
    %v651 = vld [vmem:[#allocation5 + $0x480] sm:$0xf]
    %v652 = vld [vmem:[#allocation5 + $0x484] sm:$0xf]
    %v653 = vld [vmem:[#allocation5 + $0x488] sm:$0xf]
    %v654 = vld [vmem:[#allocation5 + $0x48c] sm:$0xf]
    %v655 = vld [vmem:[#allocation5 + $0x490] sm:$0xf]
    %v656 = vld [vmem:[#allocation5 + $0x494] sm:$0xf]
    %v657 = vld [vmem:[#allocation5 + $0x498] sm:$0xf]
    %v658 = vld [vmem:[#allocation5 + $0x49c] sm:$0xf]
    %v659 = vld [vmem:[#allocation5 + $0x4a0] sm:$0xf]
    %v660 = vld [vmem:[#allocation5 + $0x4a4] sm:$0xf]
    %v661 = vld [vmem:[#allocation5 + $0x4a8] sm:$0xf]
    %v662 = vld [vmem:[#allocation5 + $0x4ac] sm:$0xf]
    %v663 = vld [vmem:[#allocation5 + $0x4b0] sm:$0xf]
    %v664 = vld [vmem:[#allocation5 + $0x4b4] sm:$0xf]
    %v665 = vld [vmem:[#allocation5 + $0x4b8] sm:$0xf]
    %v666 = vld [vmem:[#allocation5 + $0x4bc] sm:$0xf]
    %v667 = vld [vmem:[#allocation5 + $0x4c0] sm:$0xf]
    %v668 = vld [vmem:[#allocation5 + $0x4c4] sm:$0xf]
    %v669 = vld [vmem:[#allocation5 + $0x4c8] sm:$0xf]
    %v670 = vld [vmem:[#allocation5 + $0x4cc] sm:$0xf]
    %v671 = vld [vmem:[#allocation5 + $0x4d0] sm:$0xf]
    %v672 = vld [vmem:[#allocation5 + $0x4d4] sm:$0xf]
    %v673 = vld [vmem:[#allocation5 + $0x4d8] sm:$0xf]
    %v674 = vld [vmem:[#allocation5 + $0x4dc] sm:$0xf]
    %v675 = vld [vmem:[#allocation5 + $0x4e0] sm:$0xf]
    %v676 = vld [vmem:[#allocation5 + $0x4e4] sm:$0xf]
    %v677 = vld [vmem:[#allocation5 + $0x4e8] sm:$0xf]
    %v678 = vld [vmem:[#allocation5 + $0x4ec] sm:$0xf]
    %v679 = vld [vmem:[#allocation5 + $0x4f0] sm:$0xf]
    %v680 = vld [vmem:[#allocation5 + $0x4f4] sm:$0xf]
    %v681 = vld [vmem:[#allocation5 + $0x4f8] sm:$0xf]
    %v682 = vld [vmem:[#allocation5 + $0x4fc] sm:$0xf]
    %v683 = vld [vmem:[#allocation5 + $0x500] sm:$0xf]
    %v684 = vld [vmem:[#allocation5 + $0x504] sm:$0xf]
    %v685 = vld [vmem:[#allocation5 + $0x508] sm:$0xf]
    %v686 = vld [vmem:[#allocation5 + $0x50c] sm:$0xf]
    %v687 = vld [vmem:[#allocation5 + $0x510] sm:$0xf]
    %v688 = vld [vmem:[#allocation5 + $0x514] sm:$0xf]
    %v689 = vld [vmem:[#allocation5 + $0x518] sm:$0xf]
    %v690 = vld [vmem:[#allocation5 + $0x51c] sm:$0xf]
    %v691 = vld [vmem:[#allocation5 + $0x520] sm:$0xf]
    %v692 = vld [vmem:[#allocation5 + $0x524] sm:$0xf]
    %v693 = vld [vmem:[#allocation5 + $0x528] sm:$0xf]
    %v694 = vld [vmem:[#allocation5 + $0x52c] sm:$0xf]
    %v695 = vld [vmem:[#allocation5 + $0x530] sm:$0xf]
    %v696 = vld [vmem:[#allocation5 + $0x534] sm:$0xf]
    %v697 = vld [vmem:[#allocation5 + $0x538] sm:$0xf]
    %v698 = vld [vmem:[#allocation5 + $0x53c] sm:$0xf]
    %v699 = vld [vmem:[#allocation5 + $0x540] sm:$0xf]
    %v700 = vld [vmem:[#allocation5 + $0x544] sm:$0xf]
    %v701 = vld [vmem:[#allocation5 + $0x548] sm:$0xf]
    %v702 = vld [vmem:[#allocation5 + $0x54c] sm:$0xf]
    %v703 = vld [vmem:[#allocation5 + $0x550] sm:$0xf]
    %v704 = vld [vmem:[#allocation5 + $0x554] sm:$0xf]
    %v705 = vld [vmem:[#allocation5 + $0x558] sm:$0xf]
    %v706 = vld [vmem:[#allocation5 + $0x55c] sm:$0xf]
    %v707 = vld [vmem:[#allocation5 + $0x560] sm:$0xf]
    %v708 = vld [vmem:[#allocation5 + $0x564] sm:$0xf]
    %v709 = vld [vmem:[#allocation5 + $0x568] sm:$0xf]
    %v710 = vld [vmem:[#allocation5 + $0x56c] sm:$0xf]
    %v711 = vld [vmem:[#allocation5 + $0x570] sm:$0xf]
    %v712 = vld [vmem:[#allocation5 + $0x574] sm:$0xf]
    %v713 = vld [vmem:[#allocation5 + $0x578] sm:$0xf]
    %v714 = vld [vmem:[#allocation5 + $0x57c] sm:$0xf]
    %v715 = vld [vmem:[#allocation5 + $0x580] sm:$0xf]
    %v716 = vld [vmem:[#allocation5 + $0x584] sm:$0xf]
    %v717 = vld [vmem:[#allocation5 + $0x588] sm:$0xf]
    %v718 = vld [vmem:[#allocation5 + $0x58c] sm:$0xf]
    %v719 = vld [vmem:[#allocation5 + $0x590] sm:$0xf]
    %v720 = vld [vmem:[#allocation5 + $0x594] sm:$0xf]
    %v721 = vld [vmem:[#allocation5 + $0x598] sm:$0xf]
    %v722 = vld [vmem:[#allocation5 + $0x59c] sm:$0xf]
    %v723 = vld [vmem:[#allocation5 + $0x5a0] sm:$0xf]
    %v724 = vld [vmem:[#allocation5 + $0x5a4] sm:$0xf]
    %v725 = vld [vmem:[#allocation5 + $0x5a8] sm:$0xf]
    %v726 = vld [vmem:[#allocation5 + $0x5ac] sm:$0xf]
    %v727 = vld [vmem:[#allocation5 + $0x5b0] sm:$0xf]
    %v728 = vld [vmem:[#allocation5 + $0x5b4] sm:$0xf]
    %v729 = vld [vmem:[#allocation5 + $0x5b8] sm:$0xf]
    %v730 = vld [vmem:[#allocation5 + $0x5bc] sm:$0xf]
    %v731 = vld [vmem:[#allocation5 + $0x5c0] sm:$0xf]
    %v732 = vld [vmem:[#allocation5 + $0x5c4] sm:$0xf]
    %v733 = vld [vmem:[#allocation5 + $0x5c8] sm:$0xf]
    %v734 = vld [vmem:[#allocation5 + $0x5cc] sm:$0xf]
    %v735 = vld [vmem:[#allocation5 + $0x5d0] sm:$0xf]
    %v736 = vld [vmem:[#allocation5 + $0x5d4] sm:$0xf]
    %v737 = vld [vmem:[#allocation5 + $0x5d8] sm:$0xf]
    %v738 = vld [vmem:[#allocation5 + $0x5dc] sm:$0xf]
    %v739 = vld [vmem:[#allocation5 + $0x5e0] sm:$0xf]
    %v740 = vld [vmem:[#allocation5 + $0x5e4] sm:$0xf]
    %v741 = vld [vmem:[#allocation5 + $0x5e8] sm:$0xf]
    %v742 = vld [vmem:[#allocation5 + $0x5ec] sm:$0xf]
    %v743 = vld [vmem:[#allocation5 + $0x5f0] sm:$0xf]
    %v744 = vld [vmem:[#allocation5 + $0x5f4] sm:$0xf]
    %v745 = vld [vmem:[#allocation5 + $0x5f8] sm:$0xf]
    %v746 = vld [vmem:[#allocation5 + $0x5fc] sm:$0xf]
    %v747 = vld [vmem:[%s2] sm:$0x1]
    %v749 = vlaneseq
    %v750 = vshrl.u32 %v749, 7
    %v751 = vsub.s32 0, %v750
    %v752 = vrot.slane %v747, %v751
    %v1138 = vunpack.c.l.b16 %v363
    %v1139 = vunpack.c.l.b16 %v364
    %v1140 = vunpack.c.l.b16 %v365
    %v1141 = vunpack.c.l.b16 %v366
    %v1142 = vunpack.c.l.b16 %v367
    %v1143 = vunpack.c.l.b16 %v368
    %v1144 = vunpack.c.l.b16 %v369
    %v1145 = vunpack.c.l.b16 %v370
    %v1146 = vunpack.c.l.b16 %v371
    %v1147 = vunpack.c.l.b16 %v372
    %v1148 = vunpack.c.l.b16 %v373
    %v1149 = vunpack.c.l.b16 %v374
    %v1150 = vunpack.c.l.b16 %v375
    %v1151 = vunpack.c.l.b16 %v376
    %v1152 = vunpack.c.l.b16 %v377
    %v1153 = vunpack.c.l.b16 %v378
    %v1154 = vunpack.c.l.b16 %v379
    %v1155 = vunpack.c.l.b16 %v380
    %v1156 = vunpack.c.l.b16 %v381
    %v1157 = vunpack.c.l.b16 %v382
    %v1158 = vunpack.c.l.b16 %v383
    %v1159 = vunpack.c.l.b16 %v384
    %v1160 = vunpack.c.l.b16 %v385
    %v1161 = vunpack.c.l.b16 %v386
    %v1162 = vunpack.c.l.b16 %v387
    %v1163 = vunpack.c.l.b16 %v388
    %v1164 = vunpack.c.l.b16 %v389
    %v1165 = vunpack.c.l.b16 %v390
    %v1166 = vunpack.c.l.b16 %v391
    %v1167 = vunpack.c.l.b16 %v392
    %v1168 = vunpack.c.l.b16 %v393
    %v1169 = vunpack.c.l.b16 %v394
    %v1170 = vunpack.c.l.b16 %v395
    %v1171 = vunpack.c.l.b16 %v396
    %v1172 = vunpack.c.l.b16 %v397
    %v1173 = vunpack.c.l.b16 %v398
    %v1174 = vunpack.c.l.b16 %v399
    %v1175 = vunpack.c.l.b16 %v400
    %v1176 = vunpack.c.l.b16 %v401
    %v1177 = vunpack.c.l.b16 %v402
    %v1178 = vunpack.c.l.b16 %v403
    %v1179 = vunpack.c.l.b16 %v404
    %v1180 = vunpack.c.l.b16 %v405
    %v1181 = vunpack.c.l.b16 %v406
    %v1182 = vunpack.c.l.b16 %v407
    %v1183 = vunpack.c.l.b16 %v408
    %v1184 = vunpack.c.l.b16 %v409
    %v1185 = vunpack.c.l.b16 %v410
    %v1186 = vunpack.c.l.b16 %v411
    %v1187 = vunpack.c.l.b16 %v412
    %v1188 = vunpack.c.l.b16 %v413
    %v1189 = vunpack.c.l.b16 %v414
    %v1190 = vunpack.c.l.b16 %v415
    %v1191 = vunpack.c.l.b16 %v416
    %v1192 = vunpack.c.l.b16 %v417
    %v1193 = vunpack.c.l.b16 %v418
    %v1194 = vunpack.c.l.b16 %v419
    %v1195 = vunpack.c.l.b16 %v420
    %v1196 = vunpack.c.l.b16 %v421
    %v1197 = vunpack.c.l.b16 %v422
    %v1198 = vunpack.c.l.b16 %v423
    %v1199 = vunpack.c.l.b16 %v424
    %v1200 = vunpack.c.l.b16 %v425
    %v1201 = vunpack.c.l.b16 %v426
    %v1202 = vunpack.c.l.b16 %v427
    %v1203 = vunpack.c.l.b16 %v428
    %v1204 = vunpack.c.l.b16 %v429
    %v1205 = vunpack.c.l.b16 %v430
    %v1206 = vunpack.c.l.b16 %v431
    %v1207 = vunpack.c.l.b16 %v432
    %v1208 = vunpack.c.l.b16 %v433
    %v1209 = vunpack.c.l.b16 %v434
    %v1210 = vunpack.c.l.b16 %v435
    %v1211 = vunpack.c.l.b16 %v436
    %v1212 = vunpack.c.l.b16 %v437
    %v1213 = vunpack.c.l.b16 %v438
    %v1214 = vunpack.c.l.b16 %v439
    %v1215 = vunpack.c.l.b16 %v440
    %v1216 = vunpack.c.l.b16 %v441
    %v1217 = vunpack.c.l.b16 %v442
    %v1218 = vunpack.c.l.b16 %v443
    %v1219 = vunpack.c.l.b16 %v444
    %v1220 = vunpack.c.l.b16 %v445
    %v1221 = vunpack.c.l.b16 %v446
    %v1222 = vunpack.c.l.b16 %v447
    %v1223 = vunpack.c.l.b16 %v448
    %v1224 = vunpack.c.l.b16 %v449
    %v1225 = vunpack.c.l.b16 %v450
    %v1226 = vunpack.c.l.b16 %v451
    %v1227 = vunpack.c.l.b16 %v452
    %v1228 = vunpack.c.l.b16 %v453
    %v1229 = vunpack.c.l.b16 %v454
    %v1230 = vunpack.c.l.b16 %v455
    %v1231 = vunpack.c.l.b16 %v456
    %v1232 = vunpack.c.l.b16 %v457
    %v1233 = vunpack.c.l.b16 %v458
    %v1234 = vunpack.c.l.b16 %v459
    %v1235 = vunpack.c.l.b16 %v460
    %v1236 = vunpack.c.l.b16 %v461
    %v1237 = vunpack.c.l.b16 %v462
    %v1238 = vunpack.c.l.b16 %v463
    %v1239 = vunpack.c.l.b16 %v464
    %v1240 = vunpack.c.l.b16 %v465
    %v1241 = vunpack.c.l.b16 %v466
    %v1242 = vunpack.c.l.b16 %v467
    %v1243 = vunpack.c.l.b16 %v468
    %v1244 = vunpack.c.l.b16 %v469
    %v1245 = vunpack.c.l.b16 %v470
    %v1246 = vunpack.c.l.b16 %v471
    %v1247 = vunpack.c.l.b16 %v472
    %v1248 = vunpack.c.l.b16 %v473
    %v1249 = vunpack.c.l.b16 %v474
    %v1250 = vunpack.c.l.b16 %v475
    %v1251 = vunpack.c.l.b16 %v476
    %v1252 = vunpack.c.l.b16 %v477
    %v1253 = vunpack.c.l.b16 %v478
    %v1254 = vunpack.c.l.b16 %v479
    %v1255 = vunpack.c.l.b16 %v480
    %v1256 = vunpack.c.l.b16 %v481
    %v1257 = vunpack.c.l.b16 %v482
    %v1258 = vunpack.c.l.b16 %v483
    %v1259 = vunpack.c.l.b16 %v484
    %v1260 = vunpack.c.l.b16 %v485
    %v1261 = vunpack.c.l.b16 %v486
    %v1262 = vunpack.c.l.b16 %v487
    %v1263 = vunpack.c.l.b16 %v488
    %v1264 = vunpack.c.l.b16 %v489
    %v1265 = vunpack.c.l.b16 %v490
    %v1266 = vunpack.c.l.b16 %v491
    %v1267 = vunpack.c.l.b16 %v492
    %v1268 = vunpack.c.l.b16 %v493
    %v1269 = vunpack.c.l.b16 %v494
    %v1270 = vunpack.c.l.b16 %v495
    %v1271 = vunpack.c.l.b16 %v496
    %v1272 = vunpack.c.l.b16 %v497
    %v1273 = vunpack.c.l.b16 %v498
    %v1274 = vunpack.c.l.b16 %v499
    %v1275 = vunpack.c.l.b16 %v500
    %v1276 = vunpack.c.l.b16 %v501
    %v1277 = vunpack.c.l.b16 %v502
    %v1278 = vunpack.c.l.b16 %v503
    %v1279 = vunpack.c.l.b16 %v504
    %v1280 = vunpack.c.l.b16 %v505
    %v1281 = vunpack.c.l.b16 %v506
    %v1282 = vunpack.c.l.b16 %v507
    %v1283 = vunpack.c.l.b16 %v508
    %v1284 = vunpack.c.l.b16 %v509
    %v1285 = vunpack.c.l.b16 %v510
    %v1286 = vunpack.c.l.b16 %v511
    %v1287 = vunpack.c.l.b16 %v512
    %v1288 = vunpack.c.l.b16 %v513
    %v1289 = vunpack.c.l.b16 %v514
    %v1290 = vunpack.c.l.b16 %v515
    %v1291 = vunpack.c.l.b16 %v516
    %v1292 = vunpack.c.l.b16 %v517
    %v1293 = vunpack.c.l.b16 %v518
    %v1294 = vunpack.c.l.b16 %v519
    %v1295 = vunpack.c.l.b16 %v520
    %v1296 = vunpack.c.l.b16 %v521
    %v1297 = vunpack.c.l.b16 %v522
    %v1298 = vunpack.c.l.b16 %v523
    %v1299 = vunpack.c.l.b16 %v524
    %v1300 = vunpack.c.l.b16 %v525
    %v1301 = vunpack.c.l.b16 %v526
    %v1302 = vunpack.c.l.b16 %v527
    %v1303 = vunpack.c.l.b16 %v528
    %v1304 = vunpack.c.l.b16 %v529
    %v1305 = vunpack.c.l.b16 %v530
    %v1306 = vunpack.c.l.b16 %v531
    %v1307 = vunpack.c.l.b16 %v532
    %v1308 = vunpack.c.l.b16 %v533
    %v1309 = vunpack.c.l.b16 %v534
    %v1310 = vunpack.c.l.b16 %v535
    %v1311 = vunpack.c.l.b16 %v536
    %v1312 = vunpack.c.l.b16 %v537
    %v1313 = vunpack.c.l.b16 %v538
    %v1314 = vunpack.c.l.b16 %v539
    %v1315 = vunpack.c.l.b16 %v540
    %v1316 = vunpack.c.l.b16 %v541
    %v1317 = vunpack.c.l.b16 %v542
    %v1318 = vunpack.c.l.b16 %v543
    %v1319 = vunpack.c.l.b16 %v544
    %v1320 = vunpack.c.l.b16 %v545
    %v1321 = vunpack.c.l.b16 %v546
    %v1322 = vunpack.c.l.b16 %v547
    %v1323 = vunpack.c.l.b16 %v548
    %v1324 = vunpack.c.l.b16 %v549
    %v1325 = vunpack.c.l.b16 %v550
    %v1326 = vunpack.c.l.b16 %v551
    %v1327 = vunpack.c.l.b16 %v552
    %v1328 = vunpack.c.l.b16 %v553
    %v1329 = vunpack.c.l.b16 %v554
    %v1330 = vunpack.c.l.b16 %v555
    %v1331 = vunpack.c.l.b16 %v556
    %v1332 = vunpack.c.l.b16 %v557
    %v1333 = vunpack.c.l.b16 %v558
    %v1334 = vunpack.c.l.b16 %v559
    %v1335 = vunpack.c.l.b16 %v560
    %v1336 = vunpack.c.l.b16 %v561
    %v1337 = vunpack.c.l.b16 %v562
    %v1338 = vunpack.c.l.b16 %v563
    %v1339 = vunpack.c.l.b16 %v564
    %v1340 = vunpack.c.l.b16 %v565
    %v1341 = vunpack.c.l.b16 %v566
    %v1342 = vunpack.c.l.b16 %v567
    %v1343 = vunpack.c.l.b16 %v568
    %v1344 = vunpack.c.l.b16 %v569
    %v1345 = vunpack.c.l.b16 %v570
    %v1346 = vunpack.c.l.b16 %v571
    %v1347 = vunpack.c.l.b16 %v572
    %v1348 = vunpack.c.l.b16 %v573
    %v1349 = vunpack.c.l.b16 %v574
    %v1350 = vunpack.c.l.b16 %v575
    %v1351 = vunpack.c.l.b16 %v576
    %v1352 = vunpack.c.l.b16 %v577
    %v1353 = vunpack.c.l.b16 %v578
    %v1354 = vunpack.c.l.b16 %v579
    %v1355 = vunpack.c.l.b16 %v580
    %v1356 = vunpack.c.l.b16 %v581
    %v1357 = vunpack.c.l.b16 %v582
    %v1358 = vunpack.c.l.b16 %v583
    %v1359 = vunpack.c.l.b16 %v584
    %v1360 = vunpack.c.l.b16 %v585
    %v1361 = vunpack.c.l.b16 %v586
    %v1362 = vunpack.c.l.b16 %v587
    %v1363 = vunpack.c.l.b16 %v588
    %v1364 = vunpack.c.l.b16 %v589
    %v1365 = vunpack.c.l.b16 %v590
    %v1366 = vunpack.c.l.b16 %v591
    %v1367 = vunpack.c.l.b16 %v592
    %v1368 = vunpack.c.l.b16 %v593
    %v1369 = vunpack.c.l.b16 %v594
    %v1370 = vunpack.c.l.b16 %v595
    %v1371 = vunpack.c.l.b16 %v596
    %v1372 = vunpack.c.l.b16 %v597
    %v1373 = vunpack.c.l.b16 %v598
    %v1374 = vunpack.c.l.b16 %v599
    %v1375 = vunpack.c.l.b16 %v600
    %v1376 = vunpack.c.l.b16 %v601
    %v1377 = vunpack.c.l.b16 %v602
    %v1378 = vunpack.c.l.b16 %v603
    %v1379 = vunpack.c.l.b16 %v604
    %v1380 = vunpack.c.l.b16 %v605
    %v1381 = vunpack.c.l.b16 %v606
    %v1382 = vunpack.c.l.b16 %v607
    %v1383 = vunpack.c.l.b16 %v608
    %v1384 = vunpack.c.l.b16 %v609
    %v1385 = vunpack.c.l.b16 %v610
    %v1386 = vunpack.c.l.b16 %v611
    %v1387 = vunpack.c.l.b16 %v612
    %v1388 = vunpack.c.l.b16 %v613
    %v1389 = vunpack.c.l.b16 %v614
    %v1390 = vunpack.c.l.b16 %v615
    %v1391 = vunpack.c.l.b16 %v616
    %v1392 = vunpack.c.l.b16 %v617
    %v1393 = vunpack.c.l.b16 %v618
    %v1394 = vunpack.c.l.b16 %v619
    %v1395 = vunpack.c.l.b16 %v620
    %v1396 = vunpack.c.l.b16 %v621
    %v1397 = vunpack.c.l.b16 %v622
    %v1398 = vunpack.c.l.b16 %v623
    %v1399 = vunpack.c.l.b16 %v624
    %v1400 = vunpack.c.l.b16 %v625
    %v1401 = vunpack.c.l.b16 %v626
    %v1402 = vunpack.c.l.b16 %v627
    %v1403 = vunpack.c.l.b16 %v628
    %v1404 = vunpack.c.l.b16 %v629
    %v1405 = vunpack.c.l.b16 %v630
    %v1406 = vunpack.c.l.b16 %v631
    %v1407 = vunpack.c.l.b16 %v632
    %v1408 = vunpack.c.l.b16 %v633
    %v1409 = vunpack.c.l.b16 %v634
    %v1410 = vunpack.c.l.b16 %v635
    %v1411 = vunpack.c.l.b16 %v636
    %v1412 = vunpack.c.l.b16 %v637
    %v1413 = vunpack.c.l.b16 %v638
    %v1414 = vunpack.c.l.b16 %v639
    %v1415 = vunpack.c.l.b16 %v640
    %v1416 = vunpack.c.l.b16 %v641
    %v1417 = vunpack.c.l.b16 %v642
    %v1418 = vunpack.c.l.b16 %v643
    %v1419 = vunpack.c.l.b16 %v644
    %v1420 = vunpack.c.l.b16 %v645
    %v1421 = vunpack.c.l.b16 %v646
    %v1422 = vunpack.c.l.b16 %v647
    %v1423 = vunpack.c.l.b16 %v648
    %v1424 = vunpack.c.l.b16 %v649
    %v1425 = vunpack.c.l.b16 %v650
    %v1426 = vunpack.c.l.b16 %v651
    %v1427 = vunpack.c.l.b16 %v652
    %v1428 = vunpack.c.l.b16 %v653
    %v1429 = vunpack.c.l.b16 %v654
    %v1430 = vunpack.c.l.b16 %v655
    %v1431 = vunpack.c.l.b16 %v656
    %v1432 = vunpack.c.l.b16 %v657
    %v1433 = vunpack.c.l.b16 %v658
    %v1434 = vunpack.c.l.b16 %v659
    %v1435 = vunpack.c.l.b16 %v660
    %v1436 = vunpack.c.l.b16 %v661
    %v1437 = vunpack.c.l.b16 %v662
    %v1438 = vunpack.c.l.b16 %v663
    %v1439 = vunpack.c.l.b16 %v664
    %v1440 = vunpack.c.l.b16 %v665
    %v1441 = vunpack.c.l.b16 %v666
    %v1442 = vunpack.c.l.b16 %v667
    %v1443 = vunpack.c.l.b16 %v668
    %v1444 = vunpack.c.l.b16 %v669
    %v1445 = vunpack.c.l.b16 %v670
    %v1446 = vunpack.c.l.b16 %v671
    %v1447 = vunpack.c.l.b16 %v672
    %v1448 = vunpack.c.l.b16 %v673
    %v1449 = vunpack.c.l.b16 %v674
    %v1450 = vunpack.c.l.b16 %v675
    %v1451 = vunpack.c.l.b16 %v676
    %v1452 = vunpack.c.l.b16 %v677
    %v1453 = vunpack.c.l.b16 %v678
    %v1454 = vunpack.c.l.b16 %v679
    %v1455 = vunpack.c.l.b16 %v680
    %v1456 = vunpack.c.l.b16 %v681
    %v1457 = vunpack.c.l.b16 %v682
    %v1458 = vunpack.c.l.b16 %v683
    %v1459 = vunpack.c.l.b16 %v684
    %v1460 = vunpack.c.l.b16 %v685
    %v1461 = vunpack.c.l.b16 %v686
    %v1462 = vunpack.c.l.b16 %v687
    %v1463 = vunpack.c.l.b16 %v688
    %v1464 = vunpack.c.l.b16 %v689
    %v1465 = vunpack.c.l.b16 %v690
    %v1466 = vunpack.c.l.b16 %v691
    %v1467 = vunpack.c.l.b16 %v692
    %v1468 = vunpack.c.l.b16 %v693
    %v1469 = vunpack.c.l.b16 %v694
    %v1470 = vunpack.c.l.b16 %v695
    %v1471 = vunpack.c.l.b16 %v696
    %v1472 = vunpack.c.l.b16 %v697
    %v1473 = vunpack.c.l.b16 %v698
    %v1474 = vunpack.c.l.b16 %v699
    %v1475 = vunpack.c.l.b16 %v700
    %v1476 = vunpack.c.l.b16 %v701
    %v1477 = vunpack.c.l.b16 %v702
    %v1478 = vunpack.c.l.b16 %v703
    %v1479 = vunpack.c.l.b16 %v704
    %v1480 = vunpack.c.l.b16 %v705
    %v1481 = vunpack.c.l.b16 %v706
    %v1482 = vunpack.c.l.b16 %v707
    %v1483 = vunpack.c.l.b16 %v708
    %v1484 = vunpack.c.l.b16 %v709
    %v1485 = vunpack.c.l.b16 %v710
    %v1486 = vunpack.c.l.b16 %v711
    %v1487 = vunpack.c.l.b16 %v712
    %v1488 = vunpack.c.l.b16 %v713
    %v1489 = vunpack.c.l.b16 %v714
    %v1490 = vunpack.c.l.b16 %v715
    %v1491 = vunpack.c.l.b16 %v716
    %v1492 = vunpack.c.l.b16 %v717
    %v1493 = vunpack.c.l.b16 %v718
    %v1494 = vunpack.c.l.b16 %v719
    %v1495 = vunpack.c.l.b16 %v720
    %v1496 = vunpack.c.l.b16 %v721
    %v1497 = vunpack.c.l.b16 %v722
    %v1498 = vunpack.c.l.b16 %v723
    %v1499 = vunpack.c.l.b16 %v724
    %v1500 = vunpack.c.l.b16 %v725
    %v1501 = vunpack.c.l.b16 %v726
    %v1502 = vunpack.c.l.b16 %v727
    %v1503 = vunpack.c.l.b16 %v728
    %v1504 = vunpack.c.l.b16 %v729
    %v1505 = vunpack.c.l.b16 %v730
    %v1506 = vunpack.c.l.b16 %v731
    %v1507 = vunpack.c.l.b16 %v732
    %v1508 = vunpack.c.l.b16 %v733
    %v1509 = vunpack.c.l.b16 %v734
    %v1510 = vunpack.c.l.b16 %v735
    %v1511 = vunpack.c.l.b16 %v736
    %v1512 = vunpack.c.l.b16 %v737
    %v1513 = vunpack.c.l.b16 %v738
    %v1514 = vunpack.c.l.b16 %v739
    %v1515 = vunpack.c.l.b16 %v740
    %v1516 = vunpack.c.l.b16 %v741
    %v1517 = vunpack.c.l.b16 %v742
    %v1518 = vunpack.c.l.b16 %v743
    %v1519 = vunpack.c.l.b16 %v744
    %v1520 = vunpack.c.l.b16 %v745
    %v1521 = vunpack.c.l.b16 %v746
    %v1522 = vpack.c.b16 %v1139, %v1138
    %v1523 = vpack.c.b16 %v1141, %v1140
    %v1524 = vpack.c.b16 %v1143, %v1142
    %v1525 = vpack.c.b16 %v1145, %v1144
    %v1526 = vpack.c.b16 %v1147, %v1146
    %v1527 = vpack.c.b16 %v1149, %v1148
    %v1528 = vpack.c.b16 %v1151, %v1150
    %v1529 = vpack.c.b16 %v1153, %v1152
    %v1530 = vpack.c.b16 %v1155, %v1154
    %v1531 = vpack.c.b16 %v1157, %v1156
    %v1532 = vpack.c.b16 %v1159, %v1158
    %v1533 = vpack.c.b16 %v1161, %v1160
    %v1534 = vpack.c.b16 %v1163, %v1162
    %v1535 = vpack.c.b16 %v1165, %v1164
    %v1536 = vpack.c.b16 %v1167, %v1166
    %v1537 = vpack.c.b16 %v1169, %v1168
    %v1538 = vpack.c.b16 %v1171, %v1170
    %v1539 = vpack.c.b16 %v1173, %v1172
    %v1540 = vpack.c.b16 %v1175, %v1174
    %v1541 = vpack.c.b16 %v1177, %v1176
    %v1542 = vpack.c.b16 %v1179, %v1178
    %v1543 = vpack.c.b16 %v1181, %v1180
    %v1544 = vpack.c.b16 %v1183, %v1182
    %v1545 = vpack.c.b16 %v1185, %v1184
    %v1546 = vpack.c.b16 %v1187, %v1186
    %v1547 = vpack.c.b16 %v1189, %v1188
    %v1548 = vpack.c.b16 %v1191, %v1190
    %v1549 = vpack.c.b16 %v1193, %v1192
    %v1550 = vpack.c.b16 %v1195, %v1194
    %v1551 = vpack.c.b16 %v1197, %v1196
    %v1552 = vpack.c.b16 %v1199, %v1198
    %v1553 = vpack.c.b16 %v1201, %v1200
    %v1554 = vpack.c.b16 %v1203, %v1202
    %v1555 = vpack.c.b16 %v1205, %v1204
    %v1556 = vpack.c.b16 %v1207, %v1206
    %v1557 = vpack.c.b16 %v1209, %v1208
    %v1558 = vpack.c.b16 %v1211, %v1210
    %v1559 = vpack.c.b16 %v1213, %v1212
    %v1560 = vpack.c.b16 %v1215, %v1214
    %v1561 = vpack.c.b16 %v1217, %v1216
    %v1562 = vpack.c.b16 %v1219, %v1218
    %v1563 = vpack.c.b16 %v1221, %v1220
    %v1564 = vpack.c.b16 %v1223, %v1222
    %v1565 = vpack.c.b16 %v1225, %v1224
    %v1566 = vpack.c.b16 %v1227, %v1226
    %v1567 = vpack.c.b16 %v1229, %v1228
    %v1568 = vpack.c.b16 %v1231, %v1230
    %v1569 = vpack.c.b16 %v1233, %v1232
    %v1570 = vpack.c.b16 %v1235, %v1234
    %v1571 = vpack.c.b16 %v1237, %v1236
    %v1572 = vpack.c.b16 %v1239, %v1238
    %v1573 = vpack.c.b16 %v1241, %v1240
    %v1574 = vpack.c.b16 %v1243, %v1242
    %v1575 = vpack.c.b16 %v1245, %v1244
    %v1576 = vpack.c.b16 %v1247, %v1246
    %v1577 = vpack.c.b16 %v1249, %v1248
    %v1578 = vpack.c.b16 %v1251, %v1250
    %v1579 = vpack.c.b16 %v1253, %v1252
    %v1580 = vpack.c.b16 %v1255, %v1254
    %v1581 = vpack.c.b16 %v1257, %v1256
    %v1582 = vpack.c.b16 %v1259, %v1258
    %v1583 = vpack.c.b16 %v1261, %v1260
    %v1584 = vpack.c.b16 %v1263, %v1262
    %v1585 = vpack.c.b16 %v1265, %v1264
    %v1586 = vpack.c.b16 %v1267, %v1266
    %v1587 = vpack.c.b16 %v1269, %v1268
    %v1588 = vpack.c.b16 %v1271, %v1270
    %v1589 = vpack.c.b16 %v1273, %v1272
    %v1590 = vpack.c.b16 %v1275, %v1274
    %v1591 = vpack.c.b16 %v1277, %v1276
    %v1592 = vpack.c.b16 %v1279, %v1278
    %v1593 = vpack.c.b16 %v1281, %v1280
    %v1594 = vpack.c.b16 %v1283, %v1282
    %v1595 = vpack.c.b16 %v1285, %v1284
    %v1596 = vpack.c.b16 %v1287, %v1286
    %v1597 = vpack.c.b16 %v1289, %v1288
    %v1598 = vpack.c.b16 %v1291, %v1290
    %v1599 = vpack.c.b16 %v1293, %v1292
    %v1600 = vpack.c.b16 %v1295, %v1294
    %v1601 = vpack.c.b16 %v1297, %v1296
    %v1602 = vpack.c.b16 %v1299, %v1298
    %v1603 = vpack.c.b16 %v1301, %v1300
    %v1604 = vpack.c.b16 %v1303, %v1302
    %v1605 = vpack.c.b16 %v1305, %v1304
    %v1606 = vpack.c.b16 %v1307, %v1306
    %v1607 = vpack.c.b16 %v1309, %v1308
    %v1608 = vpack.c.b16 %v1311, %v1310
    %v1609 = vpack.c.b16 %v1313, %v1312
    %v1610 = vpack.c.b16 %v1315, %v1314
    %v1611 = vpack.c.b16 %v1317, %v1316
    %v1612 = vpack.c.b16 %v1319, %v1318
    %v1613 = vpack.c.b16 %v1321, %v1320
    %v1614 = vpack.c.b16 %v1323, %v1322
    %v1615 = vpack.c.b16 %v1325, %v1324
    %v1616 = vpack.c.b16 %v1327, %v1326
    %v1617 = vpack.c.b16 %v1329, %v1328
    %v1618 = vpack.c.b16 %v1331, %v1330
    %v1619 = vpack.c.b16 %v1333, %v1332
    %v1620 = vpack.c.b16 %v1335, %v1334
    %v1621 = vpack.c.b16 %v1337, %v1336
    %v1622 = vpack.c.b16 %v1339, %v1338
    %v1623 = vpack.c.b16 %v1341, %v1340
    %v1624 = vpack.c.b16 %v1343, %v1342
    %v1625 = vpack.c.b16 %v1345, %v1344
    %v1626 = vpack.c.b16 %v1347, %v1346
    %v1627 = vpack.c.b16 %v1349, %v1348
    %v1628 = vpack.c.b16 %v1351, %v1350
    %v1629 = vpack.c.b16 %v1353, %v1352
    %v1630 = vpack.c.b16 %v1355, %v1354
    %v1631 = vpack.c.b16 %v1357, %v1356
    %v1632 = vpack.c.b16 %v1359, %v1358
    %v1633 = vpack.c.b16 %v1361, %v1360
    %v1634 = vpack.c.b16 %v1363, %v1362
    %v1635 = vpack.c.b16 %v1365, %v1364
    %v1636 = vpack.c.b16 %v1367, %v1366
    %v1637 = vpack.c.b16 %v1369, %v1368
    %v1638 = vpack.c.b16 %v1371, %v1370
    %v1639 = vpack.c.b16 %v1373, %v1372
    %v1640 = vpack.c.b16 %v1375, %v1374
    %v1641 = vpack.c.b16 %v1377, %v1376
    %v1642 = vpack.c.b16 %v1379, %v1378
    %v1643 = vpack.c.b16 %v1381, %v1380
    %v1644 = vpack.c.b16 %v1383, %v1382
    %v1645 = vpack.c.b16 %v1385, %v1384
    %v1646 = vpack.c.b16 %v1387, %v1386
    %v1647 = vpack.c.b16 %v1389, %v1388
    %v1648 = vpack.c.b16 %v1391, %v1390
    %v1649 = vpack.c.b16 %v1393, %v1392
    %v1650 = vpack.c.b16 %v1395, %v1394
    %v1651 = vpack.c.b16 %v1397, %v1396
    %v1652 = vpack.c.b16 %v1399, %v1398
    %v1653 = vpack.c.b16 %v1401, %v1400
    %v1654 = vpack.c.b16 %v1403, %v1402
    %v1655 = vpack.c.b16 %v1405, %v1404
    %v1656 = vpack.c.b16 %v1407, %v1406
    %v1657 = vpack.c.b16 %v1409, %v1408
    %v1658 = vpack.c.b16 %v1411, %v1410
    %v1659 = vpack.c.b16 %v1413, %v1412
    %v1660 = vpack.c.b16 %v1415, %v1414
    %v1661 = vpack.c.b16 %v1417, %v1416
    %v1662 = vpack.c.b16 %v1419, %v1418
    %v1663 = vpack.c.b16 %v1421, %v1420
    %v1664 = vpack.c.b16 %v1423, %v1422
    %v1665 = vpack.c.b16 %v1425, %v1424
    %v1666 = vpack.c.b16 %v1427, %v1426
    %v1667 = vpack.c.b16 %v1429, %v1428
    %v1668 = vpack.c.b16 %v1431, %v1430
    %v1669 = vpack.c.b16 %v1433, %v1432
    %v1670 = vpack.c.b16 %v1435, %v1434
    %v1671 = vpack.c.b16 %v1437, %v1436
    %v1672 = vpack.c.b16 %v1439, %v1438
    %v1673 = vpack.c.b16 %v1441, %v1440
    %v1674 = vpack.c.b16 %v1443, %v1442
    %v1675 = vpack.c.b16 %v1445, %v1444
    %v1676 = vpack.c.b16 %v1447, %v1446
    %v1677 = vpack.c.b16 %v1449, %v1448
    %v1678 = vpack.c.b16 %v1451, %v1450
    %v1679 = vpack.c.b16 %v1453, %v1452
    %v1680 = vpack.c.b16 %v1455, %v1454
    %v1681 = vpack.c.b16 %v1457, %v1456
    %v1682 = vpack.c.b16 %v1459, %v1458
    %v1683 = vpack.c.b16 %v1461, %v1460
    %v1684 = vpack.c.b16 %v1463, %v1462
    %v1685 = vpack.c.b16 %v1465, %v1464
    %v1686 = vpack.c.b16 %v1467, %v1466
    %v1687 = vpack.c.b16 %v1469, %v1468
    %v1688 = vpack.c.b16 %v1471, %v1470
    %v1689 = vpack.c.b16 %v1473, %v1472
    %v1690 = vpack.c.b16 %v1475, %v1474
    %v1691 = vpack.c.b16 %v1477, %v1476
    %v1692 = vpack.c.b16 %v1479, %v1478
    %v1693 = vpack.c.b16 %v1481, %v1480
    %v1694 = vpack.c.b16 %v1483, %v1482
    %v1695 = vpack.c.b16 %v1485, %v1484
    %v1696 = vpack.c.b16 %v1487, %v1486
    %v1697 = vpack.c.b16 %v1489, %v1488
    %v1698 = vpack.c.b16 %v1491, %v1490
    %v1699 = vpack.c.b16 %v1493, %v1492
    %v1700 = vpack.c.b16 %v1495, %v1494
    %v1701 = vpack.c.b16 %v1497, %v1496
    %v1702 = vpack.c.b16 %v1499, %v1498
    %v1703 = vpack.c.b16 %v1501, %v1500
    %v1704 = vpack.c.b16 %v1503, %v1502
    %v1705 = vpack.c.b16 %v1505, %v1504
    %v1706 = vpack.c.b16 %v1507, %v1506
    %v1707 = vpack.c.b16 %v1509, %v1508
    %v1708 = vpack.c.b16 %v1511, %v1510
    %v1709 = vpack.c.b16 %v1513, %v1512
    %v1710 = vpack.c.b16 %v1515, %v1514
    %v1711 = vpack.c.b16 %v1517, %v1516
    %v1712 = vpack.c.b16 %v1519, %v1518
    %v1713 = vpack.c.b16 %v1521, %v1520
    %1906 = vmatprep.subr.bf16.mxu0 0
    %1907 = vmatpush1.bf16.msra.mxu0 %v1529
    %1908 = vmatprep.subr.bf16.mxu0 0
    %1909 = vmatpush1.bf16.msra.mxu0 %v1528
    %1910 = vmatprep.subr.bf16.mxu0 0
    %1911 = vmatpush1.bf16.msra.mxu0 %v1527
    %1912 = vmatprep.subr.bf16.mxu0 0
    %1913 = vmatpush1.bf16.msra.mxu0 %v1526
    %1914 = vmatprep.subr.bf16.mxu0 0
    %1915 = vmatpush1.bf16.msra.mxu0 %v1525
    %1916 = vmatprep.subr.bf16.mxu0 0
    %1917 = vmatpush1.bf16.msra.mxu0 %v1524
    %1918 = vmatprep.subr.bf16.mxu0 0
    %1919 = vmatpush1.bf16.msra.mxu0 %v1523
    %1920 = vmatprep.subr.bf16.mxu0 0
    %1921 = vmatpush1.bf16.msra.mxu0 %v1522
    %1922 = vmatprep.subr.bf16.mxu0 0
    %1923 = vmatpush2.bf16.msra.mxu0 %v1537
    %1924 = vmatprep.subr.bf16.mxu0 0
    %1925 = vmatpush2.bf16.msra.mxu0 %v1536
    %1926 = vmatprep.subr.bf16.mxu0 0
    %1927 = vmatpush2.bf16.msra.mxu0 %v1535
    %1928 = vmatprep.subr.bf16.mxu0 0
    %1929 = vmatpush2.bf16.msra.mxu0 %v1534
    %1930 = vmatprep.subr.bf16.mxu0 0
    %1931 = vmatpush2.bf16.msra.mxu0 %v1533
    %1932 = vmatprep.subr.bf16.mxu0 0
    %1933 = vmatpush2.bf16.msra.mxu0 %v1532
    %1934 = vmatprep.subr.bf16.mxu0 0
    %1935 = vmatpush2.bf16.msra.mxu0 %v1531
    %1936 = vmatprep.subr.bf16.mxu0 0
    %1937 = vmatpush2.bf16.msra.mxu0 %v1530
    %1938 = vmatprep.mubr.bf16.mxu0 %v340
    %1939 = vmatmul.mubr.bf16.gmra.mxu0 %v339
    %v1940 = vpop.f32.mrf.mxu0
    %v1941 = vadd.f32 %v752, %v1940
    %v1942 = vpop.f32.mrf.mxu0
    %v1943 = vpop.f32.mrf.mxu0
    %v1944 = vpop.f32.mrf.mxu0
    %1945 = vdwg.mxu0
    %1946 = vmatprep.subr.bf16.mxu0 0
    %1947 = vmatpush1.bf16.msra.mxu0 %v1545
    %1948 = vmatprep.subr.bf16.mxu0 0
    %1949 = vmatpush1.bf16.msra.mxu0 %v1544
    %1950 = vmatprep.subr.bf16.mxu0 0
    %1951 = vmatpush1.bf16.msra.mxu0 %v1543
    %1952 = vmatprep.subr.bf16.mxu0 0
    %1953 = vmatpush1.bf16.msra.mxu0 %v1542
    %1954 = vmatprep.subr.bf16.mxu0 0
    %1955 = vmatpush1.bf16.msra.mxu0 %v1541
    %1956 = vmatprep.subr.bf16.mxu0 0
    %1957 = vmatpush1.bf16.msra.mxu0 %v1540
    %1958 = vmatprep.subr.bf16.mxu0 0
    %1959 = vmatpush1.bf16.msra.mxu0 %v1539
    %1960 = vmatprep.subr.bf16.mxu0 0
    %1961 = vmatpush1.bf16.msra.mxu0 %v1538
    %1962 = vmatprep.subr.bf16.mxu0 0
    %1963 = vmatpush2.bf16.msra.mxu0 %v1553
    %1964 = vmatprep.subr.bf16.mxu0 0
    %1965 = vmatpush2.bf16.msra.mxu0 %v1552
    %1966 = vmatprep.subr.bf16.mxu0 0
    %1967 = vmatpush2.bf16.msra.mxu0 %v1551
    %1968 = vmatprep.subr.bf16.mxu0 0
    %1969 = vmatpush2.bf16.msra.mxu0 %v1550
    %1970 = vmatprep.subr.bf16.mxu0 0
    %1971 = vmatpush2.bf16.msra.mxu0 %v1549
    %1972 = vmatprep.subr.bf16.mxu0 0
    %1973 = vmatpush2.bf16.msra.mxu0 %v1548
    %1974 = vmatprep.subr.bf16.mxu0 0
    %1975 = vmatpush2.bf16.msra.mxu0 %v1547
    %1976 = vmatprep.subr.bf16.mxu0 0
    %1977 = vmatpush2.bf16.msra.mxu0 %v1546
    %1978 = vmatprep.mubr.bf16.mxu0 %v342
    %1979 = vmatmul.mubr.bf16.gmra.mxu0 %v341
    %v1980 = vpop.f32.mrf.mxu0
    %v1981 = vadd.f32 %v1941, %v1980
    %v1982 = vpop.f32.mrf.mxu0
    %v1983 = vpop.f32.mrf.mxu0
    %v1984 = vpop.f32.mrf.mxu0
    %1985 = vdwg.mxu0
    %1986 = vmatprep.subr.bf16.mxu0 0
    %1987 = vmatpush1.bf16.msra.mxu0 %v1561
    %1988 = vmatprep.subr.bf16.mxu0 0
    %1989 = vmatpush1.bf16.msra.mxu0 %v1560
    %1990 = vmatprep.subr.bf16.mxu0 0
    %1991 = vmatpush1.bf16.msra.mxu0 %v1559
    %1992 = vmatprep.subr.bf16.mxu0 0
    %1993 = vmatpush1.bf16.msra.mxu0 %v1558
    %1994 = vmatprep.subr.bf16.mxu0 0
    %1995 = vmatpush1.bf16.msra.mxu0 %v1557
    %1996 = vmatprep.subr.bf16.mxu0 0
    %1997 = vmatpush1.bf16.msra.mxu0 %v1556
    %1998 = vmatprep.subr.bf16.mxu0 0
    %1999 = vmatpush1.bf16.msra.mxu0 %v1555
    %2000 = vmatprep.subr.bf16.mxu0 0
    %2001 = vmatpush1.bf16.msra.mxu0 %v1554
    %2002 = vmatprep.subr.bf16.mxu0 0
    %2003 = vmatpush2.bf16.msra.mxu0 %v1569
    %2004 = vmatprep.subr.bf16.mxu0 0
    %2005 = vmatpush2.bf16.msra.mxu0 %v1568
    %2006 = vmatprep.subr.bf16.mxu0 0
    %2007 = vmatpush2.bf16.msra.mxu0 %v1567
    %2008 = vmatprep.subr.bf16.mxu0 0
    %2009 = vmatpush2.bf16.msra.mxu0 %v1566
    %2010 = vmatprep.subr.bf16.mxu0 0
    %2011 = vmatpush2.bf16.msra.mxu0 %v1565
    %2012 = vmatprep.subr.bf16.mxu0 0
    %2013 = vmatpush2.bf16.msra.mxu0 %v1564
    %2014 = vmatprep.subr.bf16.mxu0 0
    %2015 = vmatpush2.bf16.msra.mxu0 %v1563
    %2016 = vmatprep.subr.bf16.mxu0 0
    %2017 = vmatpush2.bf16.msra.mxu0 %v1562
    %2018 = vmatprep.mubr.bf16.mxu0 %v344
    %2019 = vmatmul.mubr.bf16.gmra.mxu0 %v343
    %v2020 = vpop.f32.mrf.mxu0
    %v2021 = vadd.f32 %v1981, %v2020
    %v2022 = vpop.f32.mrf.mxu0
    %v2023 = vpop.f32.mrf.mxu0
    %v2024 = vpop.f32.mrf.mxu0
    %2025 = vdwg.mxu0
    %2026 = vmatprep.subr.bf16.mxu0 0
    %2027 = vmatpush1.bf16.msra.mxu0 %v1577
    %2028 = vmatprep.subr.bf16.mxu0 0
    %2029 = vmatpush1.bf16.msra.mxu0 %v1576
    %2030 = vmatprep.subr.bf16.mxu0 0
    %2031 = vmatpush1.bf16.msra.mxu0 %v1575
    %2032 = vmatprep.subr.bf16.mxu0 0
    %2033 = vmatpush1.bf16.msra.mxu0 %v1574
    %2034 = vmatprep.subr.bf16.mxu0 0
    %2035 = vmatpush1.bf16.msra.mxu0 %v1573
    %2036 = vmatprep.subr.bf16.mxu0 0
    %2037 = vmatpush1.bf16.msra.mxu0 %v1572
    %2038 = vmatprep.subr.bf16.mxu0 0
    %2039 = vmatpush1.bf16.msra.mxu0 %v1571
    %2040 = vmatprep.subr.bf16.mxu0 0
    %2041 = vmatpush1.bf16.msra.mxu0 %v1570
    %2042 = vmatprep.subr.bf16.mxu0 0
    %2043 = vmatpush2.bf16.msra.mxu0 %v1585
    %2044 = vmatprep.subr.bf16.mxu0 0
    %2045 = vmatpush2.bf16.msra.mxu0 %v1584
    %2046 = vmatprep.subr.bf16.mxu0 0
    %2047 = vmatpush2.bf16.msra.mxu0 %v1583
    %2048 = vmatprep.subr.bf16.mxu0 0
    %2049 = vmatpush2.bf16.msra.mxu0 %v1582
    %2050 = vmatprep.subr.bf16.mxu0 0
    %2051 = vmatpush2.bf16.msra.mxu0 %v1581
    %2052 = vmatprep.subr.bf16.mxu0 0
    %2053 = vmatpush2.bf16.msra.mxu0 %v1580
    %2054 = vmatprep.subr.bf16.mxu0 0
    %2055 = vmatpush2.bf16.msra.mxu0 %v1579
    %2056 = vmatprep.subr.bf16.mxu0 0
    %2057 = vmatpush2.bf16.msra.mxu0 %v1578
    %2058 = vmatprep.mubr.bf16.mxu0 %v346
    %2059 = vmatmul.mubr.bf16.gmra.mxu0 %v345
    %v2060 = vpop.f32.mrf.mxu0
    %v2061 = vadd.f32 %v2021, %v2060
    %v2062 = vpop.f32.mrf.mxu0
    %v2063 = vpop.f32.mrf.mxu0
    %v2064 = vpop.f32.mrf.mxu0
    %2065 = vdwg.mxu0
    %2066 = vmatprep.subr.bf16.mxu0 0
    %2067 = vmatpush1.bf16.msra.mxu0 %v1593
    %2068 = vmatprep.subr.bf16.mxu0 0
    %2069 = vmatpush1.bf16.msra.mxu0 %v1592
    %2070 = vmatprep.subr.bf16.mxu0 0
    %2071 = vmatpush1.bf16.msra.mxu0 %v1591
    %2072 = vmatprep.subr.bf16.mxu0 0
    %2073 = vmatpush1.bf16.msra.mxu0 %v1590
    %2074 = vmatprep.subr.bf16.mxu0 0
    %2075 = vmatpush1.bf16.msra.mxu0 %v1589
    %2076 = vmatprep.subr.bf16.mxu0 0
    %2077 = vmatpush1.bf16.msra.mxu0 %v1588
    %2078 = vmatprep.subr.bf16.mxu0 0
    %2079 = vmatpush1.bf16.msra.mxu0 %v1587
    %2080 = vmatprep.subr.bf16.mxu0 0
    %2081 = vmatpush1.bf16.msra.mxu0 %v1586
    %2082 = vmatprep.subr.bf16.mxu0 0
    %2083 = vmatpush2.bf16.msra.mxu0 %v1601
    %2084 = vmatprep.subr.bf16.mxu0 0
    %2085 = vmatpush2.bf16.msra.mxu0 %v1600
    %2086 = vmatprep.subr.bf16.mxu0 0
    %2087 = vmatpush2.bf16.msra.mxu0 %v1599
    %2088 = vmatprep.subr.bf16.mxu0 0
    %2089 = vmatpush2.bf16.msra.mxu0 %v1598
    %2090 = vmatprep.subr.bf16.mxu0 0
    %2091 = vmatpush2.bf16.msra.mxu0 %v1597
    %2092 = vmatprep.subr.bf16.mxu0 0
    %2093 = vmatpush2.bf16.msra.mxu0 %v1596
    %2094 = vmatprep.subr.bf16.mxu0 0
    %2095 = vmatpush2.bf16.msra.mxu0 %v1595
    %2096 = vmatprep.subr.bf16.mxu0 0
    %2097 = vmatpush2.bf16.msra.mxu0 %v1594
    %2098 = vmatprep.mubr.bf16.mxu0 %v348
    %2099 = vmatmul.mubr.bf16.gmra.mxu0 %v347
    %v2100 = vpop.f32.mrf.mxu0
    %v2101 = vadd.f32 %v2061, %v2100
    %v2102 = vpop.f32.mrf.mxu0
    %v2103 = vpop.f32.mrf.mxu0
    %v2104 = vpop.f32.mrf.mxu0
    %2105 = vdwg.mxu0
    %2106 = vmatprep.subr.bf16.mxu0 0
    %2107 = vmatpush1.bf16.msra.mxu0 %v1609
    %2108 = vmatprep.subr.bf16.mxu0 0
    %2109 = vmatpush1.bf16.msra.mxu0 %v1608
    %2110 = vmatprep.subr.bf16.mxu0 0
    %2111 = vmatpush1.bf16.msra.mxu0 %v1607
    %2112 = vmatprep.subr.bf16.mxu0 0
    %2113 = vmatpush1.bf16.msra.mxu0 %v1606
    %2114 = vmatprep.subr.bf16.mxu0 0
    %2115 = vmatpush1.bf16.msra.mxu0 %v1605
    %2116 = vmatprep.subr.bf16.mxu0 0
    %2117 = vmatpush1.bf16.msra.mxu0 %v1604
    %2118 = vmatprep.subr.bf16.mxu0 0
    %2119 = vmatpush1.bf16.msra.mxu0 %v1603
    %2120 = vmatprep.subr.bf16.mxu0 0
    %2121 = vmatpush1.bf16.msra.mxu0 %v1602
    %2122 = vmatprep.subr.bf16.mxu0 0
    %2123 = vmatpush2.bf16.msra.mxu0 %v1617
    %2124 = vmatprep.subr.bf16.mxu0 0
    %2125 = vmatpush2.bf16.msra.mxu0 %v1616
    %2126 = vmatprep.subr.bf16.mxu0 0
    %2127 = vmatpush2.bf16.msra.mxu0 %v1615
    %2128 = vmatprep.subr.bf16.mxu0 0
    %2129 = vmatpush2.bf16.msra.mxu0 %v1614
    %2130 = vmatprep.subr.bf16.mxu0 0
    %2131 = vmatpush2.bf16.msra.mxu0 %v1613
    %2132 = vmatprep.subr.bf16.mxu0 0
    %2133 = vmatpush2.bf16.msra.mxu0 %v1612
    %2134 = vmatprep.subr.bf16.mxu0 0
    %2135 = vmatpush2.bf16.msra.mxu0 %v1611
    %2136 = vmatprep.subr.bf16.mxu0 0
    %2137 = vmatpush2.bf16.msra.mxu0 %v1610
    %2138 = vmatprep.mubr.bf16.mxu0 %v350
    %2139 = vmatmul.mubr.bf16.gmra.mxu0 %v349
    %v2140 = vpop.f32.mrf.mxu0
    %v2141 = vadd.f32 %v2101, %v2140
    %v2142 = vpop.f32.mrf.mxu0
    %v2143 = vpop.f32.mrf.mxu0
    %v2144 = vpop.f32.mrf.mxu0
    %2145 = vdwg.mxu0
    %2146 = vmatprep.subr.bf16.mxu0 0
    %2147 = vmatpush1.bf16.msra.mxu0 %v1625
    %2148 = vmatprep.subr.bf16.mxu0 0
    %2149 = vmatpush1.bf16.msra.mxu0 %v1624
    %2150 = vmatprep.subr.bf16.mxu0 0
    %2151 = vmatpush1.bf16.msra.mxu0 %v1623
    %2152 = vmatprep.subr.bf16.mxu0 0
    %2153 = vmatpush1.bf16.msra.mxu0 %v1622
    %2154 = vmatprep.subr.bf16.mxu0 0
    %2155 = vmatpush1.bf16.msra.mxu0 %v1621
    %2156 = vmatprep.subr.bf16.mxu0 0
    %2157 = vmatpush1.bf16.msra.mxu0 %v1620
    %2158 = vmatprep.subr.bf16.mxu0 0
    %2159 = vmatpush1.bf16.msra.mxu0 %v1619
    %2160 = vmatprep.subr.bf16.mxu0 0
    %2161 = vmatpush1.bf16.msra.mxu0 %v1618
    %2162 = vmatprep.subr.bf16.mxu0 0
    %2163 = vmatpush2.bf16.msra.mxu0 %v1633
    %2164 = vmatprep.subr.bf16.mxu0 0
    %2165 = vmatpush2.bf16.msra.mxu0 %v1632
    %2166 = vmatprep.subr.bf16.mxu0 0
    %2167 = vmatpush2.bf16.msra.mxu0 %v1631
    %2168 = vmatprep.subr.bf16.mxu0 0
    %2169 = vmatpush2.bf16.msra.mxu0 %v1630
    %2170 = vmatprep.subr.bf16.mxu0 0
    %2171 = vmatpush2.bf16.msra.mxu0 %v1629
    %2172 = vmatprep.subr.bf16.mxu0 0
    %2173 = vmatpush2.bf16.msra.mxu0 %v1628
    %2174 = vmatprep.subr.bf16.mxu0 0
    %2175 = vmatpush2.bf16.msra.mxu0 %v1627
    %2176 = vmatprep.subr.bf16.mxu0 0
    %2177 = vmatpush2.bf16.msra.mxu0 %v1626
    %2178 = vmatprep.mubr.bf16.mxu0 %v352
    %2179 = vmatmul.mubr.bf16.gmra.mxu0 %v351
    %v2180 = vpop.f32.mrf.mxu0
    %v2181 = vadd.f32 %v2141, %v2180
    %v2182 = vpop.f32.mrf.mxu0
    %v2183 = vpop.f32.mrf.mxu0
    %v2184 = vpop.f32.mrf.mxu0
    %2185 = vdwg.mxu0
    %2186 = vmatprep.subr.bf16.mxu0 0
    %2187 = vmatpush1.bf16.msra.mxu0 %v1641
    %2188 = vmatprep.subr.bf16.mxu0 0
    %2189 = vmatpush1.bf16.msra.mxu0 %v1640
    %2190 = vmatprep.subr.bf16.mxu0 0
    %2191 = vmatpush1.bf16.msra.mxu0 %v1639
    %2192 = vmatprep.subr.bf16.mxu0 0
    %2193 = vmatpush1.bf16.msra.mxu0 %v1638
    %2194 = vmatprep.subr.bf16.mxu0 0
    %2195 = vmatpush1.bf16.msra.mxu0 %v1637
    %2196 = vmatprep.subr.bf16.mxu0 0
    %2197 = vmatpush1.bf16.msra.mxu0 %v1636
    %2198 = vmatprep.subr.bf16.mxu0 0
    %2199 = vmatpush1.bf16.msra.mxu0 %v1635
    %2200 = vmatprep.subr.bf16.mxu0 0
    %2201 = vmatpush1.bf16.msra.mxu0 %v1634
    %2202 = vmatprep.subr.bf16.mxu0 0
    %2203 = vmatpush2.bf16.msra.mxu0 %v1649
    %2204 = vmatprep.subr.bf16.mxu0 0
    %2205 = vmatpush2.bf16.msra.mxu0 %v1648
    %2206 = vmatprep.subr.bf16.mxu0 0
    %2207 = vmatpush2.bf16.msra.mxu0 %v1647
    %2208 = vmatprep.subr.bf16.mxu0 0
    %2209 = vmatpush2.bf16.msra.mxu0 %v1646
    %2210 = vmatprep.subr.bf16.mxu0 0
    %2211 = vmatpush2.bf16.msra.mxu0 %v1645
    %2212 = vmatprep.subr.bf16.mxu0 0
    %2213 = vmatpush2.bf16.msra.mxu0 %v1644
    %2214 = vmatprep.subr.bf16.mxu0 0
    %2215 = vmatpush2.bf16.msra.mxu0 %v1643
    %2216 = vmatprep.subr.bf16.mxu0 0
    %2217 = vmatpush2.bf16.msra.mxu0 %v1642
    %2218 = vmatprep.mubr.bf16.mxu0 %v354
    %2219 = vmatmul.mubr.bf16.gmra.mxu0 %v353
    %v2220 = vpop.f32.mrf.mxu0
    %v2221 = vadd.f32 %v2181, %v2220
    %v2222 = vpop.f32.mrf.mxu0
    %v2223 = vpop.f32.mrf.mxu0
    %v2224 = vpop.f32.mrf.mxu0
    %2225 = vdwg.mxu0
    %2226 = vmatprep.subr.bf16.mxu0 0
    %2227 = vmatpush1.bf16.msra.mxu0 %v1657
    %2228 = vmatprep.subr.bf16.mxu0 0
    %2229 = vmatpush1.bf16.msra.mxu0 %v1656
    %2230 = vmatprep.subr.bf16.mxu0 0
    %2231 = vmatpush1.bf16.msra.mxu0 %v1655
    %2232 = vmatprep.subr.bf16.mxu0 0
    %2233 = vmatpush1.bf16.msra.mxu0 %v1654
    %2234 = vmatprep.subr.bf16.mxu0 0
    %2235 = vmatpush1.bf16.msra.mxu0 %v1653
    %2236 = vmatprep.subr.bf16.mxu0 0
    %2237 = vmatpush1.bf16.msra.mxu0 %v1652
    %2238 = vmatprep.subr.bf16.mxu0 0
    %2239 = vmatpush1.bf16.msra.mxu0 %v1651
    %2240 = vmatprep.subr.bf16.mxu0 0
    %2241 = vmatpush1.bf16.msra.mxu0 %v1650
    %2242 = vmatprep.subr.bf16.mxu0 0
    %2243 = vmatpush2.bf16.msra.mxu0 %v1665
    %2244 = vmatprep.subr.bf16.mxu0 0
    %2245 = vmatpush2.bf16.msra.mxu0 %v1664
    %2246 = vmatprep.subr.bf16.mxu0 0
    %2247 = vmatpush2.bf16.msra.mxu0 %v1663
    %2248 = vmatprep.subr.bf16.mxu0 0
    %2249 = vmatpush2.bf16.msra.mxu0 %v1662
    %2250 = vmatprep.subr.bf16.mxu0 0
    %2251 = vmatpush2.bf16.msra.mxu0 %v1661
    %2252 = vmatprep.subr.bf16.mxu0 0
    %2253 = vmatpush2.bf16.msra.mxu0 %v1660
    %2254 = vmatprep.subr.bf16.mxu0 0
    %2255 = vmatpush2.bf16.msra.mxu0 %v1659
    %2256 = vmatprep.subr.bf16.mxu0 0
    %2257 = vmatpush2.bf16.msra.mxu0 %v1658
    %2258 = vmatprep.mubr.bf16.mxu0 %v356
    %2259 = vmatmul.mubr.bf16.gmra.mxu0 %v355
    %v2260 = vpop.f32.mrf.mxu0
    %v2261 = vadd.f32 %v2221, %v2260
    %v2262 = vpop.f32.mrf.mxu0
    %v2263 = vpop.f32.mrf.mxu0
    %v2264 = vpop.f32.mrf.mxu0
    %2265 = vdwg.mxu0
    %2266 = vmatprep.subr.bf16.mxu0 0
    %2267 = vmatpush1.bf16.msra.mxu0 %v1673
    %2268 = vmatprep.subr.bf16.mxu0 0
    %2269 = vmatpush1.bf16.msra.mxu0 %v1672
    %2270 = vmatprep.subr.bf16.mxu0 0
    %2271 = vmatpush1.bf16.msra.mxu0 %v1671
    %2272 = vmatprep.subr.bf16.mxu0 0
    %2273 = vmatpush1.bf16.msra.mxu0 %v1670
    %2274 = vmatprep.subr.bf16.mxu0 0
    %2275 = vmatpush1.bf16.msra.mxu0 %v1669
    %2276 = vmatprep.subr.bf16.mxu0 0
    %2277 = vmatpush1.bf16.msra.mxu0 %v1668
    %2278 = vmatprep.subr.bf16.mxu0 0
    %2279 = vmatpush1.bf16.msra.mxu0 %v1667
    %2280 = vmatprep.subr.bf16.mxu0 0
    %2281 = vmatpush1.bf16.msra.mxu0 %v1666
    %2282 = vmatprep.subr.bf16.mxu0 0
    %2283 = vmatpush2.bf16.msra.mxu0 %v1681
    %2284 = vmatprep.subr.bf16.mxu0 0
    %2285 = vmatpush2.bf16.msra.mxu0 %v1680
    %2286 = vmatprep.subr.bf16.mxu0 0
    %2287 = vmatpush2.bf16.msra.mxu0 %v1679
    %2288 = vmatprep.subr.bf16.mxu0 0
    %2289 = vmatpush2.bf16.msra.mxu0 %v1678
    %2290 = vmatprep.subr.bf16.mxu0 0
    %2291 = vmatpush2.bf16.msra.mxu0 %v1677
    %2292 = vmatprep.subr.bf16.mxu0 0
    %2293 = vmatpush2.bf16.msra.mxu0 %v1676
    %2294 = vmatprep.subr.bf16.mxu0 0
    %2295 = vmatpush2.bf16.msra.mxu0 %v1675
    %2296 = vmatprep.subr.bf16.mxu0 0
    %2297 = vmatpush2.bf16.msra.mxu0 %v1674
    %2298 = vmatprep.mubr.bf16.mxu0 %v358
    %2299 = vmatmul.mubr.bf16.gmra.mxu0 %v357
    %v2300 = vpop.f32.mrf.mxu0
    %v2301 = vadd.f32 %v2261, %v2300
    %v2302 = vpop.f32.mrf.mxu0
    %v2303 = vpop.f32.mrf.mxu0
    %v2304 = vpop.f32.mrf.mxu0
    %2305 = vdwg.mxu0
    %2306 = vmatprep.subr.bf16.mxu0 0
    %2307 = vmatpush1.bf16.msra.mxu0 %v1689
    %2308 = vmatprep.subr.bf16.mxu0 0
    %2309 = vmatpush1.bf16.msra.mxu0 %v1688
    %2310 = vmatprep.subr.bf16.mxu0 0
    %2311 = vmatpush1.bf16.msra.mxu0 %v1687
    %2312 = vmatprep.subr.bf16.mxu0 0
    %2313 = vmatpush1.bf16.msra.mxu0 %v1686
    %2314 = vmatprep.subr.bf16.mxu0 0
    %2315 = vmatpush1.bf16.msra.mxu0 %v1685
    %2316 = vmatprep.subr.bf16.mxu0 0
    %2317 = vmatpush1.bf16.msra.mxu0 %v1684
    %2318 = vmatprep.subr.bf16.mxu0 0
    %2319 = vmatpush1.bf16.msra.mxu0 %v1683
    %2320 = vmatprep.subr.bf16.mxu0 0
    %2321 = vmatpush1.bf16.msra.mxu0 %v1682
    %2322 = vmatprep.subr.bf16.mxu0 0
    %2323 = vmatpush2.bf16.msra.mxu0 %v1697
    %2324 = vmatprep.subr.bf16.mxu0 0
    %2325 = vmatpush2.bf16.msra.mxu0 %v1696
    %2326 = vmatprep.subr.bf16.mxu0 0
    %2327 = vmatpush2.bf16.msra.mxu0 %v1695
    %2328 = vmatprep.subr.bf16.mxu0 0
    %2329 = vmatpush2.bf16.msra.mxu0 %v1694
    %2330 = vmatprep.subr.bf16.mxu0 0
    %2331 = vmatpush2.bf16.msra.mxu0 %v1693
    %2332 = vmatprep.subr.bf16.mxu0 0
    %2333 = vmatpush2.bf16.msra.mxu0 %v1692
    %2334 = vmatprep.subr.bf16.mxu0 0
    %2335 = vmatpush2.bf16.msra.mxu0 %v1691
    %2336 = vmatprep.subr.bf16.mxu0 0
    %2337 = vmatpush2.bf16.msra.mxu0 %v1690
    %2338 = vmatprep.mubr.bf16.mxu0 %v360
    %2339 = vmatmul.mubr.bf16.gmra.mxu0 %v359
    %v2340 = vpop.f32.mrf.mxu0
    %v2341 = vadd.f32 %v2301, %v2340
    %v2342 = vpop.f32.mrf.mxu0
    %v2343 = vpop.f32.mrf.mxu0
    %v2344 = vpop.f32.mrf.mxu0
    %2345 = vdwg.mxu0
    %2346 = vmatprep.subr.bf16.mxu0 0
    %2347 = vmatpush1.bf16.msra.mxu0 %v1705
    %2348 = vmatprep.subr.bf16.mxu0 0
    %2349 = vmatpush1.bf16.msra.mxu0 %v1704
    %2350 = vmatprep.subr.bf16.mxu0 0
    %2351 = vmatpush1.bf16.msra.mxu0 %v1703
    %2352 = vmatprep.subr.bf16.mxu0 0
    %2353 = vmatpush1.bf16.msra.mxu0 %v1702
    %2354 = vmatprep.subr.bf16.mxu0 0
    %2355 = vmatpush1.bf16.msra.mxu0 %v1701
    %2356 = vmatprep.subr.bf16.mxu0 0
    %2357 = vmatpush1.bf16.msra.mxu0 %v1700
    %2358 = vmatprep.subr.bf16.mxu0 0
    %2359 = vmatpush1.bf16.msra.mxu0 %v1699
    %2360 = vmatprep.subr.bf16.mxu0 0
    %2361 = vmatpush1.bf16.msra.mxu0 %v1698
    %2362 = vmatprep.subr.bf16.mxu0 0
    %2363 = vmatpush2.bf16.msra.mxu0 %v1713
    %2364 = vmatprep.subr.bf16.mxu0 0
    %2365 = vmatpush2.bf16.msra.mxu0 %v1712
    %2366 = vmatprep.subr.bf16.mxu0 0
    %2367 = vmatpush2.bf16.msra.mxu0 %v1711
    %2368 = vmatprep.subr.bf16.mxu0 0
    %2369 = vmatpush2.bf16.msra.mxu0 %v1710
    %2370 = vmatprep.subr.bf16.mxu0 0
    %2371 = vmatpush2.bf16.msra.mxu0 %v1709
    %2372 = vmatprep.subr.bf16.mxu0 0
    %2373 = vmatpush2.bf16.msra.mxu0 %v1708
    %2374 = vmatprep.subr.bf16.mxu0 0
    %2375 = vmatpush2.bf16.msra.mxu0 %v1707
    %2376 = vmatprep.subr.bf16.mxu0 0
    %2377 = vmatpush2.bf16.msra.mxu0 %v1706
    %2378 = vmatprep.mubr.bf16.mxu0 %v362
    %2379 = vmatmul.mubr.bf16.gmra.mxu0 %v361
    %v2380 = vpop.f32.mrf.mxu0
    %v2381 = vadd.f32 %v2341, %v2380
    %v2382 = vpop.f32.mrf.mxu0
    %v2383 = vpop.f32.mrf.mxu0
    %v2384 = vpop.f32.mrf.mxu0
    %2385 = vdwg.mxu0
    %v2386 = vmax.f32 %v2381, 0.0
    %v2387 = vpack.c.bf16 %v2386, %v2386
    %v2388 = vld [vmem:[#allocation7] sm:$0xf]
    %v2389 = vld [vmem:[#allocation7 + $0x4] sm:$0xf]
    %v2390 = vld [vmem:[#allocation7 + $0x8] sm:$0xf]
    %v2391 = vld [vmem:[#allocation7 + $0xc] sm:$0xf]
    %v2392 = vld [vmem:[#allocation7 + $0x10] sm:$0xf]
    %v2393 = vld [vmem:[#allocation7 + $0x14] sm:$0xf]
    %v2394 = vld [vmem:[#allocation7 + $0x18] sm:$0xf]
    %v2395 = vld [vmem:[#allocation7 + $0x1c] sm:$0xf]
    %v2396 = vld [vmem:[#allocation7 + $0x20] sm:$0xf]
    %v2397 = vld [vmem:[#allocation7 + $0x24] sm:$0xf]
    %v2398 = vld [vmem:[#allocation7 + $0x28] sm:$0xf]
    %v2399 = vld [vmem:[#allocation7 + $0x2c] sm:$0xf]
    %v2400 = vld [vmem:[#allocation7 + $0x30] sm:$0xf]
    %v2401 = vld [vmem:[#allocation7 + $0x34] sm:$0xf]
    %v2402 = vld [vmem:[#allocation7 + $0x38] sm:$0xf]
    %v2403 = vld [vmem:[#allocation7 + $0x3c] sm:$0xf]
    %v2404 = vld [vmem:[%s4] sm:$0x1]
    %v2406 = vlaneseq
    %v2407 = vshrl.u32 %v2406, 7
    %v2408 = vsub.s32 0, %v2407
    %v2409 = vrot.slane %v2404, %v2408
    %v2427 = vunpack.c.l.b16 %v2388
    %v2428 = vunpack.c.l.b16 %v2389
    %v2429 = vunpack.c.l.b16 %v2390
    %v2430 = vunpack.c.l.b16 %v2391
    %v2431 = vunpack.c.l.b16 %v2392
    %v2432 = vunpack.c.l.b16 %v2393
    %v2433 = vunpack.c.l.b16 %v2394
    %v2434 = vunpack.c.l.b16 %v2395
    %v2435 = vunpack.c.l.b16 %v2396
    %v2436 = vunpack.c.l.b16 %v2397
    %v2437 = vunpack.c.l.b16 %v2398
    %v2438 = vunpack.c.l.b16 %v2399
    %v2439 = vunpack.c.l.b16 %v2400
    %v2440 = vunpack.c.l.b16 %v2401
    %v2441 = vunpack.c.l.b16 %v2402
    %v2442 = vunpack.c.l.b16 %v2403
    %v2443 = vpack.c.b16 %v2428, %v2427
    %v2444 = vpack.c.b16 %v2430, %v2429
    %v2445 = vpack.c.b16 %v2432, %v2431
    %v2446 = vpack.c.b16 %v2434, %v2433
    %v2447 = vpack.c.b16 %v2436, %v2435
    %v2448 = vpack.c.b16 %v2438, %v2437
    %v2449 = vpack.c.b16 %v2440, %v2439
    %v2450 = vpack.c.b16 %v2442, %v2441
    %2459 = vmatprep.subr.bf16.mxu0 0
    %2460 = vmatpush1.bf16.msra.mxu0 %v2450
    %2461 = vmatprep.subr.bf16.mxu0 0
    %2462 = vmatpush1.bf16.msra.mxu0 %v2449
    %2463 = vmatprep.subr.bf16.mxu0 0
    %2464 = vmatpush1.bf16.msra.mxu0 %v2448
    %2465 = vmatprep.subr.bf16.mxu0 0
    %2466 = vmatpush1.bf16.msra.mxu0 %v2447
    %2467 = vmatprep.subr.bf16.mxu0 0
    %2468 = vmatpush1.bf16.msra.mxu0 %v2446
    %2469 = vmatprep.subr.bf16.mxu0 0
    %2470 = vmatpush1.bf16.msra.mxu0 %v2445
    %2471 = vmatprep.subr.bf16.mxu0 0
    %2472 = vmatpush1.bf16.msra.mxu0 %v2444
    %2473 = vmatprep.subr.bf16.mxu0 0
    %2474 = vmatpush1.bf16.msra.mxu0 %v2443
    %2475 = vmatprep.subr.bf16.mxu0 0
    %2476 = vmatpush2.bf16.msra.mxu0 0
    %2477 = vmatprep.subr.bf16.mxu0 0
    %2478 = vmatpush2.bf16.msra.mxu0 0
    %2479 = vmatprep.subr.bf16.mxu0 0
    %2480 = vmatpush2.bf16.msra.mxu0 0
    %2481 = vmatprep.subr.bf16.mxu0 0
    %2482 = vmatpush2.bf16.msra.mxu0 0
    %2483 = vmatprep.subr.bf16.mxu0 0
    %2484 = vmatpush2.bf16.msra.mxu0 0
    %2485 = vmatprep.subr.bf16.mxu0 0
    %2486 = vmatpush2.bf16.msra.mxu0 0
    %2487 = vmatprep.subr.bf16.mxu0 0
    %2488 = vmatpush2.bf16.msra.mxu0 0
    %2489 = vmatprep.subr.bf16.mxu0 0
    %2490 = vmatpush2.bf16.msra.mxu0 0
    %2491 = vmatprep.mubr.bf16.mxu0 0
    %2492 = vmatmul.mubr.bf16.gmra.mxu0 %v2387
    %v2493 = vpop.f32.mrf.mxu0
    %v2494 = vadd.f32 %v2409, %v2493
    %v2495 = vpop.f32.mrf.mxu0
    %v2496 = vpop.f32.mrf.mxu0
    %v2497 = vpop.f32.mrf.mxu0
    %2498 = vdwg.mxu0
    %v2499 = vmax.f32 %v2494, 0.0
    %v2500 = vpack.c.bf16 %v2499, %v2499
    %v2501 = vld [vmem:[#allocation8] sm:$0xf]
    %v2502 = vld [vmem:[#allocation8 + $0x4] sm:$0xf]
    %v2503 = vld [vmem:[#allocation8 + $0x8] sm:$0xf]
    %v2504 = vld [vmem:[#allocation8 + $0xc] sm:$0xf]
    %v2505 = vld [vmem:[#allocation8 + $0x10] sm:$0xf]
    %v2506 = vld [vmem:[#allocation8 + $0x14] sm:$0xf]
    %v2507 = vld [vmem:[#allocation8 + $0x18] sm:$0xf]
    %v2508 = vld [vmem:[#allocation8 + $0x1c] sm:$0xf]
    %v2509 = vld [vmem:[#allocation8 + $0x20] sm:$0xf]
    %v2510 = vld [vmem:[#allocation8 + $0x24] sm:$0xf]
    %v2511 = vld [vmem:[#allocation8 + $0x28] sm:$0xf]
    %v2512 = vld [vmem:[#allocation8 + $0x2c] sm:$0xf]
    %v2513 = vld [vmem:[#allocation8 + $0x30] sm:$0xf]
    %v2514 = vld [vmem:[#allocation8 + $0x34] sm:$0xf]
    %v2515 = vld [vmem:[#allocation8 + $0x38] sm:$0xf]
    %v2516 = vld [vmem:[#allocation8 + $0x3c] sm:$0xf]
    %v2517 = vld [vmem:[%s6] sm:$0x1]
    %v2519 = vlaneseq
    %v2520 = vshrl.u32 %v2519, 7
    %v2521 = vsub.s32 0, %v2520
    %v2522 = vrot.slane %v2517, %v2521
    %v2540 = vunpack.c.l.b16 %v2501
    %v2541 = vunpack.c.l.b16 %v2502
    %v2542 = vunpack.c.l.b16 %v2503
    %v2543 = vunpack.c.l.b16 %v2504
    %v2544 = vunpack.c.l.b16 %v2505
    %v2545 = vunpack.c.l.b16 %v2506
    %v2546 = vunpack.c.l.b16 %v2507
    %v2547 = vunpack.c.l.b16 %v2508
    %v2548 = vunpack.c.l.b16 %v2509
    %v2549 = vunpack.c.l.b16 %v2510
    %v2550 = vunpack.c.l.b16 %v2511
    %v2551 = vunpack.c.l.b16 %v2512
    %v2552 = vunpack.c.l.b16 %v2513
    %v2553 = vunpack.c.l.b16 %v2514
    %v2554 = vunpack.c.l.b16 %v2515
    %v2555 = vunpack.c.l.b16 %v2516
    %v2556 = vpack.c.b16 %v2541, %v2540
    %v2557 = vpack.c.b16 %v2543, %v2542
    %v2558 = vpack.c.b16 %v2545, %v2544
    %v2559 = vpack.c.b16 %v2547, %v2546
    %v2560 = vpack.c.b16 %v2549, %v2548
    %v2561 = vpack.c.b16 %v2551, %v2550
    %v2562 = vpack.c.b16 %v2553, %v2552
    %v2563 = vpack.c.b16 %v2555, %v2554
    %2572 = vmatprep.subr.bf16.mxu0 0
    %2573 = vmatpush1.bf16.msra.mxu0 %v2563
    %2574 = vmatprep.subr.bf16.mxu0 0
    %2575 = vmatpush1.bf16.msra.mxu0 %v2562
    %2576 = vmatprep.subr.bf16.mxu0 0
    %2577 = vmatpush1.bf16.msra.mxu0 %v2561
    %2578 = vmatprep.subr.bf16.mxu0 0
    %2579 = vmatpush1.bf16.msra.mxu0 %v2560
    %2580 = vmatprep.subr.bf16.mxu0 0
    %2581 = vmatpush1.bf16.msra.mxu0 %v2559
    %2582 = vmatprep.subr.bf16.mxu0 0
    %2583 = vmatpush1.bf16.msra.mxu0 %v2558
    %2584 = vmatprep.subr.bf16.mxu0 0
    %2585 = vmatpush1.bf16.msra.mxu0 %v2557
    %2586 = vmatprep.subr.bf16.mxu0 0
    %2587 = vmatpush1.bf16.msra.mxu0 %v2556
    %2588 = vmatprep.subr.bf16.mxu0 0
    %2589 = vmatpush2.bf16.msra.mxu0 0
    %2590 = vmatprep.subr.bf16.mxu0 0
    %2591 = vmatpush2.bf16.msra.mxu0 0
    %2592 = vmatprep.subr.bf16.mxu0 0
    %2593 = vmatpush2.bf16.msra.mxu0 0
    %2594 = vmatprep.subr.bf16.mxu0 0
    %2595 = vmatpush2.bf16.msra.mxu0 0
    %2596 = vmatprep.subr.bf16.mxu0 0
    %2597 = vmatpush2.bf16.msra.mxu0 0
    %2598 = vmatprep.subr.bf16.mxu0 0
    %2599 = vmatpush2.bf16.msra.mxu0 0
    %2600 = vmatprep.subr.bf16.mxu0 0
    %2601 = vmatpush2.bf16.msra.mxu0 0
    %2602 = vmatprep.subr.bf16.mxu0 0
    %2603 = vmatpush2.bf16.msra.mxu0 0
    %2604 = vmatprep.mubr.bf16.mxu0 0
    %2605 = vmatmul.mubr.bf16.gmra.mxu0 %v2500
    %v2606 = vpop.f32.mrf.mxu0
    %v2607 = vadd.f32 %v2522, %v2606
    %v2608 = vpop.f32.mrf.mxu0
    %v2609 = vpop.f32.mrf.mxu0
    %v2610 = vpop.f32.mrf.mxu0
    %2611 = vdwg.mxu0
    %v2612 = vmax.f32 %v2607, 0.0
    %v2613 = vpack.c.bf16 %v2612, %v2612
    %v2614 = vld [vmem:[#allocation10] sm:$0xf]
    %v2615 = vld [vmem:[#allocation10 + $0x4] sm:$0xf]
    %v2616 = vld [vmem:[#allocation10 + $0x8] sm:$0xf]
    %v2617 = vld [vmem:[#allocation10 + $0xc] sm:$0xf]
    %v2618 = vld [vmem:[#allocation10 + $0x10] sm:$0xf]
    %v2619 = vld [vmem:[#allocation10 + $0x14] sm:$0xf]
    %v2620 = vld [vmem:[#allocation10 + $0x18] sm:$0xf]
    %v2621 = vld [vmem:[#allocation10 + $0x1c] sm:$0xf]
    %v2622 = vld [vmem:[#allocation10 + $0x20] sm:$0xf]
    %v2623 = vld [vmem:[#allocation10 + $0x24] sm:$0xf]
    %v2624 = vld [vmem:[#allocation10 + $0x28] sm:$0xf]
    %v2625 = vld [vmem:[#allocation10 + $0x2c] sm:$0xf]
    %v2626 = vld [vmem:[#allocation10 + $0x30] sm:$0xf]
    %v2627 = vld [vmem:[#allocation10 + $0x34] sm:$0xf]
    %v2628 = vld [vmem:[#allocation10 + $0x38] sm:$0xf]
    %v2629 = vld [vmem:[#allocation10 + $0x3c] sm:$0xf]
    %v2630 = vld [vmem:[%s8] sm:$0x1]
    %v2632 = vlaneseq
    %v2633 = vshrl.u32 %v2632, 7
    %v2634 = vsub.s32 0, %v2633
    %v2635 = vrot.slane %v2630, %v2634
    %v2653 = vunpack.c.l.b16 %v2614
    %v2654 = vunpack.c.l.b16 %v2615
    %v2655 = vunpack.c.l.b16 %v2616
    %v2656 = vunpack.c.l.b16 %v2617
    %v2657 = vunpack.c.l.b16 %v2618
    %v2658 = vunpack.c.l.b16 %v2619
    %v2659 = vunpack.c.l.b16 %v2620
    %v2660 = vunpack.c.l.b16 %v2621
    %v2661 = vunpack.c.l.b16 %v2622
    %v2662 = vunpack.c.l.b16 %v2623
    %v2663 = vunpack.c.l.b16 %v2624
    %v2664 = vunpack.c.l.b16 %v2625
    %v2665 = vunpack.c.l.b16 %v2626
    %v2666 = vunpack.c.l.b16 %v2627
    %v2667 = vunpack.c.l.b16 %v2628
    %v2668 = vunpack.c.l.b16 %v2629
    %v2669 = vpack.c.b16 %v2654, %v2653
    %v2670 = vpack.c.b16 %v2656, %v2655
    %v2671 = vpack.c.b16 %v2658, %v2657
    %v2672 = vpack.c.b16 %v2660, %v2659
    %v2673 = vpack.c.b16 %v2662, %v2661
    %v2674 = vpack.c.b16 %v2664, %v2663
    %v2675 = vpack.c.b16 %v2666, %v2665
    %v2676 = vpack.c.b16 %v2668, %v2667
    %2685 = vmatprep.subr.bf16.mxu0 0
    %2686 = vmatpush1.bf16.msra.mxu0 %v2676
    %2687 = vmatprep.subr.bf16.mxu0 0
    %2688 = vmatpush1.bf16.msra.mxu0 %v2675
    %2689 = vmatprep.subr.bf16.mxu0 0
    %2690 = vmatpush1.bf16.msra.mxu0 %v2674
    %2691 = vmatprep.subr.bf16.mxu0 0
    %2692 = vmatpush1.bf16.msra.mxu0 %v2673
    %2693 = vmatprep.subr.bf16.mxu0 0
    %2694 = vmatpush1.bf16.msra.mxu0 %v2672
    %2695 = vmatprep.subr.bf16.mxu0 0
    %2696 = vmatpush1.bf16.msra.mxu0 %v2671
    %2697 = vmatprep.subr.bf16.mxu0 0
    %2698 = vmatpush1.bf16.msra.mxu0 %v2670
    %2699 = vmatprep.subr.bf16.mxu0 0
    %2700 = vmatpush1.bf16.msra.mxu0 %v2669
    %2701 = vmatprep.subr.bf16.mxu0 0
    %2702 = vmatpush2.bf16.msra.mxu0 0
    %2703 = vmatprep.subr.bf16.mxu0 0
    %2704 = vmatpush2.bf16.msra.mxu0 0
    %2705 = vmatprep.subr.bf16.mxu0 0
    %2706 = vmatpush2.bf16.msra.mxu0 0
    %2707 = vmatprep.subr.bf16.mxu0 0
    %2708 = vmatpush2.bf16.msra.mxu0 0
    %2709 = vmatprep.subr.bf16.mxu0 0
    %2710 = vmatpush2.bf16.msra.mxu0 0
    %2711 = vmatprep.subr.bf16.mxu0 0
    %2712 = vmatpush2.bf16.msra.mxu0 0
    %2713 = vmatprep.subr.bf16.mxu0 0
    %2714 = vmatpush2.bf16.msra.mxu0 0
    %2715 = vmatprep.subr.bf16.mxu0 0
    %2716 = vmatpush2.bf16.msra.mxu0 0
    %2717 = vmatprep.mubr.bf16.mxu0 0
    %2718 = vmatmul.mubr.bf16.gmra.mxu0 %v2613
    %v2719 = vpop.f32.mrf.mxu0
    %v2720 = vadd.f32 %v2635, %v2719
    %v2721 = vpop.f32.mrf.mxu0
    %v2722 = vpop.f32.mrf.mxu0
    %v2723 = vpop.f32.mrf.mxu0
    %2724 = vdwg.mxu0
    %v2725 = vpack.c.bf16 %v2720, %v2720
    %v2726 = vld [vmem:[#allocation11] sm:$0xf]
    %v2727 = vld [vmem:[#allocation11 + $0x4] sm:$0xf]
    %v2728 = vld [vmem:[#allocation11 + $0x8] sm:$0xf]
    %v2729 = vld [vmem:[#allocation11 + $0xc] sm:$0xf]
    %v2730 = vld [vmem:[#allocation11 + $0x10] sm:$0xf]
    %v2731 = vld [vmem:[#allocation11 + $0x14] sm:$0xf]
    %v2732 = vld [vmem:[#allocation11 + $0x18] sm:$0xf]
    %v2733 = vld [vmem:[#allocation11 + $0x1c] sm:$0xf]
    %v2734 = vld [vmem:[#allocation11 + $0x20] sm:$0xf]
    %v2735 = vld [vmem:[#allocation11 + $0x24] sm:$0xf]
    %v2736 = vld [vmem:[#allocation11 + $0x28] sm:$0xf]
    %v2737 = vld [vmem:[#allocation11 + $0x2c] sm:$0xf]
    %v2738 = vld [vmem:[#allocation11 + $0x30] sm:$0xf]
    %v2739 = vld [vmem:[#allocation11 + $0x34] sm:$0xf]
    %v2740 = vld [vmem:[#allocation11 + $0x38] sm:$0xf]
    %v2741 = vld [vmem:[#allocation11 + $0x3c] sm:$0xf]
    %v2742 = vld [vmem:[%s10] sm:$0x1]
    %v2744 = vlaneseq
    %v2745 = vshrl.u32 %v2744, 7
    %v2746 = vsub.s32 0, %v2745
    %v2747 = vrot.slane %v2742, %v2746
    %v2765 = vunpack.c.l.b16 %v2726
    %v2766 = vunpack.c.l.b16 %v2727
    %v2767 = vunpack.c.l.b16 %v2728
    %v2768 = vunpack.c.l.b16 %v2729
    %v2769 = vunpack.c.l.b16 %v2730
    %v2770 = vunpack.c.l.b16 %v2731
    %v2771 = vunpack.c.l.b16 %v2732
    %v2772 = vunpack.c.l.b16 %v2733
    %v2773 = vunpack.c.l.b16 %v2734
    %v2774 = vunpack.c.l.b16 %v2735
    %v2775 = vunpack.c.l.b16 %v2736
    %v2776 = vunpack.c.l.b16 %v2737
    %v2777 = vunpack.c.l.b16 %v2738
    %v2778 = vunpack.c.l.b16 %v2739
    %v2779 = vunpack.c.l.b16 %v2740
    %v2780 = vunpack.c.l.b16 %v2741
    %v2781 = vpack.c.b16 %v2766, %v2765
    %v2782 = vpack.c.b16 %v2768, %v2767
    %v2783 = vpack.c.b16 %v2770, %v2769
    %v2784 = vpack.c.b16 %v2772, %v2771
    %v2785 = vpack.c.b16 %v2774, %v2773
    %v2786 = vpack.c.b16 %v2776, %v2775
    %v2787 = vpack.c.b16 %v2778, %v2777
    %v2788 = vpack.c.b16 %v2780, %v2779
    %2797 = vmatprep.subr.bf16.mxu0 0
    %2798 = vmatpush1.bf16.msra.mxu0 %v2788
    %2799 = vmatprep.subr.bf16.mxu0 0
    %2800 = vmatpush1.bf16.msra.mxu0 %v2787
    %2801 = vmatprep.subr.bf16.mxu0 0
    %2802 = vmatpush1.bf16.msra.mxu0 %v2786
    %2803 = vmatprep.subr.bf16.mxu0 0
    %2804 = vmatpush1.bf16.msra.mxu0 %v2785
    %2805 = vmatprep.subr.bf16.mxu0 0
    %2806 = vmatpush1.bf16.msra.mxu0 %v2784
    %2807 = vmatprep.subr.bf16.mxu0 0
    %2808 = vmatpush1.bf16.msra.mxu0 %v2783
    %2809 = vmatprep.subr.bf16.mxu0 0
    %2810 = vmatpush1.bf16.msra.mxu0 %v2782
    %2811 = vmatprep.subr.bf16.mxu0 0
    %2812 = vmatpush1.bf16.msra.mxu0 %v2781
    %2813 = vmatprep.subr.bf16.mxu0 0
    %2814 = vmatpush2.bf16.msra.mxu0 0
    %2815 = vmatprep.subr.bf16.mxu0 0
    %2816 = vmatpush2.bf16.msra.mxu0 0
    %2817 = vmatprep.subr.bf16.mxu0 0
    %2818 = vmatpush2.bf16.msra.mxu0 0
    %2819 = vmatprep.subr.bf16.mxu0 0
    %2820 = vmatpush2.bf16.msra.mxu0 0
    %2821 = vmatprep.subr.bf16.mxu0 0
    %2822 = vmatpush2.bf16.msra.mxu0 0
    %2823 = vmatprep.subr.bf16.mxu0 0
    %2824 = vmatpush2.bf16.msra.mxu0 0
    %2825 = vmatprep.subr.bf16.mxu0 0
    %2826 = vmatpush2.bf16.msra.mxu0 0
    %2827 = vmatprep.subr.bf16.mxu0 0
    %2828 = vmatpush2.bf16.msra.mxu0 0
    %2829 = vmatprep.mubr.bf16.mxu0 0
    %2830 = vmatmul.mubr.bf16.gmra.mxu0 %v2725
    %v2831 = vpop.f32.mrf.mxu0
    %v2832 = vadd.f32 %v2747, %v2831
    %v2833 = vpop.f32.mrf.mxu0
    %v2834 = vpop.f32.mrf.mxu0
    %v2835 = vpop.f32.mrf.mxu0
    %2836 = vdwg.mxu0
    %v2837 = vmax.f32 %v2832, 0.0
    %v2838 = vpack.c.bf16 %v2837, %v2837
    %v2839 = vld [vmem:[#allocation13] sm:$0xf]
    %v2840 = vld [vmem:[#allocation13 + $0x4] sm:$0xf]
    %v2841 = vld [vmem:[#allocation13 + $0x8] sm:$0xf]
    %v2842 = vld [vmem:[#allocation13 + $0xc] sm:$0xf]
    %v2843 = vld [vmem:[#allocation13 + $0x10] sm:$0xf]
    %v2844 = vld [vmem:[#allocation13 + $0x14] sm:$0xf]
    %v2845 = vld [vmem:[#allocation13 + $0x18] sm:$0xf]
    %v2846 = vld [vmem:[#allocation13 + $0x1c] sm:$0xf]
    %v2847 = vld [vmem:[#allocation13 + $0x20] sm:$0xf]
    %v2848 = vld [vmem:[#allocation13 + $0x24] sm:$0xf]
    %v2849 = vld [vmem:[#allocation13 + $0x28] sm:$0xf]
    %v2850 = vld [vmem:[#allocation13 + $0x2c] sm:$0xf]
    %v2851 = vld [vmem:[#allocation13 + $0x30] sm:$0xf]
    %v2852 = vld [vmem:[#allocation13 + $0x34] sm:$0xf]
    %v2853 = vld [vmem:[#allocation13 + $0x38] sm:$0xf]
    %v2854 = vld [vmem:[#allocation13 + $0x3c] sm:$0xf]
    %v2855 = vld [vmem:[#allocation14] sm:$0x1]
    %v2857 = vlaneseq
    %v2858 = vshrl.u32 %v2857, 7
    %v2859 = vsub.s32 0, %v2858
    %v2860 = vrot.slane %v2855, %v2859
    %v2878 = vunpack.c.l.b16 %v2839
    %v2879 = vunpack.c.l.b16 %v2840
    %v2880 = vunpack.c.l.b16 %v2841
    %v2881 = vunpack.c.l.b16 %v2842
    %v2882 = vunpack.c.l.b16 %v2843
    %v2883 = vunpack.c.l.b16 %v2844
    %v2884 = vunpack.c.l.b16 %v2845
    %v2885 = vunpack.c.l.b16 %v2846
    %v2886 = vunpack.c.l.b16 %v2847
    %v2887 = vunpack.c.l.b16 %v2848
    %v2888 = vunpack.c.l.b16 %v2849
    %v2889 = vunpack.c.l.b16 %v2850
    %v2890 = vunpack.c.l.b16 %v2851
    %v2891 = vunpack.c.l.b16 %v2852
    %v2892 = vunpack.c.l.b16 %v2853
    %v2893 = vunpack.c.l.b16 %v2854
    %v2894 = vpack.c.b16 %v2879, %v2878
    %v2895 = vpack.c.b16 %v2881, %v2880
    %v2896 = vpack.c.b16 %v2883, %v2882
    %v2897 = vpack.c.b16 %v2885, %v2884
    %v2898 = vpack.c.b16 %v2887, %v2886
    %v2899 = vpack.c.b16 %v2889, %v2888
    %v2900 = vpack.c.b16 %v2891, %v2890
    %v2901 = vpack.c.b16 %v2893, %v2892
    %2910 = vmatprep.subr.bf16.mxu0 0
    %2911 = vmatpush1.bf16.msra.mxu0 %v2901
    %2912 = vmatprep.subr.bf16.mxu0 0
    %2913 = vmatpush1.bf16.msra.mxu0 %v2900
    %2914 = vmatprep.subr.bf16.mxu0 0
    %2915 = vmatpush1.bf16.msra.mxu0 %v2899
    %2916 = vmatprep.subr.bf16.mxu0 0
    %2917 = vmatpush1.bf16.msra.mxu0 %v2898
    %2918 = vmatprep.subr.bf16.mxu0 0
    %2919 = vmatpush1.bf16.msra.mxu0 %v2897
    %2920 = vmatprep.subr.bf16.mxu0 0
    %2921 = vmatpush1.bf16.msra.mxu0 %v2896
    %2922 = vmatprep.subr.bf16.mxu0 0
    %2923 = vmatpush1.bf16.msra.mxu0 %v2895
    %2924 = vmatprep.subr.bf16.mxu0 0
    %2925 = vmatpush1.bf16.msra.mxu0 %v2894
    %2926 = vmatprep.subr.bf16.mxu0 0
    %2927 = vmatpush2.bf16.msra.mxu0 0
    %2928 = vmatprep.subr.bf16.mxu0 0
    %2929 = vmatpush2.bf16.msra.mxu0 0
    %2930 = vmatprep.subr.bf16.mxu0 0
    %2931 = vmatpush2.bf16.msra.mxu0 0
    %2932 = vmatprep.subr.bf16.mxu0 0
    %2933 = vmatpush2.bf16.msra.mxu0 0
    %2934 = vmatprep.subr.bf16.mxu0 0
    %2935 = vmatpush2.bf16.msra.mxu0 0
    %2936 = vmatprep.subr.bf16.mxu0 0
    %2937 = vmatpush2.bf16.msra.mxu0 0
    %2938 = vmatprep.subr.bf16.mxu0 0
    %2939 = vmatpush2.bf16.msra.mxu0 0
    %2940 = vmatprep.subr.bf16.mxu0 0
    %2941 = vmatpush2.bf16.msra.mxu0 0
    %2942 = vmatprep.mubr.bf16.mxu0 0
    %2943 = vmatmul.mubr.bf16.gmra.mxu0 %v2838
    %v2944 = vpop.f32.mrf.mxu0
    %v2945 = vadd.f32 %v2860, %v2944
    %v2946 = vpop.f32.mrf.mxu0
    %v2947 = vpop.f32.mrf.mxu0
    %v2948 = vpop.f32.mrf.mxu0
    %2949 = vdwg.mxu0
    %v2950 = vmax.f32 %v2945, 0.0
    %v2951 = vpack.c.bf16 %v2950, %v2950
    %v2952 = vld [vmem:[#allocation16] sm:$0xf]
    %v2953 = vld [vmem:[#allocation16 + $0x4] sm:$0xf]
    %v2954 = vld [vmem:[#allocation16 + $0x8] sm:$0xf]
    %v2955 = vld [vmem:[#allocation16 + $0xc] sm:$0xf]
    %v2956 = vld [vmem:[#allocation16 + $0x10] sm:$0xf]
    %v2957 = vld [vmem:[#allocation16 + $0x14] sm:$0xf]
    %v2958 = vld [vmem:[#allocation16 + $0x18] sm:$0xf]
    %v2959 = vld [vmem:[#allocation16 + $0x1c] sm:$0xf]
    %v2960 = vld [vmem:[#allocation16 + $0x20] sm:$0xf]
    %v2961 = vld [vmem:[#allocation16 + $0x24] sm:$0xf]
    %v2962 = vld [vmem:[#allocation16 + $0x28] sm:$0xf]
    %v2963 = vld [vmem:[#allocation16 + $0x2c] sm:$0xf]
    %v2964 = vld [vmem:[#allocation16 + $0x30] sm:$0xf]
    %v2965 = vld [vmem:[#allocation16 + $0x34] sm:$0xf]
    %v2966 = vld [vmem:[#allocation16 + $0x38] sm:$0xf]
    %v2967 = vld [vmem:[#allocation16 + $0x3c] sm:$0xf]
    %v2968 = vld [vmem:[#allocation17] sm:$0x1]
    %v2970 = vlaneseq
    %v2971 = vshrl.u32 %v2970, 7
    %v2972 = vsub.s32 0, %v2971
    %v2973 = vrot.slane %v2968, %v2972
    %v2991 = vunpack.c.l.b16 %v2952
    %v2992 = vunpack.c.l.b16 %v2953
    %v2993 = vunpack.c.l.b16 %v2954
    %v2994 = vunpack.c.l.b16 %v2955
    %v2995 = vunpack.c.l.b16 %v2956
    %v2996 = vunpack.c.l.b16 %v2957
    %v2997 = vunpack.c.l.b16 %v2958
    %v2998 = vunpack.c.l.b16 %v2959
    %v2999 = vunpack.c.l.b16 %v2960
    %v3000 = vunpack.c.l.b16 %v2961
    %v3001 = vunpack.c.l.b16 %v2962
    %v3002 = vunpack.c.l.b16 %v2963
    %v3003 = vunpack.c.l.b16 %v2964
    %v3004 = vunpack.c.l.b16 %v2965
    %v3005 = vunpack.c.l.b16 %v2966
    %v3006 = vunpack.c.l.b16 %v2967
    %v3007 = vpack.c.b16 %v2992, %v2991
    %v3008 = vpack.c.b16 %v2994, %v2993
    %v3009 = vpack.c.b16 %v2996, %v2995
    %v3010 = vpack.c.b16 %v2998, %v2997
    %v3011 = vpack.c.b16 %v3000, %v2999
    %v3012 = vpack.c.b16 %v3002, %v3001
    %v3013 = vpack.c.b16 %v3004, %v3003
    %v3014 = vpack.c.b16 %v3006, %v3005
    %3023 = vmatprep.subr.bf16.mxu0 0
    %3024 = vmatpush1.bf16.msra.mxu0 %v3014
    %3025 = vmatprep.subr.bf16.mxu0 0
    %3026 = vmatpush1.bf16.msra.mxu0 %v3013
    %3027 = vmatprep.subr.bf16.mxu0 0
    %3028 = vmatpush1.bf16.msra.mxu0 %v3012
    %3029 = vmatprep.subr.bf16.mxu0 0
    %3030 = vmatpush1.bf16.msra.mxu0 %v3011
    %3031 = vmatprep.subr.bf16.mxu0 0
    %3032 = vmatpush1.bf16.msra.mxu0 %v3010
    %3033 = vmatprep.subr.bf16.mxu0 0
    %3034 = vmatpush1.bf16.msra.mxu0 %v3009
    %3035 = vmatprep.subr.bf16.mxu0 0
    %3036 = vmatpush1.bf16.msra.mxu0 %v3008
    %3037 = vmatprep.subr.bf16.mxu0 0
    %3038 = vmatpush1.bf16.msra.mxu0 %v3007
    %3039 = vmatprep.subr.bf16.mxu0 0
    %3040 = vmatpush2.bf16.msra.mxu0 0
    %3041 = vmatprep.subr.bf16.mxu0 0
    %3042 = vmatpush2.bf16.msra.mxu0 0
    %3043 = vmatprep.subr.bf16.mxu0 0
    %3044 = vmatpush2.bf16.msra.mxu0 0
    %3045 = vmatprep.subr.bf16.mxu0 0
    %3046 = vmatpush2.bf16.msra.mxu0 0
    %3047 = vmatprep.subr.bf16.mxu0 0
    %3048 = vmatpush2.bf16.msra.mxu0 0
    %3049 = vmatprep.subr.bf16.mxu0 0
    %3050 = vmatpush2.bf16.msra.mxu0 0
    %3051 = vmatprep.subr.bf16.mxu0 0
    %3052 = vmatpush2.bf16.msra.mxu0 0
    %3053 = vmatprep.subr.bf16.mxu0 0
    %3054 = vmatpush2.bf16.msra.mxu0 0
    %3055 = vmatprep.mubr.bf16.mxu0 0
    %3056 = vmatmul.mubr.bf16.gmra.mxu0 %v2951
    %v3057 = vpop.f32.mrf.mxu0
    %v3058 = vadd.f32 %v2973, %v3057
    %v3059 = vpop.f32.mrf.mxu0
    %v3060 = vpop.f32.mrf.mxu0
    %v3061 = vpop.f32.mrf.mxu0
    %3062 = vdwg.mxu0
    %v3063 = vmax.f32 %v3058, 0.0
    %v3064 = vpack.c.bf16 %v3063, %v3063
    %v3065 = vld [vmem:[#allocation19] sm:$0xff]
    %v3066 = vld [vmem:[#allocation19 + $0x8] sm:$0xff]
    %v3067 = vld [vmem:[#allocation19 + $0x10] sm:$0xff]
    %v3068 = vld [vmem:[#allocation19 + $0x18] sm:$0xff]
    %v3069 = vld [vmem:[#allocation19 + $0x20] sm:$0xff]
    %v3070 = vld [vmem:[#allocation19 + $0x28] sm:$0xff]
    %v3071 = vld [vmem:[#allocation19 + $0x30] sm:$0xff]
    %v3072 = vld [vmem:[#allocation19 + $0x38] sm:$0xff]
    %v3073 = vld [vmem:[#allocation19 + $0x40] sm:$0xff]
    %v3074 = vld [vmem:[#allocation19 + $0x48] sm:$0xff]
    %v3075 = vld [vmem:[#allocation19 + $0x50] sm:$0xff]
    %v3076 = vld [vmem:[#allocation19 + $0x58] sm:$0xff]
    %v3077 = vld [vmem:[#allocation19 + $0x60] sm:$0xff]
    %v3078 = vld [vmem:[#allocation19 + $0x68] sm:$0xff]
    %v3079 = vld [vmem:[#allocation19 + $0x70] sm:$0xff]
    %v3080 = vld [vmem:[#allocation19 + $0x78] sm:$0xff]
    %v3081 = vld [vmem:[#allocation19 + $0x80] sm:$0xff]
    %v3082 = vld [vmem:[#allocation19 + $0x88] sm:$0xff]
    %v3083 = vld [vmem:[#allocation19 + $0x90] sm:$0xff]
    %v3084 = vld [vmem:[#allocation19 + $0x98] sm:$0xff]
    %v3085 = vld [vmem:[#allocation19 + $0xa0] sm:$0xff]
    %v3086 = vld [vmem:[#allocation19 + $0xa8] sm:$0xff]
    %v3087 = vld [vmem:[#allocation19 + $0xb0] sm:$0xff]
    %v3088 = vld [vmem:[#allocation19 + $0xb8] sm:$0xff]
    %v3089 = vld [vmem:[#allocation19 + $0xc0] sm:$0xff]
    %v3090 = vld [vmem:[#allocation19 + $0xc8] sm:$0xff]
    %v3091 = vld [vmem:[#allocation19 + $0xd0] sm:$0xff]
    %v3092 = vld [vmem:[#allocation19 + $0xd8] sm:$0xff]
    %v3093 = vld [vmem:[#allocation19 + $0xe0] sm:$0xff]
    %v3094 = vld [vmem:[#allocation19 + $0xe8] sm:$0xff]
    %v3095 = vld [vmem:[#allocation19 + $0xf0] sm:$0xff]
    %v3096 = vld [vmem:[#allocation19 + $0xf8] sm:$0xff]
    %v3097 = vld [vmem:[#allocation19 + $0x100] sm:$0xff]
    %v3098 = vld [vmem:[#allocation19 + $0x108] sm:$0xff]
    %v3099 = vld [vmem:[#allocation19 + $0x110] sm:$0xff]
    %v3100 = vld [vmem:[#allocation19 + $0x118] sm:$0xff]
    %v3101 = vld [vmem:[#allocation19 + $0x120] sm:$0xff]
    %v3102 = vld [vmem:[#allocation19 + $0x128] sm:$0xff]
    %v3103 = vld [vmem:[#allocation19 + $0x130] sm:$0xff]
    %v3104 = vld [vmem:[#allocation19 + $0x138] sm:$0xff]
    %v3105 = vld [vmem:[#allocation19 + $0x140] sm:$0xff]
    %v3106 = vld [vmem:[#allocation19 + $0x148] sm:$0xff]
    %v3107 = vld [vmem:[#allocation19 + $0x150] sm:$0xff]
    %v3108 = vld [vmem:[#allocation19 + $0x158] sm:$0xff]
    %v3109 = vld [vmem:[#allocation19 + $0x160] sm:$0xff]
    %v3110 = vld [vmem:[#allocation19 + $0x168] sm:$0xff]
    %v3111 = vld [vmem:[#allocation19 + $0x170] sm:$0xff]
    %v3112 = vld [vmem:[#allocation19 + $0x178] sm:$0xff]
    %v3113 = vld [vmem:[#allocation19 + $0x180] sm:$0xff]
    %v3114 = vld [vmem:[#allocation19 + $0x188] sm:$0xff]
    %v3115 = vld [vmem:[#allocation19 + $0x190] sm:$0xff]
    %v3116 = vld [vmem:[#allocation19 + $0x198] sm:$0xff]
    %v3117 = vld [vmem:[#allocation19 + $0x1a0] sm:$0xff]
    %v3118 = vld [vmem:[#allocation19 + $0x1a8] sm:$0xff]
    %v3119 = vld [vmem:[#allocation19 + $0x1b0] sm:$0xff]
    %v3120 = vld [vmem:[#allocation19 + $0x1b8] sm:$0xff]
    %v3121 = vld [vmem:[#allocation19 + $0x1c0] sm:$0xff]
    %v3122 = vld [vmem:[#allocation19 + $0x1c8] sm:$0xff]
    %v3123 = vld [vmem:[#allocation19 + $0x1d0] sm:$0xff]
    %v3124 = vld [vmem:[#allocation19 + $0x1d8] sm:$0xff]
    %v3125 = vld [vmem:[#allocation19 + $0x1e0] sm:$0xff]
    %v3126 = vld [vmem:[#allocation19 + $0x1e8] sm:$0xff]
    %v3127 = vld [vmem:[#allocation19 + $0x1f0] sm:$0xff]
    %v3128 = vld [vmem:[#allocation19 + $0x1f8] sm:$0xff]
    %v3129 = vld [vmem:[#allocation19 + $0x200] sm:$0xff]
    %v3130 = vld [vmem:[#allocation19 + $0x208] sm:$0xff]
    %v3131 = vld [vmem:[#allocation19 + $0x210] sm:$0xff]
    %v3132 = vld [vmem:[#allocation19 + $0x218] sm:$0xff]
    %v3133 = vld [vmem:[#allocation19 + $0x220] sm:$0xff]
    %v3134 = vld [vmem:[#allocation19 + $0x228] sm:$0xff]
    %v3135 = vld [vmem:[#allocation19 + $0x230] sm:$0xff]
    %v3136 = vld [vmem:[#allocation19 + $0x238] sm:$0xff]
    %v3137 = vld [vmem:[#allocation19 + $0x240] sm:$0xff]
    %v3138 = vld [vmem:[#allocation19 + $0x248] sm:$0xff]
    %v3139 = vld [vmem:[#allocation19 + $0x250] sm:$0xff]
    %v3140 = vld [vmem:[#allocation19 + $0x258] sm:$0xff]
    %v3141 = vld [vmem:[#allocation19 + $0x260] sm:$0xff]
    %v3142 = vld [vmem:[#allocation19 + $0x268] sm:$0xff]
    %v3143 = vld [vmem:[#allocation19 + $0x270] sm:$0xff]
    %v3144 = vld [vmem:[#allocation19 + $0x278] sm:$0xff]
    %v3145 = vld [vmem:[#allocation19 + $0x280] sm:$0xff]
    %v3146 = vld [vmem:[#allocation19 + $0x288] sm:$0xff]
    %v3147 = vld [vmem:[#allocation19 + $0x290] sm:$0xff]
    %v3148 = vld [vmem:[#allocation19 + $0x298] sm:$0xff]
    %v3149 = vld [vmem:[#allocation19 + $0x2a0] sm:$0xff]
    %v3150 = vld [vmem:[#allocation19 + $0x2a8] sm:$0xff]
    %v3151 = vld [vmem:[#allocation19 + $0x2b0] sm:$0xff]
    %v3152 = vld [vmem:[#allocation19 + $0x2b8] sm:$0xff]
    %v3153 = vld [vmem:[#allocation19 + $0x2c0] sm:$0xff]
    %v3154 = vld [vmem:[#allocation19 + $0x2c8] sm:$0xff]
    %v3155 = vld [vmem:[#allocation19 + $0x2d0] sm:$0xff]
    %v3156 = vld [vmem:[#allocation19 + $0x2d8] sm:$0xff]
    %v3157 = vld [vmem:[#allocation19 + $0x2e0] sm:$0xff]
    %v3158 = vld [vmem:[#allocation19 + $0x2e8] sm:$0xff]
    %v3159 = vld [vmem:[#allocation19 + $0x2f0] sm:$0xff]
    %v3160 = vld [vmem:[#allocation19 + $0x2f8] sm:$0xff]
    %v3161 = vld [vmem:[#allocation19 + $0x300] sm:$0xff]
    %v3162 = vld [vmem:[#allocation19 + $0x308] sm:$0xff]
    %v3163 = vld [vmem:[#allocation19 + $0x310] sm:$0xff]
    %v3164 = vld [vmem:[#allocation19 + $0x318] sm:$0xff]
    %v3165 = vld [vmem:[#allocation19 + $0x320] sm:$0xff]
    %v3166 = vld [vmem:[#allocation19 + $0x328] sm:$0xff]
    %v3167 = vld [vmem:[#allocation19 + $0x330] sm:$0xff]
    %v3168 = vld [vmem:[#allocation19 + $0x338] sm:$0xff]
    %v3169 = vld [vmem:[#allocation19 + $0x340] sm:$0xff]
    %v3170 = vld [vmem:[#allocation19 + $0x348] sm:$0xff]
    %v3171 = vld [vmem:[#allocation19 + $0x350] sm:$0xff]
    %v3172 = vld [vmem:[#allocation19 + $0x358] sm:$0xff]
    %v3173 = vld [vmem:[#allocation19 + $0x360] sm:$0xff]
    %v3174 = vld [vmem:[#allocation19 + $0x368] sm:$0xff]
    %v3175 = vld [vmem:[#allocation19 + $0x370] sm:$0xff]
    %v3176 = vld [vmem:[#allocation19 + $0x378] sm:$0xff]
    %v3177 = vld [vmem:[#allocation19 + $0x380] sm:$0xff]
    %v3178 = vld [vmem:[#allocation19 + $0x388] sm:$0xff]
    %v3179 = vld [vmem:[#allocation19 + $0x390] sm:$0xff]
    %v3180 = vld [vmem:[#allocation19 + $0x398] sm:$0xff]
    %v3181 = vld [vmem:[#allocation19 + $0x3a0] sm:$0xff]
    %v3182 = vld [vmem:[#allocation19 + $0x3a8] sm:$0xff]
    %v3183 = vld [vmem:[#allocation19 + $0x3b0] sm:$0xff]
    %v3184 = vld [vmem:[#allocation19 + $0x3b8] sm:$0xff]
    %v3185 = vld [vmem:[#allocation19 + $0x3c0] sm:$0xff]
    %v3186 = vld [vmem:[#allocation19 + $0x3c8] sm:$0xff]
    %v3187 = vld [vmem:[#allocation19 + $0x3d0] sm:$0xff]
    %v3188 = vld [vmem:[#allocation19 + $0x3d8] sm:$0xff]
    %v3189 = vld [vmem:[#allocation19 + $0x3e0] sm:$0xff]
    %v3190 = vld [vmem:[#allocation19 + $0x3e8] sm:$0xff]
    %v3191 = vld [vmem:[#allocation19 + $0x3f0] sm:$0xff]
    %v3192 = vld [vmem:[#allocation19 + $0x3f8] sm:$0xff]
    %v3193 = vld [vmem:[#allocation19 + $0x400] sm:$0xff]
    %v3194 = vld [vmem:[#allocation19 + $0x408] sm:$0xff]
    %v3195 = vld [vmem:[#allocation19 + $0x410] sm:$0xff]
    %v3196 = vld [vmem:[#allocation19 + $0x418] sm:$0xff]
    %v3197 = vld [vmem:[#allocation19 + $0x420] sm:$0xff]
    %v3198 = vld [vmem:[#allocation19 + $0x428] sm:$0xff]
    %v3199 = vld [vmem:[#allocation19 + $0x430] sm:$0xff]
    %v3200 = vld [vmem:[#allocation19 + $0x438] sm:$0xff]
    %v3201 = vld [vmem:[#allocation19 + $0x440] sm:$0xff]
    %v3202 = vld [vmem:[#allocation19 + $0x448] sm:$0xff]
    %v3203 = vld [vmem:[#allocation19 + $0x450] sm:$0xff]
    %v3204 = vld [vmem:[#allocation19 + $0x458] sm:$0xff]
    %v3205 = vld [vmem:[#allocation19 + $0x460] sm:$0xff]
    %v3206 = vld [vmem:[#allocation19 + $0x468] sm:$0xff]
    %v3207 = vld [vmem:[#allocation19 + $0x470] sm:$0xff]
    %v3208 = vld [vmem:[#allocation19 + $0x478] sm:$0xff]
    %v3209 = vld [vmem:[#allocation19 + $0x480] sm:$0xff]
    %v3210 = vld [vmem:[#allocation19 + $0x488] sm:$0xff]
    %v3211 = vld [vmem:[#allocation19 + $0x490] sm:$0xff]
    %v3212 = vld [vmem:[#allocation19 + $0x498] sm:$0xff]
    %v3213 = vld [vmem:[#allocation19 + $0x4a0] sm:$0xff]
    %v3214 = vld [vmem:[#allocation19 + $0x4a8] sm:$0xff]
    %v3215 = vld [vmem:[#allocation19 + $0x4b0] sm:$0xff]
    %v3216 = vld [vmem:[#allocation19 + $0x4b8] sm:$0xff]
    %v3217 = vld [vmem:[#allocation19 + $0x4c0] sm:$0xff]
    %v3218 = vld [vmem:[#allocation19 + $0x4c8] sm:$0xff]
    %v3219 = vld [vmem:[#allocation19 + $0x4d0] sm:$0xff]
    %v3220 = vld [vmem:[#allocation19 + $0x4d8] sm:$0xff]
    %v3221 = vld [vmem:[#allocation19 + $0x4e0] sm:$0xff]
    %v3222 = vld [vmem:[#allocation19 + $0x4e8] sm:$0xff]
    %v3223 = vld [vmem:[#allocation19 + $0x4f0] sm:$0xff]
    %v3224 = vld [vmem:[#allocation19 + $0x4f8] sm:$0xff]
    %v3225 = vld [vmem:[#allocation19 + $0x500] sm:$0xff]
    %v3226 = vld [vmem:[#allocation19 + $0x508] sm:$0xff]
    %v3227 = vld [vmem:[#allocation19 + $0x510] sm:$0xff]
    %v3228 = vld [vmem:[#allocation19 + $0x518] sm:$0xff]
    %v3229 = vld [vmem:[#allocation19 + $0x520] sm:$0xff]
    %v3230 = vld [vmem:[#allocation19 + $0x528] sm:$0xff]
    %v3231 = vld [vmem:[#allocation19 + $0x530] sm:$0xff]
    %v3232 = vld [vmem:[#allocation19 + $0x538] sm:$0xff]
    %v3233 = vld [vmem:[#allocation19 + $0x540] sm:$0xff]
    %v3234 = vld [vmem:[#allocation19 + $0x548] sm:$0xff]
    %v3235 = vld [vmem:[#allocation19 + $0x550] sm:$0xff]
    %v3236 = vld [vmem:[#allocation19 + $0x558] sm:$0xff]
    %v3237 = vld [vmem:[#allocation19 + $0x560] sm:$0xff]
    %v3238 = vld [vmem:[#allocation19 + $0x568] sm:$0xff]
    %v3239 = vld [vmem:[#allocation19 + $0x570] sm:$0xff]
    %v3240 = vld [vmem:[#allocation19 + $0x578] sm:$0xff]
    %v3241 = vld [vmem:[#allocation19 + $0x580] sm:$0xff]
    %v3242 = vld [vmem:[#allocation19 + $0x588] sm:$0xff]
    %v3243 = vld [vmem:[#allocation19 + $0x590] sm:$0xff]
    %v3244 = vld [vmem:[#allocation19 + $0x598] sm:$0xff]
    %v3245 = vld [vmem:[#allocation19 + $0x5a0] sm:$0xff]
    %v3246 = vld [vmem:[#allocation19 + $0x5a8] sm:$0xff]
    %v3247 = vld [vmem:[#allocation19 + $0x5b0] sm:$0xff]
    %v3248 = vld [vmem:[#allocation19 + $0x5b8] sm:$0xff]
    %v3249 = vld [vmem:[#allocation19 + $0x5c0] sm:$0xff]
    %v3250 = vld [vmem:[#allocation19 + $0x5c8] sm:$0xff]
    %v3251 = vld [vmem:[#allocation19 + $0x5d0] sm:$0xff]
    %v3252 = vld [vmem:[#allocation19 + $0x5d8] sm:$0xff]
    %v3253 = vld [vmem:[#allocation19 + $0x5e0] sm:$0xff]
    %v3254 = vld [vmem:[#allocation19 + $0x5e8] sm:$0xff]
    %v3255 = vld [vmem:[#allocation19 + $0x5f0] sm:$0xff]
    %v3256 = vld [vmem:[#allocation19 + $0x5f8] sm:$0xff]
    %v3257 = vld [vmem:[%s16] sm:$0xff]
    %v3258 = vld [vmem:[%s16 + $0x8] sm:$0xff]
    %v3259 = vld [vmem:[%s16 + $0x10] sm:$0xff]
    %v3263 = vlaneseq
    %v3264 = vshrl.u32 %v3263, 7
    %v3265 = vsub.s32 0, %v3264
    %v3266 = vrot.slane %v3257, %v3265
    %v3267 = vlaneseq
    %v3268 = vshrl.u32 %v3267, 7
    %v3269 = vsub.s32 1, %v3268
    %v3270 = vrot.slane %v3257, %v3269
    %v3271 = vlaneseq
    %v3272 = vshrl.u32 %v3271, 7
    %v3273 = vsub.s32 2, %v3272
    %v3274 = vrot.slane %v3257, %v3273
    %v3275 = vlaneseq
    %v3276 = vshrl.u32 %v3275, 7
    %v3277 = vsub.s32 3, %v3276
    %v3278 = vrot.slane %v3257, %v3277
    %v3279 = vlaneseq
    %v3280 = vshrl.u32 %v3279, 7
    %v3281 = vsub.s32 4, %v3280
    %v3282 = vrot.slane %v3257, %v3281
    %v3283 = vlaneseq
    %v3284 = vshrl.u32 %v3283, 7
    %v3285 = vsub.s32 5, %v3284
    %v3286 = vrot.slane %v3257, %v3285
    %v3287 = vlaneseq
    %v3288 = vshrl.u32 %v3287, 7
    %v3289 = vsub.s32 6, %v3288
    %v3290 = vrot.slane %v3257, %v3289
    %v3291 = vlaneseq
    %v3292 = vshrl.u32 %v3291, 7
    %v3293 = vsub.s32 7, %v3292
    %v3294 = vrot.slane %v3257, %v3293
    %v3295 = vlaneseq
    %v3296 = vshrl.u32 %v3295, 7
    %v3297 = vsub.s32 0, %v3296
    %v3298 = vrot.slane %v3258, %v3297
    %v3299 = vlaneseq
    %v3300 = vshrl.u32 %v3299, 7
    %v3301 = vsub.s32 1, %v3300
    %v3302 = vrot.slane %v3258, %v3301
    %v3303 = vlaneseq
    %v3304 = vshrl.u32 %v3303, 7
    %v3305 = vsub.s32 2, %v3304
    %v3306 = vrot.slane %v3258, %v3305
    %v3307 = vlaneseq
    %v3308 = vshrl.u32 %v3307, 7
    %v3309 = vsub.s32 3, %v3308
    %v3310 = vrot.slane %v3258, %v3309
    %v3311 = vlaneseq
    %v3312 = vshrl.u32 %v3311, 7
    %v3313 = vsub.s32 4, %v3312
    %v3314 = vrot.slane %v3258, %v3313
    %v3315 = vlaneseq
    %v3316 = vshrl.u32 %v3315, 7
    %v3317 = vsub.s32 5, %v3316
    %v3318 = vrot.slane %v3258, %v3317
    %v3319 = vlaneseq
    %v3320 = vshrl.u32 %v3319, 7
    %v3321 = vsub.s32 6, %v3320
    %v3322 = vrot.slane %v3258, %v3321
    %v3323 = vlaneseq
    %v3324 = vshrl.u32 %v3323, 7
    %v3325 = vsub.s32 7, %v3324
    %v3326 = vrot.slane %v3258, %v3325
    %v3327 = vlaneseq
    %v3328 = vshrl.u32 %v3327, 7
    %v3329 = vsub.s32 0, %v3328
    %v3330 = vrot.slane %v3259, %v3329
    %v3331 = vlaneseq
    %v3332 = vshrl.u32 %v3331, 7
    %v3333 = vsub.s32 1, %v3332
    %v3334 = vrot.slane %v3259, %v3333
    %v3335 = vlaneseq
    %v3336 = vshrl.u32 %v3335, 7
    %v3337 = vsub.s32 2, %v3336
    %v3338 = vrot.slane %v3259, %v3337
    %v3339 = vlaneseq
    %v3340 = vshrl.u32 %v3339, 7
    %v3341 = vsub.s32 3, %v3340
    %v3342 = vrot.slane %v3259, %v3341
    %v3343 = vlaneseq
    %v3344 = vshrl.u32 %v3343, 7
    %v3345 = vsub.s32 4, %v3344
    %v3346 = vrot.slane %v3259, %v3345
    %v3347 = vlaneseq
    %v3348 = vshrl.u32 %v3347, 7
    %v3349 = vsub.s32 5, %v3348
    %v3350 = vrot.slane %v3259, %v3349
    %v3351 = vlaneseq
    %v3352 = vshrl.u32 %v3351, 7
    %v3353 = vsub.s32 6, %v3352
    %v3354 = vrot.slane %v3259, %v3353
    %v3355 = vlaneseq
    %v3356 = vshrl.u32 %v3355, 7
    %v3357 = vsub.s32 7, %v3356
    %v3358 = vrot.slane %v3259, %v3357
    %v3575 = vunpack.c.l.b16 %v3065
    %v3576 = vunpack.c.h.b16 %v3065
    %v3577 = vunpack.c.l.b16 %v3066
    %v3578 = vunpack.c.h.b16 %v3066
    %v3579 = vunpack.c.l.b16 %v3067
    %v3580 = vunpack.c.h.b16 %v3067
    %v3581 = vunpack.c.l.b16 %v3068
    %v3582 = vunpack.c.h.b16 %v3068
    %v3583 = vunpack.c.l.b16 %v3069
    %v3584 = vunpack.c.h.b16 %v3069
    %v3585 = vunpack.c.l.b16 %v3070
    %v3586 = vunpack.c.h.b16 %v3070
    %v3587 = vunpack.c.l.b16 %v3071
    %v3588 = vunpack.c.h.b16 %v3071
    %v3589 = vunpack.c.l.b16 %v3072
    %v3590 = vunpack.c.h.b16 %v3072
    %v3591 = vunpack.c.l.b16 %v3073
    %v3592 = vunpack.c.h.b16 %v3073
    %v3593 = vunpack.c.l.b16 %v3074
    %v3594 = vunpack.c.h.b16 %v3074
    %v3595 = vunpack.c.l.b16 %v3075
    %v3596 = vunpack.c.h.b16 %v3075
    %v3597 = vunpack.c.l.b16 %v3076
    %v3598 = vunpack.c.h.b16 %v3076
    %v3599 = vunpack.c.l.b16 %v3077
    %v3600 = vunpack.c.h.b16 %v3077
    %v3601 = vunpack.c.l.b16 %v3078
    %v3602 = vunpack.c.h.b16 %v3078
    %v3603 = vunpack.c.l.b16 %v3079
    %v3604 = vunpack.c.h.b16 %v3079
    %v3605 = vunpack.c.l.b16 %v3080
    %v3606 = vunpack.c.h.b16 %v3080
    %v3607 = vunpack.c.l.b16 %v3081
    %v3608 = vunpack.c.h.b16 %v3081
    %v3609 = vunpack.c.l.b16 %v3082
    %v3610 = vunpack.c.h.b16 %v3082
    %v3611 = vunpack.c.l.b16 %v3083
    %v3612 = vunpack.c.h.b16 %v3083
    %v3613 = vunpack.c.l.b16 %v3084
    %v3614 = vunpack.c.h.b16 %v3084
    %v3615 = vunpack.c.l.b16 %v3085
    %v3616 = vunpack.c.h.b16 %v3085
    %v3617 = vunpack.c.l.b16 %v3086
    %v3618 = vunpack.c.h.b16 %v3086
    %v3619 = vunpack.c.l.b16 %v3087
    %v3620 = vunpack.c.h.b16 %v3087
    %v3621 = vunpack.c.l.b16 %v3088
    %v3622 = vunpack.c.h.b16 %v3088
    %v3623 = vunpack.c.l.b16 %v3089
    %v3624 = vunpack.c.h.b16 %v3089
    %v3625 = vunpack.c.l.b16 %v3090
    %v3626 = vunpack.c.h.b16 %v3090
    %v3627 = vunpack.c.l.b16 %v3091
    %v3628 = vunpack.c.h.b16 %v3091
    %v3629 = vunpack.c.l.b16 %v3092
    %v3630 = vunpack.c.h.b16 %v3092
    %v3631 = vunpack.c.l.b16 %v3093
    %v3632 = vunpack.c.h.b16 %v3093
    %v3633 = vunpack.c.l.b16 %v3094
    %v3634 = vunpack.c.h.b16 %v3094
    %v3635 = vunpack.c.l.b16 %v3095
    %v3636 = vunpack.c.h.b16 %v3095
    %v3637 = vunpack.c.l.b16 %v3096
    %v3638 = vunpack.c.h.b16 %v3096
    %v3639 = vunpack.c.l.b16 %v3097
    %v3640 = vunpack.c.h.b16 %v3097
    %v3641 = vunpack.c.l.b16 %v3098
    %v3642 = vunpack.c.h.b16 %v3098
    %v3643 = vunpack.c.l.b16 %v3099
    %v3644 = vunpack.c.h.b16 %v3099
    %v3645 = vunpack.c.l.b16 %v3100
    %v3646 = vunpack.c.h.b16 %v3100
    %v3647 = vunpack.c.l.b16 %v3101
    %v3648 = vunpack.c.h.b16 %v3101
    %v3649 = vunpack.c.l.b16 %v3102
    %v3650 = vunpack.c.h.b16 %v3102
    %v3651 = vunpack.c.l.b16 %v3103
    %v3652 = vunpack.c.h.b16 %v3103
    %v3653 = vunpack.c.l.b16 %v3104
    %v3654 = vunpack.c.h.b16 %v3104
    %v3655 = vunpack.c.l.b16 %v3105
    %v3656 = vunpack.c.h.b16 %v3105
    %v3657 = vunpack.c.l.b16 %v3106
    %v3658 = vunpack.c.h.b16 %v3106
    %v3659 = vunpack.c.l.b16 %v3107
    %v3660 = vunpack.c.h.b16 %v3107
    %v3661 = vunpack.c.l.b16 %v3108
    %v3662 = vunpack.c.h.b16 %v3108
    %v3663 = vunpack.c.l.b16 %v3109
    %v3664 = vunpack.c.h.b16 %v3109
    %v3665 = vunpack.c.l.b16 %v3110
    %v3666 = vunpack.c.h.b16 %v3110
    %v3667 = vunpack.c.l.b16 %v3111
    %v3668 = vunpack.c.h.b16 %v3111
    %v3669 = vunpack.c.l.b16 %v3112
    %v3670 = vunpack.c.h.b16 %v3112
    %v3671 = vunpack.c.l.b16 %v3113
    %v3672 = vunpack.c.h.b16 %v3113
    %v3673 = vunpack.c.l.b16 %v3114
    %v3674 = vunpack.c.h.b16 %v3114
    %v3675 = vunpack.c.l.b16 %v3115
    %v3676 = vunpack.c.h.b16 %v3115
    %v3677 = vunpack.c.l.b16 %v3116
    %v3678 = vunpack.c.h.b16 %v3116
    %v3679 = vunpack.c.l.b16 %v3117
    %v3680 = vunpack.c.h.b16 %v3117
    %v3681 = vunpack.c.l.b16 %v3118
    %v3682 = vunpack.c.h.b16 %v3118
    %v3683 = vunpack.c.l.b16 %v3119
    %v3684 = vunpack.c.h.b16 %v3119
    %v3685 = vunpack.c.l.b16 %v3120
    %v3686 = vunpack.c.h.b16 %v3120
    %v3687 = vunpack.c.l.b16 %v3121
    %v3688 = vunpack.c.h.b16 %v3121
    %v3689 = vunpack.c.l.b16 %v3122
    %v3690 = vunpack.c.h.b16 %v3122
    %v3691 = vunpack.c.l.b16 %v3123
    %v3692 = vunpack.c.h.b16 %v3123
    %v3693 = vunpack.c.l.b16 %v3124
    %v3694 = vunpack.c.h.b16 %v3124
    %v3695 = vunpack.c.l.b16 %v3125
    %v3696 = vunpack.c.h.b16 %v3125
    %v3697 = vunpack.c.l.b16 %v3126
    %v3698 = vunpack.c.h.b16 %v3126
    %v3699 = vunpack.c.l.b16 %v3127
    %v3700 = vunpack.c.h.b16 %v3127
    %v3701 = vunpack.c.l.b16 %v3128
    %v3702 = vunpack.c.h.b16 %v3128
    %v3703 = vunpack.c.l.b16 %v3129
    %v3704 = vunpack.c.h.b16 %v3129
    %v3705 = vunpack.c.l.b16 %v3130
    %v3706 = vunpack.c.h.b16 %v3130
    %v3707 = vunpack.c.l.b16 %v3131
    %v3708 = vunpack.c.h.b16 %v3131
    %v3709 = vunpack.c.l.b16 %v3132
    %v3710 = vunpack.c.h.b16 %v3132
    %v3711 = vunpack.c.l.b16 %v3133
    %v3712 = vunpack.c.h.b16 %v3133
    %v3713 = vunpack.c.l.b16 %v3134
    %v3714 = vunpack.c.h.b16 %v3134
    %v3715 = vunpack.c.l.b16 %v3135
    %v3716 = vunpack.c.h.b16 %v3135
    %v3717 = vunpack.c.l.b16 %v3136
    %v3718 = vunpack.c.h.b16 %v3136
    %v3719 = vunpack.c.l.b16 %v3137
    %v3720 = vunpack.c.h.b16 %v3137
    %v3721 = vunpack.c.l.b16 %v3138
    %v3722 = vunpack.c.h.b16 %v3138
    %v3723 = vunpack.c.l.b16 %v3139
    %v3724 = vunpack.c.h.b16 %v3139
    %v3725 = vunpack.c.l.b16 %v3140
    %v3726 = vunpack.c.h.b16 %v3140
    %v3727 = vunpack.c.l.b16 %v3141
    %v3728 = vunpack.c.h.b16 %v3141
    %v3729 = vunpack.c.l.b16 %v3142
    %v3730 = vunpack.c.h.b16 %v3142
    %v3731 = vunpack.c.l.b16 %v3143
    %v3732 = vunpack.c.h.b16 %v3143
    %v3733 = vunpack.c.l.b16 %v3144
    %v3734 = vunpack.c.h.b16 %v3144
    %v3735 = vunpack.c.l.b16 %v3145
    %v3736 = vunpack.c.h.b16 %v3145
    %v3737 = vunpack.c.l.b16 %v3146
    %v3738 = vunpack.c.h.b16 %v3146
    %v3739 = vunpack.c.l.b16 %v3147
    %v3740 = vunpack.c.h.b16 %v3147
    %v3741 = vunpack.c.l.b16 %v3148
    %v3742 = vunpack.c.h.b16 %v3148
    %v3743 = vunpack.c.l.b16 %v3149
    %v3744 = vunpack.c.h.b16 %v3149
    %v3745 = vunpack.c.l.b16 %v3150
    %v3746 = vunpack.c.h.b16 %v3150
    %v3747 = vunpack.c.l.b16 %v3151
    %v3748 = vunpack.c.h.b16 %v3151
    %v3749 = vunpack.c.l.b16 %v3152
    %v3750 = vunpack.c.h.b16 %v3152
    %v3751 = vunpack.c.l.b16 %v3153
    %v3752 = vunpack.c.h.b16 %v3153
    %v3753 = vunpack.c.l.b16 %v3154
    %v3754 = vunpack.c.h.b16 %v3154
    %v3755 = vunpack.c.l.b16 %v3155
    %v3756 = vunpack.c.h.b16 %v3155
    %v3757 = vunpack.c.l.b16 %v3156
    %v3758 = vunpack.c.h.b16 %v3156
    %v3759 = vunpack.c.l.b16 %v3157
    %v3760 = vunpack.c.h.b16 %v3157
    %v3761 = vunpack.c.l.b16 %v3158
    %v3762 = vunpack.c.h.b16 %v3158
    %v3763 = vunpack.c.l.b16 %v3159
    %v3764 = vunpack.c.h.b16 %v3159
    %v3765 = vunpack.c.l.b16 %v3160
    %v3766 = vunpack.c.h.b16 %v3160
    %v3767 = vunpack.c.l.b16 %v3161
    %v3768 = vunpack.c.h.b16 %v3161
    %v3769 = vunpack.c.l.b16 %v3162
    %v3770 = vunpack.c.h.b16 %v3162
    %v3771 = vunpack.c.l.b16 %v3163
    %v3772 = vunpack.c.h.b16 %v3163
    %v3773 = vunpack.c.l.b16 %v3164
    %v3774 = vunpack.c.h.b16 %v3164
    %v3775 = vunpack.c.l.b16 %v3165
    %v3776 = vunpack.c.h.b16 %v3165
    %v3777 = vunpack.c.l.b16 %v3166
    %v3778 = vunpack.c.h.b16 %v3166
    %v3779 = vunpack.c.l.b16 %v3167
    %v3780 = vunpack.c.h.b16 %v3167
    %v3781 = vunpack.c.l.b16 %v3168
    %v3782 = vunpack.c.h.b16 %v3168
    %v3783 = vunpack.c.l.b16 %v3169
    %v3784 = vunpack.c.h.b16 %v3169
    %v3785 = vunpack.c.l.b16 %v3170
    %v3786 = vunpack.c.h.b16 %v3170
    %v3787 = vunpack.c.l.b16 %v3171
    %v3788 = vunpack.c.h.b16 %v3171
    %v3789 = vunpack.c.l.b16 %v3172
    %v3790 = vunpack.c.h.b16 %v3172
    %v3791 = vunpack.c.l.b16 %v3173
    %v3792 = vunpack.c.h.b16 %v3173
    %v3793 = vunpack.c.l.b16 %v3174
    %v3794 = vunpack.c.h.b16 %v3174
    %v3795 = vunpack.c.l.b16 %v3175
    %v3796 = vunpack.c.h.b16 %v3175
    %v3797 = vunpack.c.l.b16 %v3176
    %v3798 = vunpack.c.h.b16 %v3176
    %v3799 = vunpack.c.l.b16 %v3177
    %v3800 = vunpack.c.h.b16 %v3177
    %v3801 = vunpack.c.l.b16 %v3178
    %v3802 = vunpack.c.h.b16 %v3178
    %v3803 = vunpack.c.l.b16 %v3179
    %v3804 = vunpack.c.h.b16 %v3179
    %v3805 = vunpack.c.l.b16 %v3180
    %v3806 = vunpack.c.h.b16 %v3180
    %v3807 = vunpack.c.l.b16 %v3181
    %v3808 = vunpack.c.h.b16 %v3181
    %v3809 = vunpack.c.l.b16 %v3182
    %v3810 = vunpack.c.h.b16 %v3182
    %v3811 = vunpack.c.l.b16 %v3183
    %v3812 = vunpack.c.h.b16 %v3183
    %v3813 = vunpack.c.l.b16 %v3184
    %v3814 = vunpack.c.h.b16 %v3184
    %v3815 = vunpack.c.l.b16 %v3185
    %v3816 = vunpack.c.h.b16 %v3185
    %v3817 = vunpack.c.l.b16 %v3186
    %v3818 = vunpack.c.h.b16 %v3186
    %v3819 = vunpack.c.l.b16 %v3187
    %v3820 = vunpack.c.h.b16 %v3187
    %v3821 = vunpack.c.l.b16 %v3188
    %v3822 = vunpack.c.h.b16 %v3188
    %v3823 = vunpack.c.l.b16 %v3189
    %v3824 = vunpack.c.h.b16 %v3189
    %v3825 = vunpack.c.l.b16 %v3190
    %v3826 = vunpack.c.h.b16 %v3190
    %v3827 = vunpack.c.l.b16 %v3191
    %v3828 = vunpack.c.h.b16 %v3191
    %v3829 = vunpack.c.l.b16 %v3192
    %v3830 = vunpack.c.h.b16 %v3192
    %v3831 = vunpack.c.l.b16 %v3193
    %v3832 = vunpack.c.h.b16 %v3193
    %v3833 = vunpack.c.l.b16 %v3194
    %v3834 = vunpack.c.h.b16 %v3194
    %v3835 = vunpack.c.l.b16 %v3195
    %v3836 = vunpack.c.h.b16 %v3195
    %v3837 = vunpack.c.l.b16 %v3196
    %v3838 = vunpack.c.h.b16 %v3196
    %v3839 = vunpack.c.l.b16 %v3197
    %v3840 = vunpack.c.h.b16 %v3197
    %v3841 = vunpack.c.l.b16 %v3198
    %v3842 = vunpack.c.h.b16 %v3198
    %v3843 = vunpack.c.l.b16 %v3199
    %v3844 = vunpack.c.h.b16 %v3199
    %v3845 = vunpack.c.l.b16 %v3200
    %v3846 = vunpack.c.h.b16 %v3200
    %v3847 = vunpack.c.l.b16 %v3201
    %v3848 = vunpack.c.h.b16 %v3201
    %v3849 = vunpack.c.l.b16 %v3202
    %v3850 = vunpack.c.h.b16 %v3202
    %v3851 = vunpack.c.l.b16 %v3203
    %v3852 = vunpack.c.h.b16 %v3203
    %v3853 = vunpack.c.l.b16 %v3204
    %v3854 = vunpack.c.h.b16 %v3204
    %v3855 = vunpack.c.l.b16 %v3205
    %v3856 = vunpack.c.h.b16 %v3205
    %v3857 = vunpack.c.l.b16 %v3206
    %v3858 = vunpack.c.h.b16 %v3206
    %v3859 = vunpack.c.l.b16 %v3207
    %v3860 = vunpack.c.h.b16 %v3207
    %v3861 = vunpack.c.l.b16 %v3208
    %v3862 = vunpack.c.h.b16 %v3208
    %v3863 = vunpack.c.l.b16 %v3209
    %v3864 = vunpack.c.h.b16 %v3209
    %v3865 = vunpack.c.l.b16 %v3210
    %v3866 = vunpack.c.h.b16 %v3210
    %v3867 = vunpack.c.l.b16 %v3211
    %v3868 = vunpack.c.h.b16 %v3211
    %v3869 = vunpack.c.l.b16 %v3212
    %v3870 = vunpack.c.h.b16 %v3212
    %v3871 = vunpack.c.l.b16 %v3213
    %v3872 = vunpack.c.h.b16 %v3213
    %v3873 = vunpack.c.l.b16 %v3214
    %v3874 = vunpack.c.h.b16 %v3214
    %v3875 = vunpack.c.l.b16 %v3215
    %v3876 = vunpack.c.h.b16 %v3215
    %v3877 = vunpack.c.l.b16 %v3216
    %v3878 = vunpack.c.h.b16 %v3216
    %v3879 = vunpack.c.l.b16 %v3217
    %v3880 = vunpack.c.h.b16 %v3217
    %v3881 = vunpack.c.l.b16 %v3218
    %v3882 = vunpack.c.h.b16 %v3218
    %v3883 = vunpack.c.l.b16 %v3219
    %v3884 = vunpack.c.h.b16 %v3219
    %v3885 = vunpack.c.l.b16 %v3220
    %v3886 = vunpack.c.h.b16 %v3220
    %v3887 = vunpack.c.l.b16 %v3221
    %v3888 = vunpack.c.h.b16 %v3221
    %v3889 = vunpack.c.l.b16 %v3222
    %v3890 = vunpack.c.h.b16 %v3222
    %v3891 = vunpack.c.l.b16 %v3223
    %v3892 = vunpack.c.h.b16 %v3223
    %v3893 = vunpack.c.l.b16 %v3224
    %v3894 = vunpack.c.h.b16 %v3224
    %v3895 = vunpack.c.l.b16 %v3225
    %v3896 = vunpack.c.h.b16 %v3225
    %v3897 = vunpack.c.l.b16 %v3226
    %v3898 = vunpack.c.h.b16 %v3226
    %v3899 = vunpack.c.l.b16 %v3227
    %v3900 = vunpack.c.h.b16 %v3227
    %v3901 = vunpack.c.l.b16 %v3228
    %v3902 = vunpack.c.h.b16 %v3228
    %v3903 = vunpack.c.l.b16 %v3229
    %v3904 = vunpack.c.h.b16 %v3229
    %v3905 = vunpack.c.l.b16 %v3230
    %v3906 = vunpack.c.h.b16 %v3230
    %v3907 = vunpack.c.l.b16 %v3231
    %v3908 = vunpack.c.h.b16 %v3231
    %v3909 = vunpack.c.l.b16 %v3232
    %v3910 = vunpack.c.h.b16 %v3232
    %v3911 = vunpack.c.l.b16 %v3233
    %v3912 = vunpack.c.h.b16 %v3233
    %v3913 = vunpack.c.l.b16 %v3234
    %v3914 = vunpack.c.h.b16 %v3234
    %v3915 = vunpack.c.l.b16 %v3235
    %v3916 = vunpack.c.h.b16 %v3235
    %v3917 = vunpack.c.l.b16 %v3236
    %v3918 = vunpack.c.h.b16 %v3236
    %v3919 = vunpack.c.l.b16 %v3237
    %v3920 = vunpack.c.h.b16 %v3237
    %v3921 = vunpack.c.l.b16 %v3238
    %v3922 = vunpack.c.h.b16 %v3238
    %v3923 = vunpack.c.l.b16 %v3239
    %v3924 = vunpack.c.h.b16 %v3239
    %v3925 = vunpack.c.l.b16 %v3240
    %v3926 = vunpack.c.h.b16 %v3240
    %v3927 = vunpack.c.l.b16 %v3241
    %v3928 = vunpack.c.h.b16 %v3241
    %v3929 = vunpack.c.l.b16 %v3242
    %v3930 = vunpack.c.h.b16 %v3242
    %v3931 = vunpack.c.l.b16 %v3243
    %v3932 = vunpack.c.h.b16 %v3243
    %v3933 = vunpack.c.l.b16 %v3244
    %v3934 = vunpack.c.h.b16 %v3244
    %v3935 = vunpack.c.l.b16 %v3245
    %v3936 = vunpack.c.h.b16 %v3245
    %v3937 = vunpack.c.l.b16 %v3246
    %v3938 = vunpack.c.h.b16 %v3246
    %v3939 = vunpack.c.l.b16 %v3247
    %v3940 = vunpack.c.h.b16 %v3247
    %v3941 = vunpack.c.l.b16 %v3248
    %v3942 = vunpack.c.h.b16 %v3248
    %v3943 = vunpack.c.l.b16 %v3249
    %v3944 = vunpack.c.h.b16 %v3249
    %v3945 = vunpack.c.l.b16 %v3250
    %v3946 = vunpack.c.h.b16 %v3250
    %v3947 = vunpack.c.l.b16 %v3251
    %v3948 = vunpack.c.h.b16 %v3251
    %v3949 = vunpack.c.l.b16 %v3252
    %v3950 = vunpack.c.h.b16 %v3252
    %v3951 = vunpack.c.l.b16 %v3253
    %v3952 = vunpack.c.h.b16 %v3253
    %v3953 = vunpack.c.l.b16 %v3254
    %v3954 = vunpack.c.h.b16 %v3254
    %v3955 = vunpack.c.l.b16 %v3255
    %v3956 = vunpack.c.h.b16 %v3255
    %v3957 = vunpack.c.l.b16 %v3256
    %v3958 = vunpack.c.h.b16 %v3256
    %v3959 = vpack.c.b16 %v3599, %v3575
    %v3960 = vpack.c.b16 %v3600, %v3576
    %v3961 = vpack.c.b16 %v3601, %v3577
    %v3962 = vpack.c.b16 %v3602, %v3578
    %v3963 = vpack.c.b16 %v3603, %v3579
    %v3964 = vpack.c.b16 %v3604, %v3580
    %v3965 = vpack.c.b16 %v3605, %v3581
    %v3966 = vpack.c.b16 %v3606, %v3582
    %v3967 = vpack.c.b16 %v3607, %v3583
    %v3968 = vpack.c.b16 %v3608, %v3584
    %v3969 = vpack.c.b16 %v3609, %v3585
    %v3970 = vpack.c.b16 %v3610, %v3586
    %v3971 = vpack.c.b16 %v3611, %v3587
    %v3972 = vpack.c.b16 %v3612, %v3588
    %v3973 = vpack.c.b16 %v3613, %v3589
    %v3974 = vpack.c.b16 %v3614, %v3590
    %v3975 = vpack.c.b16 %v3615, %v3591
    %v3976 = vpack.c.b16 %v3616, %v3592
    %v3977 = vpack.c.b16 %v3617, %v3593
    %v3978 = vpack.c.b16 %v3618, %v3594
    %v3979 = vpack.c.b16 %v3619, %v3595
    %v3980 = vpack.c.b16 %v3620, %v3596
    %v3981 = vpack.c.b16 %v3621, %v3597
    %v3982 = vpack.c.b16 %v3622, %v3598
    %v3983 = vpack.c.b16 %v3647, %v3623
    %v3984 = vpack.c.b16 %v3648, %v3624
    %v3985 = vpack.c.b16 %v3649, %v3625
    %v3986 = vpack.c.b16 %v3650, %v3626
    %v3987 = vpack.c.b16 %v3651, %v3627
    %v3988 = vpack.c.b16 %v3652, %v3628
    %v3989 = vpack.c.b16 %v3653, %v3629
    %v3990 = vpack.c.b16 %v3654, %v3630
    %v3991 = vpack.c.b16 %v3655, %v3631
    %v3992 = vpack.c.b16 %v3656, %v3632
    %v3993 = vpack.c.b16 %v3657, %v3633
    %v3994 = vpack.c.b16 %v3658, %v3634
    %v3995 = vpack.c.b16 %v3659, %v3635
    %v3996 = vpack.c.b16 %v3660, %v3636
    %v3997 = vpack.c.b16 %v3661, %v3637
    %v3998 = vpack.c.b16 %v3662, %v3638
    %v3999 = vpack.c.b16 %v3663, %v3639
    %v4000 = vpack.c.b16 %v3664, %v3640
    %v4001 = vpack.c.b16 %v3665, %v3641
    %v4002 = vpack.c.b16 %v3666, %v3642
    %v4003 = vpack.c.b16 %v3667, %v3643
    %v4004 = vpack.c.b16 %v3668, %v3644
    %v4005 = vpack.c.b16 %v3669, %v3645
    %v4006 = vpack.c.b16 %v3670, %v3646
    %v4007 = vpack.c.b16 %v3695, %v3671
    %v4008 = vpack.c.b16 %v3696, %v3672
    %v4009 = vpack.c.b16 %v3697, %v3673
    %v4010 = vpack.c.b16 %v3698, %v3674
    %v4011 = vpack.c.b16 %v3699, %v3675
    %v4012 = vpack.c.b16 %v3700, %v3676
    %v4013 = vpack.c.b16 %v3701, %v3677
    %v4014 = vpack.c.b16 %v3702, %v3678
    %v4015 = vpack.c.b16 %v3703, %v3679
    %v4016 = vpack.c.b16 %v3704, %v3680
    %v4017 = vpack.c.b16 %v3705, %v3681
    %v4018 = vpack.c.b16 %v3706, %v3682
    %v4019 = vpack.c.b16 %v3707, %v3683
    %v4020 = vpack.c.b16 %v3708, %v3684
    %v4021 = vpack.c.b16 %v3709, %v3685
    %v4022 = vpack.c.b16 %v3710, %v3686
    %v4023 = vpack.c.b16 %v3711, %v3687
    %v4024 = vpack.c.b16 %v3712, %v3688
    %v4025 = vpack.c.b16 %v3713, %v3689
    %v4026 = vpack.c.b16 %v3714, %v3690
    %v4027 = vpack.c.b16 %v3715, %v3691
    %v4028 = vpack.c.b16 %v3716, %v3692
    %v4029 = vpack.c.b16 %v3717, %v3693
    %v4030 = vpack.c.b16 %v3718, %v3694
    %v4031 = vpack.c.b16 %v3743, %v3719
    %v4032 = vpack.c.b16 %v3744, %v3720
    %v4033 = vpack.c.b16 %v3745, %v3721
    %v4034 = vpack.c.b16 %v3746, %v3722
    %v4035 = vpack.c.b16 %v3747, %v3723
    %v4036 = vpack.c.b16 %v3748, %v3724
    %v4037 = vpack.c.b16 %v3749, %v3725
    %v4038 = vpack.c.b16 %v3750, %v3726
    %v4039 = vpack.c.b16 %v3751, %v3727
    %v4040 = vpack.c.b16 %v3752, %v3728
    %v4041 = vpack.c.b16 %v3753, %v3729
    %v4042 = vpack.c.b16 %v3754, %v3730
    %v4043 = vpack.c.b16 %v3755, %v3731
    %v4044 = vpack.c.b16 %v3756, %v3732
    %v4045 = vpack.c.b16 %v3757, %v3733
    %v4046 = vpack.c.b16 %v3758, %v3734
    %v4047 = vpack.c.b16 %v3759, %v3735
    %v4048 = vpack.c.b16 %v3760, %v3736
    %v4049 = vpack.c.b16 %v3761, %v3737
    %v4050 = vpack.c.b16 %v3762, %v3738
    %v4051 = vpack.c.b16 %v3763, %v3739
    %v4052 = vpack.c.b16 %v3764, %v3740
    %v4053 = vpack.c.b16 %v3765, %v3741
    %v4054 = vpack.c.b16 %v3766, %v3742
    %v4055 = vpack.c.b16 %v3791, %v3767
    %v4056 = vpack.c.b16 %v3792, %v3768
    %v4057 = vpack.c.b16 %v3793, %v3769
    %v4058 = vpack.c.b16 %v3794, %v3770
    %v4059 = vpack.c.b16 %v3795, %v3771
    %v4060 = vpack.c.b16 %v3796, %v3772
    %v4061 = vpack.c.b16 %v3797, %v3773
    %v4062 = vpack.c.b16 %v3798, %v3774
    %v4063 = vpack.c.b16 %v3799, %v3775
    %v4064 = vpack.c.b16 %v3800, %v3776
    %v4065 = vpack.c.b16 %v3801, %v3777
    %v4066 = vpack.c.b16 %v3802, %v3778
    %v4067 = vpack.c.b16 %v3803, %v3779
    %v4068 = vpack.c.b16 %v3804, %v3780
    %v4069 = vpack.c.b16 %v3805, %v3781
    %v4070 = vpack.c.b16 %v3806, %v3782
    %v4071 = vpack.c.b16 %v3807, %v3783
    %v4072 = vpack.c.b16 %v3808, %v3784
    %v4073 = vpack.c.b16 %v3809, %v3785
    %v4074 = vpack.c.b16 %v3810, %v3786
    %v4075 = vpack.c.b16 %v3811, %v3787
    %v4076 = vpack.c.b16 %v3812, %v3788
    %v4077 = vpack.c.b16 %v3813, %v3789
    %v4078 = vpack.c.b16 %v3814, %v3790
    %v4079 = vpack.c.b16 %v3839, %v3815
    %v4080 = vpack.c.b16 %v3840, %v3816
    %v4081 = vpack.c.b16 %v3841, %v3817
    %v4082 = vpack.c.b16 %v3842, %v3818
    %v4083 = vpack.c.b16 %v3843, %v3819
    %v4084 = vpack.c.b16 %v3844, %v3820
    %v4085 = vpack.c.b16 %v3845, %v3821
    %v4086 = vpack.c.b16 %v3846, %v3822
    %v4087 = vpack.c.b16 %v3847, %v3823
    %v4088 = vpack.c.b16 %v3848, %v3824
    %v4089 = vpack.c.b16 %v3849, %v3825
    %v4090 = vpack.c.b16 %v3850, %v3826
    %v4091 = vpack.c.b16 %v3851, %v3827
    %v4092 = vpack.c.b16 %v3852, %v3828
    %v4093 = vpack.c.b16 %v3853, %v3829
    %v4094 = vpack.c.b16 %v3854, %v3830
    %v4095 = vpack.c.b16 %v3855, %v3831
    %v4096 = vpack.c.b16 %v3856, %v3832
    %v4097 = vpack.c.b16 %v3857, %v3833
    %v4098 = vpack.c.b16 %v3858, %v3834
    %v4099 = vpack.c.b16 %v3859, %v3835
    %v4100 = vpack.c.b16 %v3860, %v3836
    %v4101 = vpack.c.b16 %v3861, %v3837
    %v4102 = vpack.c.b16 %v3862, %v3838
    %v4103 = vpack.c.b16 %v3887, %v3863
    %v4104 = vpack.c.b16 %v3888, %v3864
    %v4105 = vpack.c.b16 %v3889, %v3865
    %v4106 = vpack.c.b16 %v3890, %v3866
    %v4107 = vpack.c.b16 %v3891, %v3867
    %v4108 = vpack.c.b16 %v3892, %v3868
    %v4109 = vpack.c.b16 %v3893, %v3869
    %v4110 = vpack.c.b16 %v3894, %v3870
    %v4111 = vpack.c.b16 %v3895, %v3871
    %v4112 = vpack.c.b16 %v3896, %v3872
    %v4113 = vpack.c.b16 %v3897, %v3873
    %v4114 = vpack.c.b16 %v3898, %v3874
    %v4115 = vpack.c.b16 %v3899, %v3875
    %v4116 = vpack.c.b16 %v3900, %v3876
    %v4117 = vpack.c.b16 %v3901, %v3877
    %v4118 = vpack.c.b16 %v3902, %v3878
    %v4119 = vpack.c.b16 %v3903, %v3879
    %v4120 = vpack.c.b16 %v3904, %v3880
    %v4121 = vpack.c.b16 %v3905, %v3881
    %v4122 = vpack.c.b16 %v3906, %v3882
    %v4123 = vpack.c.b16 %v3907, %v3883
    %v4124 = vpack.c.b16 %v3908, %v3884
    %v4125 = vpack.c.b16 %v3909, %v3885
    %v4126 = vpack.c.b16 %v3910, %v3886
    %v4127 = vpack.c.b16 %v3935, %v3911
    %v4128 = vpack.c.b16 %v3936, %v3912
    %v4129 = vpack.c.b16 %v3937, %v3913
    %v4130 = vpack.c.b16 %v3938, %v3914
    %v4131 = vpack.c.b16 %v3939, %v3915
    %v4132 = vpack.c.b16 %v3940, %v3916
    %v4133 = vpack.c.b16 %v3941, %v3917
    %v4134 = vpack.c.b16 %v3942, %v3918
    %v4135 = vpack.c.b16 %v3943, %v3919
    %v4136 = vpack.c.b16 %v3944, %v3920
    %v4137 = vpack.c.b16 %v3945, %v3921
    %v4138 = vpack.c.b16 %v3946, %v3922
    %v4139 = vpack.c.b16 %v3947, %v3923
    %v4140 = vpack.c.b16 %v3948, %v3924
    %v4141 = vpack.c.b16 %v3949, %v3925
    %v4142 = vpack.c.b16 %v3950, %v3926
    %v4143 = vpack.c.b16 %v3951, %v3927
    %v4144 = vpack.c.b16 %v3952, %v3928
    %v4145 = vpack.c.b16 %v3953, %v3929
    %v4146 = vpack.c.b16 %v3954, %v3930
    %v4147 = vpack.c.b16 %v3955, %v3931
    %v4148 = vpack.c.b16 %v3956, %v3932
    %v4149 = vpack.c.b16 %v3957, %v3933
    %v4150 = vpack.c.b16 %v3958, %v3934
    %4343 = vmatprep.subr.bf16.mxu0 %v4128
    %4344 = vmatpush1.bf16.msra.mxu0 %v4127
    %4345 = vmatprep.subr.bf16.mxu0 %v4104
    %4346 = vmatpush1.bf16.msra.mxu0 %v4103
    %4347 = vmatprep.subr.bf16.mxu0 %v4080
    %4348 = vmatpush1.bf16.msra.mxu0 %v4079
    %4349 = vmatprep.subr.bf16.mxu0 %v4056
    %4350 = vmatpush1.bf16.msra.mxu0 %v4055
    %4351 = vmatprep.subr.bf16.mxu0 %v4032
    %4352 = vmatpush1.bf16.msra.mxu0 %v4031
    %4353 = vmatprep.subr.bf16.mxu0 %v4008
    %4354 = vmatpush1.bf16.msra.mxu0 %v4007
    %4355 = vmatprep.subr.bf16.mxu0 %v3984
    %4356 = vmatpush1.bf16.msra.mxu0 %v3983
    %4357 = vmatprep.subr.bf16.mxu0 %v3960
    %4358 = vmatpush1.bf16.msra.mxu0 %v3959
    %4359 = vmatprep.subr.bf16.mxu0 0
    %4360 = vmatpush2.bf16.msra.mxu0 0
    %4361 = vmatprep.subr.bf16.mxu0 0
    %4362 = vmatpush2.bf16.msra.mxu0 0
    %4363 = vmatprep.subr.bf16.mxu0 0
    %4364 = vmatpush2.bf16.msra.mxu0 0
    %4365 = vmatprep.subr.bf16.mxu0 0
    %4366 = vmatpush2.bf16.msra.mxu0 0
    %4367 = vmatprep.subr.bf16.mxu0 0
    %4368 = vmatpush2.bf16.msra.mxu0 0
    %4369 = vmatprep.subr.bf16.mxu0 0
    %4370 = vmatpush2.bf16.msra.mxu0 0
    %4371 = vmatprep.subr.bf16.mxu0 0
    %4372 = vmatpush2.bf16.msra.mxu0 0
    %4373 = vmatprep.subr.bf16.mxu0 0
    %4374 = vmatpush2.bf16.msra.mxu0 0
    %4375 = vmatprep.mubr.bf16.mxu0 0
    %4376 = vmatmul.mubr.bf16.gmra.mxu0 %v3064
    %v4377 = vpop.f32.mrf.mxu0
    %v4378 = vadd.f32 %v3266, %v4377
    %v4379 = vpop.f32.mrf.mxu0
    %v4380 = vadd.f32 %v3270, %v4379
    %v4381 = vpop.f32.mrf.mxu0
    %v4382 = vpop.f32.mrf.mxu0
    %4383 = vdwg.mxu0
    %4384 = vmatprep.subr.bf16.mxu0 %v4130
    %4385 = vmatpush1.bf16.msra.mxu0 %v4129
    %4386 = vmatprep.subr.bf16.mxu0 %v4106
    %4387 = vmatpush1.bf16.msra.mxu0 %v4105
    %4388 = vmatprep.subr.bf16.mxu0 %v4082
    %4389 = vmatpush1.bf16.msra.mxu0 %v4081
    %4390 = vmatprep.subr.bf16.mxu0 %v4058
    %4391 = vmatpush1.bf16.msra.mxu0 %v4057
    %4392 = vmatprep.subr.bf16.mxu0 %v4034
    %4393 = vmatpush1.bf16.msra.mxu0 %v4033
    %4394 = vmatprep.subr.bf16.mxu0 %v4010
    %4395 = vmatpush1.bf16.msra.mxu0 %v4009
    %4396 = vmatprep.subr.bf16.mxu0 %v3986
    %4397 = vmatpush1.bf16.msra.mxu0 %v3985
    %4398 = vmatprep.subr.bf16.mxu0 %v3962
    %4399 = vmatpush1.bf16.msra.mxu0 %v3961
    %4400 = vmatprep.subr.bf16.mxu0 0
    %4401 = vmatpush2.bf16.msra.mxu0 0
    %4402 = vmatprep.subr.bf16.mxu0 0
    %4403 = vmatpush2.bf16.msra.mxu0 0
    %4404 = vmatprep.subr.bf16.mxu0 0
    %4405 = vmatpush2.bf16.msra.mxu0 0
    %4406 = vmatprep.subr.bf16.mxu0 0
    %4407 = vmatpush2.bf16.msra.mxu0 0
    %4408 = vmatprep.subr.bf16.mxu0 0
    %4409 = vmatpush2.bf16.msra.mxu0 0
    %4410 = vmatprep.subr.bf16.mxu0 0
    %4411 = vmatpush2.bf16.msra.mxu0 0
    %4412 = vmatprep.subr.bf16.mxu0 0
    %4413 = vmatpush2.bf16.msra.mxu0 0
    %4414 = vmatprep.subr.bf16.mxu0 0
    %4415 = vmatpush2.bf16.msra.mxu0 0
    %4416 = vmatprep.mubr.bf16.mxu0 0
    %4417 = vmatmul.mubr.bf16.gmra.mxu0 %v3064
    %v4418 = vpop.f32.mrf.mxu0
    %v4419 = vadd.f32 %v3274, %v4418
    %v4420 = vpop.f32.mrf.mxu0
    %v4421 = vadd.f32 %v3278, %v4420
    %v4422 = vpop.f32.mrf.mxu0
    %v4423 = vpop.f32.mrf.mxu0
    %4424 = vdwg.mxu0
    %4425 = vmatprep.subr.bf16.mxu0 %v4132
    %4426 = vmatpush1.bf16.msra.mxu0 %v4131
    %4427 = vmatprep.subr.bf16.mxu0 %v4108
    %4428 = vmatpush1.bf16.msra.mxu0 %v4107
    %4429 = vmatprep.subr.bf16.mxu0 %v4084
    %4430 = vmatpush1.bf16.msra.mxu0 %v4083
    %4431 = vmatprep.subr.bf16.mxu0 %v4060
    %4432 = vmatpush1.bf16.msra.mxu0 %v4059
    %4433 = vmatprep.subr.bf16.mxu0 %v4036
    %4434 = vmatpush1.bf16.msra.mxu0 %v4035
    %4435 = vmatprep.subr.bf16.mxu0 %v4012
    %4436 = vmatpush1.bf16.msra.mxu0 %v4011
    %4437 = vmatprep.subr.bf16.mxu0 %v3988
    %4438 = vmatpush1.bf16.msra.mxu0 %v3987
    %4439 = vmatprep.subr.bf16.mxu0 %v3964
    %4440 = vmatpush1.bf16.msra.mxu0 %v3963
    %4441 = vmatprep.subr.bf16.mxu0 0
    %4442 = vmatpush2.bf16.msra.mxu0 0
    %4443 = vmatprep.subr.bf16.mxu0 0
    %4444 = vmatpush2.bf16.msra.mxu0 0
    %4445 = vmatprep.subr.bf16.mxu0 0
    %4446 = vmatpush2.bf16.msra.mxu0 0
    %4447 = vmatprep.subr.bf16.mxu0 0
    %4448 = vmatpush2.bf16.msra.mxu0 0
    %4449 = vmatprep.subr.bf16.mxu0 0
    %4450 = vmatpush2.bf16.msra.mxu0 0
    %4451 = vmatprep.subr.bf16.mxu0 0
    %4452 = vmatpush2.bf16.msra.mxu0 0
    %4453 = vmatprep.subr.bf16.mxu0 0
    %4454 = vmatpush2.bf16.msra.mxu0 0
    %4455 = vmatprep.subr.bf16.mxu0 0
    %4456 = vmatpush2.bf16.msra.mxu0 0
    %4457 = vmatprep.mubr.bf16.mxu0 0
    %4458 = vmatmul.mubr.bf16.gmra.mxu0 %v3064
    %v4459 = vpop.f32.mrf.mxu0
    %v4460 = vadd.f32 %v3282, %v4459
    %v4461 = vpop.f32.mrf.mxu0
    %v4462 = vadd.f32 %v3286, %v4461
    %v4463 = vpop.f32.mrf.mxu0
    %v4464 = vpop.f32.mrf.mxu0
    %4465 = vdwg.mxu0
    %4466 = vmatprep.subr.bf16.mxu0 %v4134
    %4467 = vmatpush1.bf16.msra.mxu0 %v4133
    %4468 = vmatprep.subr.bf16.mxu0 %v4110
    %4469 = vmatpush1.bf16.msra.mxu0 %v4109
    %4470 = vmatprep.subr.bf16.mxu0 %v4086
    %4471 = vmatpush1.bf16.msra.mxu0 %v4085
    %4472 = vmatprep.subr.bf16.mxu0 %v4062
    %4473 = vmatpush1.bf16.msra.mxu0 %v4061
    %4474 = vmatprep.subr.bf16.mxu0 %v4038
    %4475 = vmatpush1.bf16.msra.mxu0 %v4037
    %4476 = vmatprep.subr.bf16.mxu0 %v4014
    %4477 = vmatpush1.bf16.msra.mxu0 %v4013
    %4478 = vmatprep.subr.bf16.mxu0 %v3990
    %4479 = vmatpush1.bf16.msra.mxu0 %v3989
    %4480 = vmatprep.subr.bf16.mxu0 %v3966
    %4481 = vmatpush1.bf16.msra.mxu0 %v3965
    %4482 = vmatprep.subr.bf16.mxu0 0
    %4483 = vmatpush2.bf16.msra.mxu0 0
    %4484 = vmatprep.subr.bf16.mxu0 0
    %4485 = vmatpush2.bf16.msra.mxu0 0
    %4486 = vmatprep.subr.bf16.mxu0 0
    %4487 = vmatpush2.bf16.msra.mxu0 0
    %4488 = vmatprep.subr.bf16.mxu0 0
    %4489 = vmatpush2.bf16.msra.mxu0 0
    %4490 = vmatprep.subr.bf16.mxu0 0
    %4491 = vmatpush2.bf16.msra.mxu0 0
    %4492 = vmatprep.subr.bf16.mxu0 0
    %4493 = vmatpush2.bf16.msra.mxu0 0
    %4494 = vmatprep.subr.bf16.mxu0 0
    %4495 = vmatpush2.bf16.msra.mxu0 0
    %4496 = vmatprep.subr.bf16.mxu0 0
    %4497 = vmatpush2.bf16.msra.mxu0 0
    %4498 = vmatprep.mubr.bf16.mxu0 0
    %4499 = vmatmul.mubr.bf16.gmra.mxu0 %v3064
    %v4500 = vpop.f32.mrf.mxu0
    %v4501 = vadd.f32 %v3290, %v4500
    %v4502 = vpop.f32.mrf.mxu0
    %v4503 = vadd.f32 %v3294, %v4502
    %v4504 = vpop.f32.mrf.mxu0
    %v4505 = vpop.f32.mrf.mxu0
    %4506 = vdwg.mxu0
    %4507 = vmatprep.subr.bf16.mxu0 %v4136
    %4508 = vmatpush1.bf16.msra.mxu0 %v4135
    %4509 = vmatprep.subr.bf16.mxu0 %v4112
    %4510 = vmatpush1.bf16.msra.mxu0 %v4111
    %4511 = vmatprep.subr.bf16.mxu0 %v4088
    %4512 = vmatpush1.bf16.msra.mxu0 %v4087
    %4513 = vmatprep.subr.bf16.mxu0 %v4064
    %4514 = vmatpush1.bf16.msra.mxu0 %v4063
    %4515 = vmatprep.subr.bf16.mxu0 %v4040
    %4516 = vmatpush1.bf16.msra.mxu0 %v4039
    %4517 = vmatprep.subr.bf16.mxu0 %v4016
    %4518 = vmatpush1.bf16.msra.mxu0 %v4015
    %4519 = vmatprep.subr.bf16.mxu0 %v3992
    %4520 = vmatpush1.bf16.msra.mxu0 %v3991
    %4521 = vmatprep.subr.bf16.mxu0 %v3968
    %4522 = vmatpush1.bf16.msra.mxu0 %v3967
    %4523 = vmatprep.subr.bf16.mxu0 0
    %4524 = vmatpush2.bf16.msra.mxu0 0
    %4525 = vmatprep.subr.bf16.mxu0 0
    %4526 = vmatpush2.bf16.msra.mxu0 0
    %4527 = vmatprep.subr.bf16.mxu0 0
    %4528 = vmatpush2.bf16.msra.mxu0 0
    %4529 = vmatprep.subr.bf16.mxu0 0
    %4530 = vmatpush2.bf16.msra.mxu0 0
    %4531 = vmatprep.subr.bf16.mxu0 0
    %4532 = vmatpush2.bf16.msra.mxu0 0
    %4533 = vmatprep.subr.bf16.mxu0 0
    %4534 = vmatpush2.bf16.msra.mxu0 0
    %4535 = vmatprep.subr.bf16.mxu0 0
    %4536 = vmatpush2.bf16.msra.mxu0 0
    %4537 = vmatprep.subr.bf16.mxu0 0
    %4538 = vmatpush2.bf16.msra.mxu0 0
    %4539 = vmatprep.mubr.bf16.mxu0 0
    %4540 = vmatmul.mubr.bf16.gmra.mxu0 %v3064
    %v4541 = vpop.f32.mrf.mxu0
    %v4542 = vadd.f32 %v3298, %v4541
    %v4543 = vpop.f32.mrf.mxu0
    %v4544 = vadd.f32 %v3302, %v4543
    %v4545 = vpop.f32.mrf.mxu0
    %v4546 = vpop.f32.mrf.mxu0
    %4547 = vdwg.mxu0
    %4548 = vmatprep.subr.bf16.mxu0 %v4138
    %4549 = vmatpush1.bf16.msra.mxu0 %v4137
    %4550 = vmatprep.subr.bf16.mxu0 %v4114
    %4551 = vmatpush1.bf16.msra.mxu0 %v4113
    %4552 = vmatprep.subr.bf16.mxu0 %v4090
    %4553 = vmatpush1.bf16.msra.mxu0 %v4089
    %4554 = vmatprep.subr.bf16.mxu0 %v4066
    %4555 = vmatpush1.bf16.msra.mxu0 %v4065
    %4556 = vmatprep.subr.bf16.mxu0 %v4042
    %4557 = vmatpush1.bf16.msra.mxu0 %v4041
    %4558 = vmatprep.subr.bf16.mxu0 %v4018
    %4559 = vmatpush1.bf16.msra.mxu0 %v4017
    %4560 = vmatprep.subr.bf16.mxu0 %v3994
    %4561 = vmatpush1.bf16.msra.mxu0 %v3993
    %4562 = vmatprep.subr.bf16.mxu0 %v3970
    %4563 = vmatpush1.bf16.msra.mxu0 %v3969
    %4564 = vmatprep.subr.bf16.mxu0 0
    %4565 = vmatpush2.bf16.msra.mxu0 0
    %4566 = vmatprep.subr.bf16.mxu0 0
    %4567 = vmatpush2.bf16.msra.mxu0 0
    %4568 = vmatprep.subr.bf16.mxu0 0
    %4569 = vmatpush2.bf16.msra.mxu0 0
    %4570 = vmatprep.subr.bf16.mxu0 0
    %4571 = vmatpush2.bf16.msra.mxu0 0
    %4572 = vmatprep.subr.bf16.mxu0 0
    %4573 = vmatpush2.bf16.msra.mxu0 0
    %4574 = vmatprep.subr.bf16.mxu0 0
    %4575 = vmatpush2.bf16.msra.mxu0 0
    %4576 = vmatprep.subr.bf16.mxu0 0
    %4577 = vmatpush2.bf16.msra.mxu0 0
    %4578 = vmatprep.subr.bf16.mxu0 0
    %4579 = vmatpush2.bf16.msra.mxu0 0
    %4580 = vmatprep.mubr.bf16.mxu0 0
    %4581 = vmatmul.mubr.bf16.gmra.mxu0 %v3064
    %v4582 = vpop.f32.mrf.mxu0
    %v4583 = vadd.f32 %v3306, %v4582
    %v4584 = vpop.f32.mrf.mxu0
    %v4585 = vadd.f32 %v3310, %v4584
    %v4586 = vpop.f32.mrf.mxu0
    %v4587 = vpop.f32.mrf.mxu0
    %4588 = vdwg.mxu0
    %4589 = vmatprep.subr.bf16.mxu0 %v4140
    %4590 = vmatpush1.bf16.msra.mxu0 %v4139
    %4591 = vmatprep.subr.bf16.mxu0 %v4116
    %4592 = vmatpush1.bf16.msra.mxu0 %v4115
    %4593 = vmatprep.subr.bf16.mxu0 %v4092
    %4594 = vmatpush1.bf16.msra.mxu0 %v4091
    %4595 = vmatprep.subr.bf16.mxu0 %v4068
    %4596 = vmatpush1.bf16.msra.mxu0 %v4067
    %4597 = vmatprep.subr.bf16.mxu0 %v4044
    %4598 = vmatpush1.bf16.msra.mxu0 %v4043
    %4599 = vmatprep.subr.bf16.mxu0 %v4020
    %4600 = vmatpush1.bf16.msra.mxu0 %v4019
    %4601 = vmatprep.subr.bf16.mxu0 %v3996
    %4602 = vmatpush1.bf16.msra.mxu0 %v3995
    %4603 = vmatprep.subr.bf16.mxu0 %v3972
    %4604 = vmatpush1.bf16.msra.mxu0 %v3971
    %4605 = vmatprep.subr.bf16.mxu0 0
    %4606 = vmatpush2.bf16.msra.mxu0 0
    %4607 = vmatprep.subr.bf16.mxu0 0
    %4608 = vmatpush2.bf16.msra.mxu0 0
    %4609 = vmatprep.subr.bf16.mxu0 0
    %4610 = vmatpush2.bf16.msra.mxu0 0
    %4611 = vmatprep.subr.bf16.mxu0 0
    %4612 = vmatpush2.bf16.msra.mxu0 0
    %4613 = vmatprep.subr.bf16.mxu0 0
    %4614 = vmatpush2.bf16.msra.mxu0 0
    %4615 = vmatprep.subr.bf16.mxu0 0
    %4616 = vmatpush2.bf16.msra.mxu0 0
    %4617 = vmatprep.subr.bf16.mxu0 0
    %4618 = vmatpush2.bf16.msra.mxu0 0
    %4619 = vmatprep.subr.bf16.mxu0 0
    %4620 = vmatpush2.bf16.msra.mxu0 0
    %4621 = vmatprep.mubr.bf16.mxu0 0
    %4622 = vmatmul.mubr.bf16.gmra.mxu0 %v3064
    %v4623 = vpop.f32.mrf.mxu0
    %v4624 = vadd.f32 %v3314, %v4623
    %v4625 = vpop.f32.mrf.mxu0
    %v4626 = vadd.f32 %v3318, %v4625
    %v4627 = vpop.f32.mrf.mxu0
    %v4628 = vpop.f32.mrf.mxu0
    %4629 = vdwg.mxu0
    %4630 = vmatprep.subr.bf16.mxu0 %v4142
    %4631 = vmatpush1.bf16.msra.mxu0 %v4141
    %4632 = vmatprep.subr.bf16.mxu0 %v4118
    %4633 = vmatpush1.bf16.msra.mxu0 %v4117
    %4634 = vmatprep.subr.bf16.mxu0 %v4094
    %4635 = vmatpush1.bf16.msra.mxu0 %v4093
    %4636 = vmatprep.subr.bf16.mxu0 %v4070
    %4637 = vmatpush1.bf16.msra.mxu0 %v4069
    %4638 = vmatprep.subr.bf16.mxu0 %v4046
    %4639 = vmatpush1.bf16.msra.mxu0 %v4045
    %4640 = vmatprep.subr.bf16.mxu0 %v4022
    %4641 = vmatpush1.bf16.msra.mxu0 %v4021
    %4642 = vmatprep.subr.bf16.mxu0 %v3998
    %4643 = vmatpush1.bf16.msra.mxu0 %v3997
    %4644 = vmatprep.subr.bf16.mxu0 %v3974
    %4645 = vmatpush1.bf16.msra.mxu0 %v3973
    %4646 = vmatprep.subr.bf16.mxu0 0
    %4647 = vmatpush2.bf16.msra.mxu0 0
    %4648 = vmatprep.subr.bf16.mxu0 0
    %4649 = vmatpush2.bf16.msra.mxu0 0
    %4650 = vmatprep.subr.bf16.mxu0 0
    %4651 = vmatpush2.bf16.msra.mxu0 0
    %4652 = vmatprep.subr.bf16.mxu0 0
    %4653 = vmatpush2.bf16.msra.mxu0 0
    %4654 = vmatprep.subr.bf16.mxu0 0
    %4655 = vmatpush2.bf16.msra.mxu0 0
    %4656 = vmatprep.subr.bf16.mxu0 0
    %4657 = vmatpush2.bf16.msra.mxu0 0
    %4658 = vmatprep.subr.bf16.mxu0 0
    %4659 = vmatpush2.bf16.msra.mxu0 0
    %4660 = vmatprep.subr.bf16.mxu0 0
    %4661 = vmatpush2.bf16.msra.mxu0 0
    %4662 = vmatprep.mubr.bf16.mxu0 0
    %4663 = vmatmul.mubr.bf16.gmra.mxu0 %v3064
    %v4664 = vpop.f32.mrf.mxu0
    %v4665 = vadd.f32 %v3322, %v4664
    %v4666 = vpop.f32.mrf.mxu0
    %v4667 = vadd.f32 %v3326, %v4666
    %v4668 = vpop.f32.mrf.mxu0
    %v4669 = vpop.f32.mrf.mxu0
    %4670 = vdwg.mxu0
    %4671 = vmatprep.subr.bf16.mxu0 %v4144
    %4672 = vmatpush1.bf16.msra.mxu0 %v4143
    %4673 = vmatprep.subr.bf16.mxu0 %v4120
    %4674 = vmatpush1.bf16.msra.mxu0 %v4119
    %4675 = vmatprep.subr.bf16.mxu0 %v4096
    %4676 = vmatpush1.bf16.msra.mxu0 %v4095
    %4677 = vmatprep.subr.bf16.mxu0 %v4072
    %4678 = vmatpush1.bf16.msra.mxu0 %v4071
    %4679 = vmatprep.subr.bf16.mxu0 %v4048
    %4680 = vmatpush1.bf16.msra.mxu0 %v4047
    %4681 = vmatprep.subr.bf16.mxu0 %v4024
    %4682 = vmatpush1.bf16.msra.mxu0 %v4023
    %4683 = vmatprep.subr.bf16.mxu0 %v4000
    %4684 = vmatpush1.bf16.msra.mxu0 %v3999
    %4685 = vmatprep.subr.bf16.mxu0 %v3976
    %4686 = vmatpush1.bf16.msra.mxu0 %v3975
    %4687 = vmatprep.subr.bf16.mxu0 0
    %4688 = vmatpush2.bf16.msra.mxu0 0
    %4689 = vmatprep.subr.bf16.mxu0 0
    %4690 = vmatpush2.bf16.msra.mxu0 0
    %4691 = vmatprep.subr.bf16.mxu0 0
    %4692 = vmatpush2.bf16.msra.mxu0 0
    %4693 = vmatprep.subr.bf16.mxu0 0
    %4694 = vmatpush2.bf16.msra.mxu0 0
    %4695 = vmatprep.subr.bf16.mxu0 0
    %4696 = vmatpush2.bf16.msra.mxu0 0
    %4697 = vmatprep.subr.bf16.mxu0 0
    %4698 = vmatpush2.bf16.msra.mxu0 0
    %4699 = vmatprep.subr.bf16.mxu0 0
    %4700 = vmatpush2.bf16.msra.mxu0 0
    %4701 = vmatprep.subr.bf16.mxu0 0
    %4702 = vmatpush2.bf16.msra.mxu0 0
    %4703 = vmatprep.mubr.bf16.mxu0 0
    %4704 = vmatmul.mubr.bf16.gmra.mxu0 %v3064
    %v4705 = vpop.f32.mrf.mxu0
    %v4706 = vadd.f32 %v3330, %v4705
    %v4707 = vpop.f32.mrf.mxu0
    %v4708 = vadd.f32 %v3334, %v4707
    %v4709 = vpop.f32.mrf.mxu0
    %v4710 = vpop.f32.mrf.mxu0
    %4711 = vdwg.mxu0
    %4712 = vmatprep.subr.bf16.mxu0 %v4146
    %4713 = vmatpush1.bf16.msra.mxu0 %v4145
    %4714 = vmatprep.subr.bf16.mxu0 %v4122
    %4715 = vmatpush1.bf16.msra.mxu0 %v4121
    %4716 = vmatprep.subr.bf16.mxu0 %v4098
    %4717 = vmatpush1.bf16.msra.mxu0 %v4097
    %4718 = vmatprep.subr.bf16.mxu0 %v4074
    %4719 = vmatpush1.bf16.msra.mxu0 %v4073
    %4720 = vmatprep.subr.bf16.mxu0 %v4050
    %4721 = vmatpush1.bf16.msra.mxu0 %v4049
    %4722 = vmatprep.subr.bf16.mxu0 %v4026
    %4723 = vmatpush1.bf16.msra.mxu0 %v4025
    %4724 = vmatprep.subr.bf16.mxu0 %v4002
    %4725 = vmatpush1.bf16.msra.mxu0 %v4001
    %4726 = vmatprep.subr.bf16.mxu0 %v3978
    %4727 = vmatpush1.bf16.msra.mxu0 %v3977
    %4728 = vmatprep.subr.bf16.mxu0 0
    %4729 = vmatpush2.bf16.msra.mxu0 0
    %4730 = vmatprep.subr.bf16.mxu0 0
    %4731 = vmatpush2.bf16.msra.mxu0 0
    %4732 = vmatprep.subr.bf16.mxu0 0
    %4733 = vmatpush2.bf16.msra.mxu0 0
    %4734 = vmatprep.subr.bf16.mxu0 0
    %4735 = vmatpush2.bf16.msra.mxu0 0
    %4736 = vmatprep.subr.bf16.mxu0 0
    %4737 = vmatpush2.bf16.msra.mxu0 0
    %4738 = vmatprep.subr.bf16.mxu0 0
    %4739 = vmatpush2.bf16.msra.mxu0 0
    %4740 = vmatprep.subr.bf16.mxu0 0
    %4741 = vmatpush2.bf16.msra.mxu0 0
    %4742 = vmatprep.subr.bf16.mxu0 0
    %4743 = vmatpush2.bf16.msra.mxu0 0
    %4744 = vmatprep.mubr.bf16.mxu0 0
    %4745 = vmatmul.mubr.bf16.gmra.mxu0 %v3064
    %v4746 = vpop.f32.mrf.mxu0
    %v4747 = vadd.f32 %v3338, %v4746
    %v4748 = vpop.f32.mrf.mxu0
    %v4749 = vadd.f32 %v3342, %v4748
    %v4750 = vpop.f32.mrf.mxu0
    %v4751 = vpop.f32.mrf.mxu0
    %4752 = vdwg.mxu0
    %4753 = vmatprep.subr.bf16.mxu0 %v4148
    %4754 = vmatpush1.bf16.msra.mxu0 %v4147
    %4755 = vmatprep.subr.bf16.mxu0 %v4124
    %4756 = vmatpush1.bf16.msra.mxu0 %v4123
    %4757 = vmatprep.subr.bf16.mxu0 %v4100
    %4758 = vmatpush1.bf16.msra.mxu0 %v4099
    %4759 = vmatprep.subr.bf16.mxu0 %v4076
    %4760 = vmatpush1.bf16.msra.mxu0 %v4075
    %4761 = vmatprep.subr.bf16.mxu0 %v4052
    %4762 = vmatpush1.bf16.msra.mxu0 %v4051
    %4763 = vmatprep.subr.bf16.mxu0 %v4028
    %4764 = vmatpush1.bf16.msra.mxu0 %v4027
    %4765 = vmatprep.subr.bf16.mxu0 %v4004
    %4766 = vmatpush1.bf16.msra.mxu0 %v4003
    %4767 = vmatprep.subr.bf16.mxu0 %v3980
    %4768 = vmatpush1.bf16.msra.mxu0 %v3979
    %4769 = vmatprep.subr.bf16.mxu0 0
    %4770 = vmatpush2.bf16.msra.mxu0 0
    %4771 = vmatprep.subr.bf16.mxu0 0
    %4772 = vmatpush2.bf16.msra.mxu0 0
    %4773 = vmatprep.subr.bf16.mxu0 0
    %4774 = vmatpush2.bf16.msra.mxu0 0
    %4775 = vmatprep.subr.bf16.mxu0 0
    %4776 = vmatpush2.bf16.msra.mxu0 0
    %4777 = vmatprep.subr.bf16.mxu0 0
    %4778 = vmatpush2.bf16.msra.mxu0 0
    %4779 = vmatprep.subr.bf16.mxu0 0
    %4780 = vmatpush2.bf16.msra.mxu0 0
    %4781 = vmatprep.subr.bf16.mxu0 0
    %4782 = vmatpush2.bf16.msra.mxu0 0
    %4783 = vmatprep.subr.bf16.mxu0 0
    %4784 = vmatpush2.bf16.msra.mxu0 0
    %4785 = vmatprep.mubr.bf16.mxu0 0
    %4786 = vmatmul.mubr.bf16.gmra.mxu0 %v3064
    %v4787 = vpop.f32.mrf.mxu0
    %v4788 = vadd.f32 %v3346, %v4787
    %v4789 = vpop.f32.mrf.mxu0
    %v4790 = vadd.f32 %v3350, %v4789
    %v4791 = vpop.f32.mrf.mxu0
    %v4792 = vpop.f32.mrf.mxu0
    %4793 = vdwg.mxu0
    %4794 = vmatprep.subr.bf16.mxu0 %v4150
    %4795 = vmatpush1.bf16.msra.mxu0 %v4149
    %4796 = vmatprep.subr.bf16.mxu0 %v4126
    %4797 = vmatpush1.bf16.msra.mxu0 %v4125
    %4798 = vmatprep.subr.bf16.mxu0 %v4102
    %4799 = vmatpush1.bf16.msra.mxu0 %v4101
    %4800 = vmatprep.subr.bf16.mxu0 %v4078
    %4801 = vmatpush1.bf16.msra.mxu0 %v4077
    %4802 = vmatprep.subr.bf16.mxu0 %v4054
    %4803 = vmatpush1.bf16.msra.mxu0 %v4053
    %4804 = vmatprep.subr.bf16.mxu0 %v4030
    %4805 = vmatpush1.bf16.msra.mxu0 %v4029
    %4806 = vmatprep.subr.bf16.mxu0 %v4006
    %4807 = vmatpush1.bf16.msra.mxu0 %v4005
    %4808 = vmatprep.subr.bf16.mxu0 %v3982
    %4809 = vmatpush1.bf16.msra.mxu0 %v3981
    %4810 = vmatprep.subr.bf16.mxu0 0
    %4811 = vmatpush2.bf16.msra.mxu0 0
    %4812 = vmatprep.subr.bf16.mxu0 0
    %4813 = vmatpush2.bf16.msra.mxu0 0
    %4814 = vmatprep.subr.bf16.mxu0 0
    %4815 = vmatpush2.bf16.msra.mxu0 0
    %4816 = vmatprep.subr.bf16.mxu0 0
    %4817 = vmatpush2.bf16.msra.mxu0 0
    %4818 = vmatprep.subr.bf16.mxu0 0
    %4819 = vmatpush2.bf16.msra.mxu0 0
    %4820 = vmatprep.subr.bf16.mxu0 0
    %4821 = vmatpush2.bf16.msra.mxu0 0
    %4822 = vmatprep.subr.bf16.mxu0 0
    %4823 = vmatpush2.bf16.msra.mxu0 0
    %4824 = vmatprep.subr.bf16.mxu0 0
    %4825 = vmatpush2.bf16.msra.mxu0 0
    %4826 = vmatprep.mubr.bf16.mxu0 0
    %4827 = vmatmul.mubr.bf16.gmra.mxu0 %v3064
    %v4828 = vpop.f32.mrf.mxu0
    %v4829 = vadd.f32 %v3354, %v4828
    %v4830 = vpop.f32.mrf.mxu0
    %v4831 = vadd.f32 %v3358, %v4830
    %v4832 = vpop.f32.mrf.mxu0
    %v4833 = vpop.f32.mrf.mxu0
    %4834 = vdwg.mxu0
    %v4835 = vtanh.pop %v4378
    %v4836 = vtanh.pop %v4380
    %v4837 = vtanh.pop %v4419
    %v4838 = vtanh.pop %v4421
    %v4839 = vtanh.pop %v4460
    %v4840 = vtanh.pop %v4462
    %v4841 = vtanh.pop %v4501
    %v4842 = vtanh.pop %v4503
    %v4843 = vtanh.pop %v4542
    %v4844 = vtanh.pop %v4544
    %v4845 = vtanh.pop %v4583
    %v4846 = vtanh.pop %v4585
    %v4847 = vtanh.pop %v4624
    %v4848 = vtanh.pop %v4626
    %v4849 = vtanh.pop %v4665
    %v4850 = vtanh.pop %v4667
    %v4851 = vtanh.pop %v4706
    %v4852 = vtanh.pop %v4708
    %v4853 = vtanh.pop %v4747
    %v4854 = vtanh.pop %v4749
    %v4855 = vtanh.pop %v4788
    %v4856 = vtanh.pop %v4790
    %v4857 = vtanh.pop %v4829
    %v4858 = vtanh.pop %v4831
    %v4883 = vcombine.low %v4835, %v4836
    %v4884 = vcombine.low %v4837, %v4838
    %v4886 = vunpack.c.l.s4 1983009808
    %v4887 = vunpack.c.0.s8 %v4886
    %v4888 = vlaneseq
    %v4889 = vshrl.u32 %v4888, 7
    %v4890 = vsub.s32 %v4887, %v4889
    %v4891 = vrot.slane %v4883, %v4890
    %v4893 = vunpack.c.l.s4 1983009808
    %v4894 = vunpack.c.0.s8 %v4893
    %v4895 = vlaneseq
    %v4896 = vshrl.u32 %v4895, 7
    %v4897 = vsub.s32 %v4894, %v4896
    %v4898 = vrot.slane %v4884, %v4897
    %v4899 = vcombine.low %v4891, %v4898
    %v4900 = vcombine.low %v4839, %v4840
    %v4901 = vcombine.low %v4841, %v4842
    %v4903 = vunpack.c.l.s4 1983009808
    %v4904 = vunpack.c.0.s8 %v4903
    %v4905 = vlaneseq
    %v4906 = vshrl.u32 %v4905, 7
    %v4907 = vsub.s32 %v4904, %v4906
    %v4908 = vrot.slane %v4900, %v4907
    %v4910 = vunpack.c.l.s4 1983009808
    %v4911 = vunpack.c.0.s8 %v4910
    %v4912 = vlaneseq
    %v4913 = vshrl.u32 %v4912, 7
    %v4914 = vsub.s32 %v4911, %v4913
    %v4915 = vrot.slane %v4901, %v4914
    %v4916 = vcombine.low %v4908, %v4915
    %v4917 = vcombine.low %v4843, %v4844
    %v4918 = vcombine.low %v4845, %v4846
    %v4920 = vunpack.c.l.s4 1983009808
    %v4921 = vunpack.c.0.s8 %v4920
    %v4922 = vlaneseq
    %v4923 = vshrl.u32 %v4922, 7
    %v4924 = vsub.s32 %v4921, %v4923
    %v4925 = vrot.slane %v4917, %v4924
    %v4927 = vunpack.c.l.s4 1983009808
    %v4928 = vunpack.c.0.s8 %v4927
    %v4929 = vlaneseq
    %v4930 = vshrl.u32 %v4929, 7
    %v4931 = vsub.s32 %v4928, %v4930
    %v4932 = vrot.slane %v4918, %v4931
    %v4933 = vcombine.low %v4925, %v4932
    %v4934 = vcombine.low %v4847, %v4848
    %v4935 = vcombine.low %v4849, %v4850
    %v4937 = vunpack.c.l.s4 1983009808
    %v4938 = vunpack.c.0.s8 %v4937
    %v4939 = vlaneseq
    %v4940 = vshrl.u32 %v4939, 7
    %v4941 = vsub.s32 %v4938, %v4940
    %v4942 = vrot.slane %v4934, %v4941
    %v4944 = vunpack.c.l.s4 1983009808
    %v4945 = vunpack.c.0.s8 %v4944
    %v4946 = vlaneseq
    %v4947 = vshrl.u32 %v4946, 7
    %v4948 = vsub.s32 %v4945, %v4947
    %v4949 = vrot.slane %v4935, %v4948
    %v4950 = vcombine.low %v4942, %v4949
    %v4951 = vcombine.low %v4851, %v4852
    %v4952 = vcombine.low %v4853, %v4854
    %v4954 = vunpack.c.l.s4 1983009808
    %v4955 = vunpack.c.0.s8 %v4954
    %v4956 = vlaneseq
    %v4957 = vshrl.u32 %v4956, 7
    %v4958 = vsub.s32 %v4955, %v4957
    %v4959 = vrot.slane %v4951, %v4958
    %v4961 = vunpack.c.l.s4 1983009808
    %v4962 = vunpack.c.0.s8 %v4961
    %v4963 = vlaneseq
    %v4964 = vshrl.u32 %v4963, 7
    %v4965 = vsub.s32 %v4962, %v4964
    %v4966 = vrot.slane %v4952, %v4965
    %v4967 = vcombine.low %v4959, %v4966
    %v4968 = vcombine.low %v4855, %v4856
    %v4969 = vcombine.low %v4857, %v4858
    %v4971 = vunpack.c.l.s4 1983009808
    %v4972 = vunpack.c.0.s8 %v4971
    %v4973 = vlaneseq
    %v4974 = vshrl.u32 %v4973, 7
    %v4975 = vsub.s32 %v4972, %v4974
    %v4976 = vrot.slane %v4968, %v4975
    %v4978 = vunpack.c.l.s4 1983009808
    %v4979 = vunpack.c.0.s8 %v4978
    %v4980 = vlaneseq
    %v4981 = vshrl.u32 %v4980, 7
    %v4982 = vsub.s32 %v4979, %v4981
    %v4983 = vrot.slane %v4969, %v4982
    %v4984 = vcombine.low %v4976, %v4983
    %4991 = vst [vmem:[#allocation20] sm:$0xff] %v4899
    %4992 = vst [vmem:[#allocation20 + $0x8] sm:$0xff] %v4916
    %4993 = vst [vmem:[#allocation20 + $0x10] sm:$0xff] %v4933
    %4994 = vst [vmem:[#allocation20 + $0x18] sm:$0xff] %v4950
    %4995 = vst [vmem:[#allocation20 + $0x20] sm:$0xff] %v4967
    %4996 = vst [vmem:[#allocation20 + $0x28] sm:$0xff] %v4984
    // Predicated region
    $region114: #{fwd.1} parent=1 // pred_check
      _
    $region115: #{fwd.1} parent=1 // pred_check_branch
      %4998 = sbr.rel (0) target = $region117
    $region116: #{fwd.1} parent=1 // pred_region
      %s5000 = ssub.s32 768, 768
      %5001 = vsyncadd [#allocation4], %s5000
      %s5003 = sshll.u32 [#allocation20], 4
      %s5004 = int_to_ptr.vmem [resolvable:$true] %s5003
      %5006 = dma.vmem_to_hbm [thread:$0]  %s5004, 768, %s17, [#allocation4]
    $region117: #{fwd.1} parent=1 // pred_fallthru
      _
    // Predicated region
    $region118: #{fwd.1} parent=1 // pred_check
      _
    $region119: #{fwd.1} parent=1 // pred_check_branch
      %5008 = sbr.rel (0) target = $region121
    $region120: #{fwd.1} parent=1 // pred_region
      %5009 = dma.done [#allocation4], 768
    $region121: #{fwd.1} parent=1 // pred_fallthru
      _
    %5010 = vsyncpa [#allocation3], 1
    %5011 = vsyncpa [#allocation6], 1
    %5012 = vsyncpa [#allocation9], 1
    %5013 = vsyncpa [#allocation12], 1
    %5014 = vsyncpa [#allocation15], 1
    %5015 = vsyncpa [#allocation18], 1
    %5016 = vsyncpa [#allocation4], 1

</llo_original>
